<compile_context>
chip_gen: v6e
topology: v6e:2x2x1
jax: 0.10.0
libtpu: 0.0.40
codegen_flags: <defaults>
</compile_context>

<pallas_src>
import jax
import jax.numpy as jnp
from jax import lax
from jax.experimental import pallas as pl
from jax.experimental.pallas import tpu as pltpu


# --------------------- weight re-layout helpers (wrapper side) ----------------
def _interleave_gate_cols(wf, wb, H):
    """(R, 4H) fwd & bwd -> (R, 8H) with per-gate blocks [gate_f | gate_b] (2H)."""
    R = wf.shape[0]
    wf4 = wf.reshape(R, 4, 1, H)
    wb4 = wb.reshape(R, 4, 1, H)
    return jnp.concatenate([wf4, wb4], axis=2).reshape(R, 8 * H)


# ------------------------- Fused encoder-decoder kernel ----------------------
def make_encdec_kernel(Bp, Tx, Td, V2, H):
    G = 2 * H            # combined gate width (encoder) == decoder hidden Hd
    T_all = Tx + Td
    f32 = jnp.float32

    def _gates(z, c_prev):
        # PyTorch gate order i, f, g, o; each block is G lanes wide.
        i = jax.nn.sigmoid(z[:, 0 * G:1 * G])
        f = jax.nn.sigmoid(z[:, 1 * G:2 * G])
        g = jnp.tanh(z[:, 2 * G:3 * G])
        o = jax.nn.sigmoid(z[:, 3 * G:4 * G])
        c_new = f * c_prev + i * g
        return o * jnp.tanh(c_new), c_new

    def kernel(ids_ref, table_ref, whh_e_ref, whh_d_ref, out_w_ref, out_b_ref,
               scores_ref, z_sc):
        # ---- prologue: ONE one-hot matmul produces every input projection
        #      (biases folded into the table rows, so they come along for free).
        onehot = (ids_ref[...] ==
                  lax.broadcasted_iota(jnp.int32, (T_all * Bp, V2), 1)).astype(f32)
        z_all = jnp.dot(onehot, table_ref[...], preferred_element_type=f32)
        z_sc[...] = z_all.reshape(T_all, Bp, 4 * G)   # time-major, tile-aligned

        # lane mask: True on the fwd half (first H lanes) of each 2H gate block
        lane = lax.broadcasted_iota(jnp.int32, (Bp, 4 * G), 1)
        fwd_mask = (lane % G) < H

        # ---- fused bidirectional encoder: one block-diag h@W_hh per step
        def enc_step(t, carry):
            h, c = carry                                   # (Bp, 2H) = [fwd | bwd]
            z_in = jnp.where(fwd_mask, z_sc[t], z_sc[Tx - 1 - t])
            z = z_in + jnp.dot(h, whh_e_ref[...], preferred_element_type=f32)
            return _gates(z, c)

        zeros = jnp.zeros((Bp, G), f32)
        h, c = lax.fori_loop(0, Tx, enc_step, (zeros, zeros), unroll=True)
        # [h_f | h_b], [c_f | c_b] already match bidirectional_reshape's layout,
        # so they are the decoder's initial (h, c) with zero extra work.

        # ---- decoder (teacher forcing) with the output Linear fused per step
        def dec_step(t, carry):
            h, c = carry
            z = z_sc[Tx + t] + jnp.dot(h, whh_d_ref[...], preferred_element_type=f32)
            h, c = _gates(z, c)
            scores_ref[t] = (jnp.dot(h, out_w_ref[...], preferred_element_type=f32)
                             + out_b_ref[...])
            return h, c

        h, c = lax.fori_loop(0, Td, dec_step, (h, c), unroll=True)

    return kernel


# ------------------------------ Parameters -----------------------------------
def init_params(key, n_inputs, n_outputs, E, H, pad_in, pad_out):
    ks = jax.random.split(key, 12)
    u = lambda k, s: jax.random.uniform(k, s, jnp.float32, -0.1, 0.1)
    Hd = 2 * H  # bidirectional=True -> decoder hidden size doubles
    return dict(
        # padding_idx rows are zero (as in nn.Embedding(padding_idx=...))
        enc_emb=u(ks[0], (n_inputs, E)).at[pad_in].set(0.0),
        # NOTE: the PyTorch spec uses nn.Embedding(n_inputs, ...) for the decoder too.
        dec_emb=u(ks[1], (n_inputs, E)).at[pad_out].set(0.0),
        # b represents b_ih + b_hh of nn.LSTM (their sum) — forward-equivalent.
        enc_f=dict(w_ih=u(ks[2], (E, 4 * H)), w_hh=u(ks[3], (H, 4 * H)),
                   b=u(ks[4], (1, 4 * H))),
        enc_b=dict(w_ih=u(ks[5], (E, 4 * H)), w_hh=u(ks[6], (H, 4 * H)),
                   b=u(ks[7], (1, 4 * H))),
        dec=dict(w_ih=u(ks[8], (E, 4 * Hd)), w_hh=u(ks[9], (Hd, 4 * Hd)),
                 b=u(ks[10], (1, 4 * Hd))),
        out_w=u(ks[11], (Hd, n_outputs)),
        out_b=jnp.zeros((1, n_outputs), jnp.float32),
    )


# ------------------------------ Forward pass ----------------------------------
def encoder_decoder_forward(params, X, y):
    """Mirrors EncoderDecoder.forward: encode(X); decode(y[:, :-1]) teacher forcing."""
    B, Tx = X.shape
    Td = y.shape[1] - 1
    V, E = params["enc_emb"].shape
    H = params["enc_f"]["w_hh"].shape[0]
    Hd = 2 * H
    N_out = params["out_w"].shape[1]
    N_pad = 128                                  # lane-dense output width
    Bp = max(8, ((B + 7) // 8) * 8)              # pad batch -> full sublanes
    f32 = jnp.float32

    # ---- weight re-layout (tiny, folded by XLA under jit) ----
    wih_enc = _interleave_gate_cols(params["enc_f"]["w_ih"],
                                    params["enc_b"]["w_ih"], H)        # (E, 8H)
    b_enc = _interleave_gate_cols(params["enc_f"]["b"],
                                  params["enc_b"]["b"], H)             # (1, 8H)
    zH = jnp.zeros((H, 4 * H), f32)
    whh_enc = jnp.concatenate(                                          # (2H, 8H)
        [_interleave_gate_cols(params["enc_f"]["w_hh"], zH, H),         # rows: h_f
         _interleave_gate_cols(zH, params["enc_b"]["w_hh"], H)], axis=0)  # rows: h_b
    # embedding lookup + input projection + bias folded into one (2V, 8H) table
    table = jnp.concatenate(
        [jnp.dot(params["enc_emb"], wih_enc) + b_enc,
         jnp.dot(params["dec_emb"], params["dec"]["w_ih"]) + params["dec"]["b"]],
        axis=0)
    out_w = jnp.zeros((Hd, N_pad), f32).at[:, :N_out].set(params["out_w"])
    out_b = jnp.zeros((1, N_pad), f32).at[:, :N_out].set(params["out_b"])

    # ---- token ids: pad batch to Bp, time-major, decoder ids offset into table ----
    Xp = jnp.zeros((Bp, Tx), jnp.int32).at[:B].set(X.astype(jnp.int32))
    Yp = jnp.zeros((Bp, Td), jnp.int32).at[:B].set(y[:, :-1].astype(jnp.int32))
    ids = jnp.concatenate([Xp.T.reshape(Tx * Bp, 1),
                           Yp.T.reshape(Td * Bp, 1) + V], axis=0)

    kernel = make_encdec_kernel(Bp, Tx, Td, 2 * V, H)
    scores_pad = pl.pallas_call(
        kernel,
        out_shape=jax.ShapeDtypeStruct((Td, Bp, N_pad), f32),
        scratch_shapes=[pltpu.VMEM((Tx + Td, Bp, 4 * Hd), f32)],  # input projections
    )(ids, table, whh_enc, params["dec"]["w_hh"], out_w, out_b)

    # (Td, Bp, 128) time-major padded -> (B, Td, N_out)
    return jnp.transpose(scores_pad[:, :B, :N_out], (1, 0, 2))


# ----------------------- Pure-JAX reference (for checking) --------------------
def reference_forward(params, X, y):
    B, Tx = X.shape
    Td = y.shape[1] - 1
    H = params["enc_f"]["w_hh"].shape[0]
    Hd = 2 * H

    def cell(x_e, h, c, p, G):
        z = x_e @ p["w_ih"] + h @ p["w_hh"] + p["b"]
        i = jax.nn.sigmoid(z[:, :G]); f = jax.nn.sigmoid(z[:, G:2 * G])
        g = jnp.tanh(z[:, 2 * G:3 * G]); o = jax.nn.sigmoid(z[:, 3 * G:4 * G])
        c = f * c + i * g
        return o * jnp.tanh(c), c

    x_emb = params["enc_emb"][X]              # (B, Tx, E)
    y_emb = params["dec_emb"][y[:, :-1]]      # (B, Td, E)
    h_f = c_f = h_b = c_b = jnp.zeros((B, H), jnp.float32)
    for t in range(Tx):
        h_f, c_f = cell(x_emb[:, t], h_f, c_f, params["enc_f"], H)
        h_b, c_b = cell(x_emb[:, Tx - 1 - t], h_b, c_b, params["enc_b"], H)
    h = jnp.concatenate([h_f, h_b], -1)
    c = jnp.concatenate([c_f, c_b], -1)
    outs = []
    for t in range(Td):
        h, c = cell(y_emb[:, t], h, c, params["dec"], Hd)
        outs.append(h @ params["out_w"] + params["out_b"])
    return jnp.stack(outs, axis=1)            # (B, Td, N_out)


# --------------------------------- Main ---------------------------------------
if __name__ == "__main__":
    n_inputs = 32      # encoder/decoder embedding rows
    n_outputs = 16     # output vocab size
    E = 16             # embeddings_size
    H = 32             # hidden_sizes (per direction)
    B, Tx, Ty = 2, 8, 8
    PAD_IN, PAD_OUT = 0, 0   # input_vocab['$PAD'], output_vocab['$PAD']

    key = jax.random.PRNGKey(0)
    kp, kx, ky = jax.random.split(key, 3)
    params = init_params(kp, n_inputs, n_outputs, E, H, PAD_IN, PAD_OUT)
    X = jax.random.randint(kx, (B, Tx), 0, n_inputs, dtype=jnp.int32)
    y = jax.random.randint(ky, (B, Ty), 0, n_inputs, dtype=jnp.int32)

    forward = jax.jit(encoder_decoder_forward)
    scores = jax.block_until_ready(forward(params, X, y))
    assert scores.shape == (B, Ty - 1, n_outputs), scores.shape

    ref = reference_forward(params, X, y)
    err = float(jnp.max(jnp.abs(scores - ref)))
    assert err < 5e-3, f"max abs err vs reference = {err}"
    # TODO(synk): torchnlp Attention path and predict() greedy loop not implemented
    # (attention=None config chosen; only forward() with teacher forcing).
    print("KERNEL_OK")
</pallas_src>

<mosaic_0001>
module attributes {stable_mosaic.version = 11 : i64} {
  func.func @kernel(%arg0: memref<120x1xi32, #tpu.memory_space<vmem>>, %arg1: memref<64x256xf32, #tpu.memory_space<vmem>>, %arg2: memref<64x256xf32, #tpu.memory_space<vmem>>, %arg3: memref<64x256xf32, #tpu.memory_space<vmem>>, %arg4: memref<64x128xf32, #tpu.memory_space<vmem>>, %arg5: memref<1x128xf32, #tpu.memory_space<vmem>>, %arg6: memref<7x8x128xf32, #tpu.memory_space<vmem>>, %arg7: memref<15x8x256xf32, #tpu.memory_space<vmem>>) attributes {dimension_semantics = [], scalar_prefetch = 0 : i64, scratch_operands = 1 : i64, tpu.core_type = #tpu.core_type<tc>} {
    %c0 = arith.constant 0 : index
    %c0_0 = arith.constant 0 : index
    %0 = vector.load %arg0[%c0, %c0_0] : memref<120x1xi32, #tpu.memory_space<vmem>>, vector<120x1xi32>
    %1 = tpu.iota {dimensions = array<i32: 1>} : vector<120x64xi32>
    %2 = vector.broadcast %0 : vector<120x1xi32> to vector<120x64xi32>
    %3 = arith.cmpi eq, %2, %1 : vector<120x64xi32>
    %4 = arith.extui %3 : vector<120x64xi1> to vector<120x64xi32>
    %5 = arith.sitofp %4 : vector<120x64xi32> to vector<120x64xf32>
    %c0_1 = arith.constant 0 : index
    %c0_2 = arith.constant 0 : index
    %6 = vector.load %arg1[%c0_1, %c0_2] : memref<64x256xf32, #tpu.memory_space<vmem>>, vector<64x256xf32>
    %cst = arith.constant dense<0.000000e+00> : vector<120x256xf32>
    %7 = tpu.matmul %5, %6, %cst {dimension_numbers = #tpu.dot_dimension_numbers<[1], [0], [0], [1], [0, 0, 1, 1], [], []>} : vector<120x64xf32>, vector<64x256xf32>, vector<120x256xf32> -> vector<120x256xf32>
    %8 = vector.shape_cast %7 : vector<120x256xf32> to vector<15x8x256xf32>
    %c0_3 = arith.constant 0 : index
    %c0_4 = arith.constant 0 : index
    %c0_5 = arith.constant 0 : index
    %9 = vector.load %arg7[%c0_3, %c0_4, %c0_5] : memref<15x8x256xf32, #tpu.memory_space<vmem>>, vector<15x8x256xf32>
    tpu.vector_store %arg7[%c0_3, %c0_4, %c0_5], %8 {strides = array<i32>} : memref<15x8x256xf32, #tpu.memory_space<vmem>>, vector<15x8x256xf32>,
    %10 = tpu.iota {dimensions = array<i32: 1>} : vector<8x256xi32>
    %c64_i32 = arith.constant 64 : i32
    %c0_i32 = arith.constant 0 : i32
    %11 = arith.cmpi eq, %c64_i32, %c0_i32 : i32
    %c1_i32 = arith.constant 1 : i32
    %12 = arith.select %11, %c1_i32, %c64_i32 : i32
    %13 = vector.broadcast %12 : i32 to vector<8x256xi32>
    %14 = arith.remsi %10, %13 : vector<8x256xi32>
    %c0_i32_6 = arith.constant 0 : i32
    %15 = vector.broadcast %c0_i32_6 : i32 to vector<8x256xi32>
    %16 = arith.cmpi ne, %14, %15 : vector<8x256xi32>
    %c0_i32_7 = arith.constant 0 : i32
    %17 = vector.broadcast %c0_i32_7 : i32 to vector<8x256xi32>
    %18 = arith.cmpi slt, %14, %17 : vector<8x256xi32>
    %c0_i32_8 = arith.constant 0 : i32
    %19 = arith.cmpi slt, %12, %c0_i32_8 : i32
    %20 = vector.broadcast %19 : i1 to vector<8x256xi1>
    %21 = vector.broadcast %20 : vector<8x256xi1> to vector<8x256xi1>
    %22 = arith.xori %18, %21 : vector<8x256xi1>
    %23 = arith.andi %22, %16 : vector<8x256xi1>
    %24 = vector.broadcast %12 : i32 to vector<8x256xi32>
    %25 = arith.addi %14, %24 : vector<8x256xi32>
    %26 = arith.select %23, %25, %14 : vector<8x256xi1>, vector<8x256xi32>
    %c32_i32 = arith.constant 32 : i32
    %27 = vector.broadcast %c32_i32 : i32 to vector<8x256xi32>
    %28 = arith.cmpi slt, %26, %27 : vector<8x256xi32>
    %cst_9 = arith.constant 0.000000e+00 : f32
    %29 = vector.broadcast %cst_9 : f32 to vector<8x64xf32>
    %c0_i32_10 = arith.constant 0 : i32
    %30 = arith.index_cast %c0_i32_10 : i32 to index
    %c0_11 = arith.constant 0 : index
    %c0_12 = arith.constant 0 : index
    %31 = vector.load %arg7[%30, %c0_11, %c0_12] : memref<15x8x256xf32, #tpu.memory_space<vmem>>, vector<1x8x256xf32>
    %32 = vector.shape_cast %31 : vector<1x8x256xf32> to vector<8x256xf32>
    %c7_i32 = arith.constant 7 : i32
    %33 = arith.subi %c7_i32, %c0_i32_10 : i32
    %34 = arith.index_cast %33 : i32 to index
    %c0_13 = arith.constant 0 : index
    %c0_14 = arith.constant 0 : index
    %35 = vector.load %arg7[%34, %c0_13, %c0_14] : memref<15x8x256xf32, #tpu.memory_space<vmem>>, vector<1x8x256xf32>
    %36 = vector.shape_cast %35 : vector<1x8x256xf32> to vector<8x256xf32>
    %37 = arith.select %28, %32, %36 : vector<8x256xi1>, vector<8x256xf32>
    %c0_15 = arith.constant 0 : index
    %c0_16 = arith.constant 0 : index
    %38 = vector.load %arg2[%c0_15, %c0_16] : memref<64x256xf32, #tpu.memory_space<vmem>>, vector<64x256xf32>
    %cst_17 = arith.constant dense<0.000000e+00> : vector<8x256xf32>
    %39 = tpu.matmul %29, %38, %cst_17 {dimension_numbers = #tpu.dot_dimension_numbers<[1], [0], [0], [1], [0, 0, 1, 1], [], []>} : vector<8x64xf32>, vector<64x256xf32>, vector<8x256xf32> -> vector<8x256xf32>
    %40 = arith.addf %37, %39 : vector<8x256xf32>
    %41 = vector.extract_strided_slice %40 {offsets = [0, 0], sizes = [8, 64], strides = [1, 1]} : vector<8x256xf32> to vector<8x64xf32>
    %42 = arith.negf %41 : vector<8x64xf32>
    %43 = math.exp %42 : vector<8x64xf32>
    %cst_18 = arith.constant 1.000000e+00 : f32
    %44 = vector.broadcast %cst_18 : f32 to vector<8x64xf32>
    %45 = arith.addf %44, %43 : vector<8x64xf32>
    %46 = arith.divf %44, %45 : vector<8x64xf32>
    %47 = vector.extract_strided_slice %40 {offsets = [0, 64], sizes = [8, 64], strides = [1, 1]} : vector<8x256xf32> to vector<8x64xf32>
    %48 = arith.negf %47 : vector<8x64xf32>
    %49 = math.exp %48 : vector<8x64xf32>
    %cst_19 = arith.constant 1.000000e+00 : f32
    %50 = vector.broadcast %cst_19 : f32 to vector<8x64xf32>
    %51 = arith.addf %50, %49 : vector<8x64xf32>
    %52 = arith.divf %50, %51 : vector<8x64xf32>
    %53 = vector.extract_strided_slice %40 {offsets = [0, 128], sizes = [8, 64], strides = [1, 1]} : vector<8x256xf32> to vector<8x64xf32>
    %54 = math.tanh %53 : vector<8x64xf32>
    %55 = vector.extract_strided_slice %40 {offsets = [0, 192], sizes = [8, 64], strides = [1, 1]} : vector<8x256xf32> to vector<8x64xf32>
    %56 = arith.negf %55 : vector<8x64xf32>
    %57 = math.exp %56 : vector<8x64xf32>
    %cst_20 = arith.constant 1.000000e+00 : f32
    %58 = vector.broadcast %cst_20 : f32 to vector<8x64xf32>
    %59 = arith.addf %58, %57 : vector<8x64xf32>
    %60 = arith.divf %58, %59 : vector<8x64xf32>
    %61 = arith.mulf %52, %29 : vector<8x64xf32>
    %62 = arith.mulf %46, %54 : vector<8x64xf32>
    %63 = arith.addf %61, %62 : vector<8x64xf32>
    %64 = math.tanh %63 : vector<8x64xf32>
    %65 = arith.mulf %60, %64 : vector<8x64xf32>
    %c1_i32_21 = arith.constant 1 : i32
    %66 = arith.index_cast %c1_i32_21 : i32 to index
    %c0_22 = arith.constant 0 : index
    %c0_23 = arith.constant 0 : index
    %67 = vector.load %arg7[%66, %c0_22, %c0_23] : memref<15x8x256xf32, #tpu.memory_space<vmem>>, vector<1x8x256xf32>
    %68 = vector.shape_cast %67 : vector<1x8x256xf32> to vector<8x256xf32>
    %c7_i32_24 = arith.constant 7 : i32
    %69 = arith.subi %c7_i32_24, %c1_i32_21 : i32
    %70 = arith.index_cast %69 : i32 to index
    %c0_25 = arith.constant 0 : index
    %c0_26 = arith.constant 0 : index
    %71 = vector.load %arg7[%70, %c0_25, %c0_26] : memref<15x8x256xf32, #tpu.memory_space<vmem>>, vector<1x8x256xf32>
    %72 = vector.shape_cast %71 : vector<1x8x256xf32> to vector<8x256xf32>
    %73 = arith.select %28, %68, %72 : vector<8x256xi1>, vector<8x256xf32>
    %c0_27 = arith.constant 0 : index
    %c0_28 = arith.constant 0 : index
    %74 = vector.load %arg2[%c0_27, %c0_28] : memref<64x256xf32, #tpu.memory_space<vmem>>, vector<64x256xf32>
    %cst_29 = arith.constant dense<0.000000e+00> : vector<8x256xf32>
    %75 = tpu.matmul %65, %74, %cst_29 {dimension_numbers = #tpu.dot_dimension_numbers<[1], [0], [0], [1], [0, 0, 1, 1], [], []>} : vector<8x64xf32>, vector<64x256xf32>, vector<8x256xf32> -> vector<8x256xf32>
    %76 = arith.addf %73, %75 : vector<8x256xf32>
    %77 = vector.extract_strided_slice %76 {offsets = [0, 0], sizes = [8, 64], strides = [1, 1]} : vector<8x256xf32> to vector<8x64xf32>
    %78 = arith.negf %77 : vector<8x64xf32>
    %79 = math.exp %78 : vector<8x64xf32>
    %cst_30 = arith.constant 1.000000e+00 : f32
    %80 = vector.broadcast %cst_30 : f32 to vector<8x64xf32>
    %81 = arith.addf %80, %79 : vector<8x64xf32>
    %82 = arith.divf %80, %81 : vector<8x64xf32>
    %83 = vector.extract_strided_slice %76 {offsets = [0, 64], sizes = [8, 64], strides = [1, 1]} : vector<8x256xf32> to vector<8x64xf32>
    %84 = arith.negf %83 : vector<8x64xf32>
    %85 = math.exp %84 : vector<8x64xf32>
    %cst_31 = arith.constant 1.000000e+00 : f32
    %86 = vector.broadcast %cst_31 : f32 to vector<8x64xf32>
    %87 = arith.addf %86, %85 : vector<8x64xf32>
    %88 = arith.divf %86, %87 : vector<8x64xf32>
    %89 = vector.extract_strided_slice %76 {offsets = [0, 128], sizes = [8, 64], strides = [1, 1]} : vector<8x256xf32> to vector<8x64xf32>
    %90 = math.tanh %89 : vector<8x64xf32>
    %91 = vector.extract_strided_slice %76 {offsets = [0, 192], sizes = [8, 64], strides = [1, 1]} : vector<8x256xf32> to vector<8x64xf32>
    %92 = arith.negf %91 : vector<8x64xf32>
    %93 = math.exp %92 : vector<8x64xf32>
    %cst_32 = arith.constant 1.000000e+00 : f32
    %94 = vector.broadcast %cst_32 : f32 to vector<8x64xf32>
    %95 = arith.addf %94, %93 : vector<8x64xf32>
    %96 = arith.divf %94, %95 : vector<8x64xf32>
    %97 = arith.mulf %88, %63 : vector<8x64xf32>
    %98 = arith.mulf %82, %90 : vector<8x64xf32>
    %99 = arith.addf %97, %98 : vector<8x64xf32>
    %100 = math.tanh %99 : vector<8x64xf32>
    %101 = arith.mulf %96, %100 : vector<8x64xf32>
    %c2_i32 = arith.constant 2 : i32
    %102 = arith.index_cast %c2_i32 : i32 to index
    %c0_33 = arith.constant 0 : index
    %c0_34 = arith.constant 0 : index
    %103 = vector.load %arg7[%102, %c0_33, %c0_34] : memref<15x8x256xf32, #tpu.memory_space<vmem>>, vector<1x8x256xf32>
    %104 = vector.shape_cast %103 : vector<1x8x256xf32> to vector<8x256xf32>
    %c7_i32_35 = arith.constant 7 : i32
    %105 = arith.subi %c7_i32_35, %c2_i32 : i32
    %106 = arith.index_cast %105 : i32 to index
    %c0_36 = arith.constant 0 : index
    %c0_37 = arith.constant 0 : index
    %107 = vector.load %arg7[%106, %c0_36, %c0_37] : memref<15x8x256xf32, #tpu.memory_space<vmem>>, vector<1x8x256xf32>
    %108 = vector.shape_cast %107 : vector<1x8x256xf32> to vector<8x256xf32>
    %109 = arith.select %28, %104, %108 : vector<8x256xi1>, vector<8x256xf32>
    %c0_38 = arith.constant 0 : index
    %c0_39 = arith.constant 0 : index
    %110 = vector.load %arg2[%c0_38, %c0_39] : memref<64x256xf32, #tpu.memory_space<vmem>>, vector<64x256xf32>
    %cst_40 = arith.constant dense<0.000000e+00> : vector<8x256xf32>
    %111 = tpu.matmul %101, %110, %cst_40 {dimension_numbers = #tpu.dot_dimension_numbers<[1], [0], [0], [1], [0, 0, 1, 1], [], []>} : vector<8x64xf32>, vector<64x256xf32>, vector<8x256xf32> -> vector<8x256xf32>
    %112 = arith.addf %109, %111 : vector<8x256xf32>
    %113 = vector.extract_strided_slice %112 {offsets = [0, 0], sizes = [8, 64], strides = [1, 1]} : vector<8x256xf32> to vector<8x64xf32>
    %114 = arith.negf %113 : vector<8x64xf32>
    %115 = math.exp %114 : vector<8x64xf32>
    %cst_41 = arith.constant 1.000000e+00 : f32
    %116 = vector.broadcast %cst_41 : f32 to vector<8x64xf32>
    %117 = arith.addf %116, %115 : vector<8x64xf32>
    %118 = arith.divf %116, %117 : vector<8x64xf32>
    %119 = vector.extract_strided_slice %112 {offsets = [0, 64], sizes = [8, 64], strides = [1, 1]} : vector<8x256xf32> to vector<8x64xf32>
    %120 = arith.negf %119 : vector<8x64xf32>
    %121 = math.exp %120 : vector<8x64xf32>
    %cst_42 = arith.constant 1.000000e+00 : f32
    %122 = vector.broadcast %cst_42 : f32 to vector<8x64xf32>
    %123 = arith.addf %122, %121 : vector<8x64xf32>
    %124 = arith.divf %122, %123 : vector<8x64xf32>
    %125 = vector.extract_strided_slice %112 {offsets = [0, 128], sizes = [8, 64], strides = [1, 1]} : vector<8x256xf32> to vector<8x64xf32>
    %126 = math.tanh %125 : vector<8x64xf32>
    %127 = vector.extract_strided_slice %112 {offsets = [0, 192], sizes = [8, 64], strides = [1, 1]} : vector<8x256xf32> to vector<8x64xf32>
    %128 = arith.negf %127 : vector<8x64xf32>
    %129 = math.exp %128 : vector<8x64xf32>
    %cst_43 = arith.constant 1.000000e+00 : f32
    %130 = vector.broadcast %cst_43 : f32 to vector<8x64xf32>
    %131 = arith.addf %130, %129 : vector<8x64xf32>
    %132 = arith.divf %130, %131 : vector<8x64xf32>
    %133 = arith.mulf %124, %99 : vector<8x64xf32>
    %134 = arith.mulf %118, %126 : vector<8x64xf32>
    %135 = arith.addf %133, %134 : vector<8x64xf32>
    %136 = math.tanh %135 : vector<8x64xf32>
    %137 = arith.mulf %132, %136 : vector<8x64xf32>
    %c3_i32 = arith.constant 3 : i32
    %138 = arith.index_cast %c3_i32 : i32 to index
    %c0_44 = arith.constant 0 : index
    %c0_45 = arith.constant 0 : index
    %139 = vector.load %arg7[%138, %c0_44, %c0_45] : memref<15x8x256xf32, #tpu.memory_space<vmem>>, vector<1x8x256xf32>
    %140 = vector.shape_cast %139 : vector<1x8x256xf32> to vector<8x256xf32>
    %c7_i32_46 = arith.constant 7 : i32
    %141 = arith.subi %c7_i32_46, %c3_i32 : i32
    %142 = arith.index_cast %141 : i32 to index
    %c0_47 = arith.constant 0 : index
    %c0_48 = arith.constant 0 : index
    %143 = vector.load %arg7[%142, %c0_47, %c0_48] : memref<15x8x256xf32, #tpu.memory_space<vmem>>, vector<1x8x256xf32>
    %144 = vector.shape_cast %143 : vector<1x8x256xf32> to vector<8x256xf32>
    %145 = arith.select %28, %140, %144 : vector<8x256xi1>, vector<8x256xf32>
    %c0_49 = arith.constant 0 : index
    %c0_50 = arith.constant 0 : index
    %146 = vector.load %arg2[%c0_49, %c0_50] : memref<64x256xf32, #tpu.memory_space<vmem>>, vector<64x256xf32>
    %cst_51 = arith.constant dense<0.000000e+00> : vector<8x256xf32>
    %147 = tpu.matmul %137, %146, %cst_51 {dimension_numbers = #tpu.dot_dimension_numbers<[1], [0], [0], [1], [0, 0, 1, 1], [], []>} : vector<8x64xf32>, vector<64x256xf32>, vector<8x256xf32> -> vector<8x256xf32>
    %148 = arith.addf %145, %147 : vector<8x256xf32>
    %149 = vector.extract_strided_slice %148 {offsets = [0, 0], sizes = [8, 64], strides = [1, 1]} : vector<8x256xf32> to vector<8x64xf32>
    %150 = arith.negf %149 : vector<8x64xf32>
    %151 = math.exp %150 : vector<8x64xf32>
    %cst_52 = arith.constant 1.000000e+00 : f32
    %152 = vector.broadcast %cst_52 : f32 to vector<8x64xf32>
    %153 = arith.addf %152, %151 : vector<8x64xf32>
    %154 = arith.divf %152, %153 : vector<8x64xf32>
    %155 = vector.extract_strided_slice %148 {offsets = [0, 64], sizes = [8, 64], strides = [1, 1]} : vector<8x256xf32> to vector<8x64xf32>
    %156 = arith.negf %155 : vector<8x64xf32>
    %157 = math.exp %156 : vector<8x64xf32>
    %cst_53 = arith.constant 1.000000e+00 : f32
    %158 = vector.broadcast %cst_53 : f32 to vector<8x64xf32>
    %159 = arith.addf %158, %157 : vector<8x64xf32>
    %160 = arith.divf %158, %159 : vector<8x64xf32>
    %161 = vector.extract_strided_slice %148 {offsets = [0, 128], sizes = [8, 64], strides = [1, 1]} : vector<8x256xf32> to vector<8x64xf32>
    %162 = math.tanh %161 : vector<8x64xf32>
    %163 = vector.extract_strided_slice %148 {offsets = [0, 192], sizes = [8, 64], strides = [1, 1]} : vector<8x256xf32> to vector<8x64xf32>
    %164 = arith.negf %163 : vector<8x64xf32>
    %165 = math.exp %164 : vector<8x64xf32>
    %cst_54 = arith.constant 1.000000e+00 : f32
    %166 = vector.broadcast %cst_54 : f32 to vector<8x64xf32>
    %167 = arith.addf %166, %165 : vector<8x64xf32>
    %168 = arith.divf %166, %167 : vector<8x64xf32>
    %169 = arith.mulf %160, %135 : vector<8x64xf32>
    %170 = arith.mulf %154, %162 : vector<8x64xf32>
    %171 = arith.addf %169, %170 : vector<8x64xf32>
    %172 = math.tanh %171 : vector<8x64xf32>
    %173 = arith.mulf %168, %172 : vector<8x64xf32>
    %c4_i32 = arith.constant 4 : i32
    %174 = arith.index_cast %c4_i32 : i32 to index
    %c0_55 = arith.constant 0 : index
    %c0_56 = arith.constant 0 : index
    %175 = vector.load %arg7[%174, %c0_55, %c0_56] : memref<15x8x256xf32, #tpu.memory_space<vmem>>, vector<1x8x256xf32>
    %176 = vector.shape_cast %175 : vector<1x8x256xf32> to vector<8x256xf32>
    %c7_i32_57 = arith.constant 7 : i32
    %177 = arith.subi %c7_i32_57, %c4_i32 : i32
    %178 = arith.index_cast %177 : i32 to index
    %c0_58 = arith.constant 0 : index
    %c0_59 = arith.constant 0 : index
    %179 = vector.load %arg7[%178, %c0_58, %c0_59] : memref<15x8x256xf32, #tpu.memory_space<vmem>>, vector<1x8x256xf32>
    %180 = vector.shape_cast %179 : vector<1x8x256xf32> to vector<8x256xf32>
    %181 = arith.select %28, %176, %180 : vector<8x256xi1>, vector<8x256xf32>
    %c0_60 = arith.constant 0 : index
    %c0_61 = arith.constant 0 : index
    %182 = vector.load %arg2[%c0_60, %c0_61] : memref<64x256xf32, #tpu.memory_space<vmem>>, vector<64x256xf32>
    %cst_62 = arith.constant dense<0.000000e+00> : vector<8x256xf32>
    %183 = tpu.matmul %173, %182, %cst_62 {dimension_numbers = #tpu.dot_dimension_numbers<[1], [0], [0], [1], [0, 0, 1, 1], [], []>} : vector<8x64xf32>, vector<64x256xf32>, vector<8x256xf32> -> vector<8x256xf32>
    %184 = arith.addf %181, %183 : vector<8x256xf32>
    %185 = vector.extract_strided_slice %184 {offsets = [0, 0], sizes = [8, 64], strides = [1, 1]} : vector<8x256xf32> to vector<8x64xf32>
    %186 = arith.negf %185 : vector<8x64xf32>
    %187 = math.exp %186 : vector<8x64xf32>
    %cst_63 = arith.constant 1.000000e+00 : f32
    %188 = vector.broadcast %cst_63 : f32 to vector<8x64xf32>
    %189 = arith.addf %188, %187 : vector<8x64xf32>
    %190 = arith.divf %188, %189 : vector<8x64xf32>
    %191 = vector.extract_strided_slice %184 {offsets = [0, 64], sizes = [8, 64], strides = [1, 1]} : vector<8x256xf32> to vector<8x64xf32>
    %192 = arith.negf %191 : vector<8x64xf32>
    %193 = math.exp %192 : vector<8x64xf32>
    %cst_64 = arith.constant 1.000000e+00 : f32
    %194 = vector.broadcast %cst_64 : f32 to vector<8x64xf32>
    %195 = arith.addf %194, %193 : vector<8x64xf32>
    %196 = arith.divf %194, %195 : vector<8x64xf32>
    %197 = vector.extract_strided_slice %184 {offsets = [0, 128], sizes = [8, 64], strides = [1, 1]} : vector<8x256xf32> to vector<8x64xf32>
    %198 = math.tanh %197 : vector<8x64xf32>
    %199 = vector.extract_strided_slice %184 {offsets = [0, 192], sizes = [8, 64], strides = [1, 1]} : vector<8x256xf32> to vector<8x64xf32>
    %200 = arith.negf %199 : vector<8x64xf32>
    %201 = math.exp %200 : vector<8x64xf32>
    %cst_65 = arith.constant 1.000000e+00 : f32
    %202 = vector.broadcast %cst_65 : f32 to vector<8x64xf32>
    %203 = arith.addf %202, %201 : vector<8x64xf32>
    %204 = arith.divf %202, %203 : vector<8x64xf32>
    %205 = arith.mulf %196, %171 : vector<8x64xf32>
    %206 = arith.mulf %190, %198 : vector<8x64xf32>
    %207 = arith.addf %205, %206 : vector<8x64xf32>
    %208 = math.tanh %207 : vector<8x64xf32>
    %209 = arith.mulf %204, %208 : vector<8x64xf32>
    %c5_i32 = arith.constant 5 : i32
    %210 = arith.index_cast %c5_i32 : i32 to index
    %c0_66 = arith.constant 0 : index
    %c0_67 = arith.constant 0 : index
    %211 = vector.load %arg7[%210, %c0_66, %c0_67] : memref<15x8x256xf32, #tpu.memory_space<vmem>>, vector<1x8x256xf32>
    %212 = vector.shape_cast %211 : vector<1x8x256xf32> to vector<8x256xf32>
    %c7_i32_68 = arith.constant 7 : i32
    %213 = arith.subi %c7_i32_68, %c5_i32 : i32
    %214 = arith.index_cast %213 : i32 to index
    %c0_69 = arith.constant 0 : index
    %c0_70 = arith.constant 0 : index
    %215 = vector.load %arg7[%214, %c0_69, %c0_70] : memref<15x8x256xf32, #tpu.memory_space<vmem>>, vector<1x8x256xf32>
    %216 = vector.shape_cast %215 : vector<1x8x256xf32> to vector<8x256xf32>
    %217 = arith.select %28, %212, %216 : vector<8x256xi1>, vector<8x256xf32>
    %c0_71 = arith.constant 0 : index
    %c0_72 = arith.constant 0 : index
    %218 = vector.load %arg2[%c0_71, %c0_72] : memref<64x256xf32, #tpu.memory_space<vmem>>, vector<64x256xf32>
    %cst_73 = arith.constant dense<0.000000e+00> : vector<8x256xf32>
    %219 = tpu.matmul %209, %218, %cst_73 {dimension_numbers = #tpu.dot_dimension_numbers<[1], [0], [0], [1], [0, 0, 1, 1], [], []>} : vector<8x64xf32>, vector<64x256xf32>, vector<8x256xf32> -> vector<8x256xf32>
    %220 = arith.addf %217, %219 : vector<8x256xf32>
    %221 = vector.extract_strided_slice %220 {offsets = [0, 0], sizes = [8, 64], strides = [1, 1]} : vector<8x256xf32> to vector<8x64xf32>
    %222 = arith.negf %221 : vector<8x64xf32>
    %223 = math.exp %222 : vector<8x64xf32>
    %cst_74 = arith.constant 1.000000e+00 : f32
    %224 = vector.broadcast %cst_74 : f32 to vector<8x64xf32>
    %225 = arith.addf %224, %223 : vector<8x64xf32>
    %226 = arith.divf %224, %225 : vector<8x64xf32>
    %227 = vector.extract_strided_slice %220 {offsets = [0, 64], sizes = [8, 64], strides = [1, 1]} : vector<8x256xf32> to vector<8x64xf32>
    %228 = arith.negf %227 : vector<8x64xf32>
    %229 = math.exp %228 : vector<8x64xf32>
    %cst_75 = arith.constant 1.000000e+00 : f32
    %230 = vector.broadcast %cst_75 : f32 to vector<8x64xf32>
    %231 = arith.addf %230, %229 : vector<8x64xf32>
    %232 = arith.divf %230, %231 : vector<8x64xf32>
    %233 = vector.extract_strided_slice %220 {offsets = [0, 128], sizes = [8, 64], strides = [1, 1]} : vector<8x256xf32> to vector<8x64xf32>
    %234 = math.tanh %233 : vector<8x64xf32>
    %235 = vector.extract_strided_slice %220 {offsets = [0, 192], sizes = [8, 64], strides = [1, 1]} : vector<8x256xf32> to vector<8x64xf32>
    %236 = arith.negf %235 : vector<8x64xf32>
    %237 = math.exp %236 : vector<8x64xf32>
    %cst_76 = arith.constant 1.000000e+00 : f32
    %238 = vector.broadcast %cst_76 : f32 to vector<8x64xf32>
    %239 = arith.addf %238, %237 : vector<8x64xf32>
    %240 = arith.divf %238, %239 : vector<8x64xf32>
    %241 = arith.mulf %232, %207 : vector<8x64xf32>
    %242 = arith.mulf %226, %234 : vector<8x64xf32>
    %243 = arith.addf %241, %242 : vector<8x64xf32>
    %244 = math.tanh %243 : vector<8x64xf32>
    %245 = arith.mulf %240, %244 : vector<8x64xf32>
    %c6_i32 = arith.constant 6 : i32
    %246 = arith.index_cast %c6_i32 : i32 to index
    %c0_77 = arith.constant 0 : index
    %c0_78 = arith.constant 0 : index
    %247 = vector.load %arg7[%246, %c0_77, %c0_78] : memref<15x8x256xf32, #tpu.memory_space<vmem>>, vector<1x8x256xf32>
    %248 = vector.shape_cast %247 : vector<1x8x256xf32> to vector<8x256xf32>
    %c7_i32_79 = arith.constant 7 : i32
    %249 = arith.subi %c7_i32_79, %c6_i32 : i32
    %250 = arith.index_cast %249 : i32 to index
    %c0_80 = arith.constant 0 : index
    %c0_81 = arith.constant 0 : index
    %251 = vector.load %arg7[%250, %c0_80, %c0_81] : memref<15x8x256xf32, #tpu.memory_space<vmem>>, vector<1x8x256xf32>
    %252 = vector.shape_cast %251 : vector<1x8x256xf32> to vector<8x256xf32>
    %253 = arith.select %28, %248, %252 : vector<8x256xi1>, vector<8x256xf32>
    %c0_82 = arith.constant 0 : index
    %c0_83 = arith.constant 0 : index
    %254 = vector.load %arg2[%c0_82, %c0_83] : memref<64x256xf32, #tpu.memory_space<vmem>>, vector<64x256xf32>
    %cst_84 = arith.constant dense<0.000000e+00> : vector<8x256xf32>
    %255 = tpu.matmul %245, %254, %cst_84 {dimension_numbers = #tpu.dot_dimension_numbers<[1], [0], [0], [1], [0, 0, 1, 1], [], []>} : vector<8x64xf32>, vector<64x256xf32>, vector<8x256xf32> -> vector<8x256xf32>
    %256 = arith.addf %253, %255 : vector<8x256xf32>
    %257 = vector.extract_strided_slice %256 {offsets = [0, 0], sizes = [8, 64], strides = [1, 1]} : vector<8x256xf32> to vector<8x64xf32>
    %258 = arith.negf %257 : vector<8x64xf32>
    %259 = math.exp %258 : vector<8x64xf32>
    %cst_85 = arith.constant 1.000000e+00 : f32
    %260 = vector.broadcast %cst_85 : f32 to vector<8x64xf32>
    %261 = arith.addf %260, %259 : vector<8x64xf32>
    %262 = arith.divf %260, %261 : vector<8x64xf32>
    %263 = vector.extract_strided_slice %256 {offsets = [0, 64], sizes = [8, 64], strides = [1, 1]} : vector<8x256xf32> to vector<8x64xf32>
    %264 = arith.negf %263 : vector<8x64xf32>
    %265 = math.exp %264 : vector<8x64xf32>
    %cst_86 = arith.constant 1.000000e+00 : f32
    %266 = vector.broadcast %cst_86 : f32 to vector<8x64xf32>
    %267 = arith.addf %266, %265 : vector<8x64xf32>
    %268 = arith.divf %266, %267 : vector<8x64xf32>
    %269 = vector.extract_strided_slice %256 {offsets = [0, 128], sizes = [8, 64], strides = [1, 1]} : vector<8x256xf32> to vector<8x64xf32>
    %270 = math.tanh %269 : vector<8x64xf32>
    %271 = vector.extract_strided_slice %256 {offsets = [0, 192], sizes = [8, 64], strides = [1, 1]} : vector<8x256xf32> to vector<8x64xf32>
    %272 = arith.negf %271 : vector<8x64xf32>
    %273 = math.exp %272 : vector<8x64xf32>
    %cst_87 = arith.constant 1.000000e+00 : f32
    %274 = vector.broadcast %cst_87 : f32 to vector<8x64xf32>
    %275 = arith.addf %274, %273 : vector<8x64xf32>
    %276 = arith.divf %274, %275 : vector<8x64xf32>
    %277 = arith.mulf %268, %243 : vector<8x64xf32>
    %278 = arith.mulf %262, %270 : vector<8x64xf32>
    %279 = arith.addf %277, %278 : vector<8x64xf32>
    %280 = math.tanh %279 : vector<8x64xf32>
    %281 = arith.mulf %276, %280 : vector<8x64xf32>
    %c7_i32_88 = arith.constant 7 : i32
    %282 = arith.index_cast %c7_i32_88 : i32 to index
    %c0_89 = arith.constant 0 : index
    %c0_90 = arith.constant 0 : index
    %283 = vector.load %arg7[%282, %c0_89, %c0_90] : memref<15x8x256xf32, #tpu.memory_space<vmem>>, vector<1x8x256xf32>
    %284 = vector.shape_cast %283 : vector<1x8x256xf32> to vector<8x256xf32>
    %c7_i32_91 = arith.constant 7 : i32
    %285 = arith.subi %c7_i32_91, %c7_i32_88 : i32
    %286 = arith.index_cast %285 : i32 to index
    %c0_92 = arith.constant 0 : index
    %c0_93 = arith.constant 0 : index
    %287 = vector.load %arg7[%286, %c0_92, %c0_93] : memref<15x8x256xf32, #tpu.memory_space<vmem>>, vector<1x8x256xf32>
    %288 = vector.shape_cast %287 : vector<1x8x256xf32> to vector<8x256xf32>
    %289 = arith.select %28, %284, %288 : vector<8x256xi1>, vector<8x256xf32>
    %c0_94 = arith.constant 0 : index
    %c0_95 = arith.constant 0 : index
    %290 = vector.load %arg2[%c0_94, %c0_95] : memref<64x256xf32, #tpu.memory_space<vmem>>, vector<64x256xf32>
    %cst_96 = arith.constant dense<0.000000e+00> : vector<8x256xf32>
    %291 = tpu.matmul %281, %290, %cst_96 {dimension_numbers = #tpu.dot_dimension_numbers<[1], [0], [0], [1], [0, 0, 1, 1], [], []>} : vector<8x64xf32>, vector<64x256xf32>, vector<8x256xf32> -> vector<8x256xf32>
    %292 = arith.addf %289, %291 : vector<8x256xf32>
    %293 = vector.extract_strided_slice %292 {offsets = [0, 0], sizes = [8, 64], strides = [1, 1]} : vector<8x256xf32> to vector<8x64xf32>
    %294 = arith.negf %293 : vector<8x64xf32>
    %295 = math.exp %294 : vector<8x64xf32>
    %cst_97 = arith.constant 1.000000e+00 : f32
    %296 = vector.broadcast %cst_97 : f32 to vector<8x64xf32>
    %297 = arith.addf %296, %295 : vector<8x64xf32>
    %298 = arith.divf %296, %297 : vector<8x64xf32>
    %299 = vector.extract_strided_slice %292 {offsets = [0, 64], sizes = [8, 64], strides = [1, 1]} : vector<8x256xf32> to vector<8x64xf32>
    %300 = arith.negf %299 : vector<8x64xf32>
    %301 = math.exp %300 : vector<8x64xf32>
    %cst_98 = arith.constant 1.000000e+00 : f32
    %302 = vector.broadcast %cst_98 : f32 to vector<8x64xf32>
    %303 = arith.addf %302, %301 : vector<8x64xf32>
    %304 = arith.divf %302, %303 : vector<8x64xf32>
    %305 = vector.extract_strided_slice %292 {offsets = [0, 128], sizes = [8, 64], strides = [1, 1]} : vector<8x256xf32> to vector<8x64xf32>
    %306 = math.tanh %305 : vector<8x64xf32>
    %307 = vector.extract_strided_slice %292 {offsets = [0, 192], sizes = [8, 64], strides = [1, 1]} : vector<8x256xf32> to vector<8x64xf32>
    %308 = arith.negf %307 : vector<8x64xf32>
    %309 = math.exp %308 : vector<8x64xf32>
    %cst_99 = arith.constant 1.000000e+00 : f32
    %310 = vector.broadcast %cst_99 : f32 to vector<8x64xf32>
    %311 = arith.addf %310, %309 : vector<8x64xf32>
    %312 = arith.divf %310, %311 : vector<8x64xf32>
    %313 = arith.mulf %304, %279 : vector<8x64xf32>
    %314 = arith.mulf %298, %306 : vector<8x64xf32>
    %315 = arith.addf %313, %314 : vector<8x64xf32>
    %316 = math.tanh %315 : vector<8x64xf32>
    %317 = arith.mulf %312, %316 : vector<8x64xf32>
    %c8_i32 = arith.constant 8 : i32
    %c0_i32_100 = arith.constant 0 : i32
    %c8_i32_101 = arith.constant 8 : i32
    %318 = arith.addi %c8_i32_101, %c0_i32_100 : i32
    %319 = arith.index_cast %318 : i32 to index
    %c0_102 = arith.constant 0 : index
    %c0_103 = arith.constant 0 : index
    %320 = vector.load %arg7[%319, %c0_102, %c0_103] : memref<15x8x256xf32, #tpu.memory_space<vmem>>, vector<1x8x256xf32>
    %321 = vector.shape_cast %320 : vector<1x8x256xf32> to vector<8x256xf32>
    %c0_104 = arith.constant 0 : index
    %c0_105 = arith.constant 0 : index
    %322 = vector.load %arg3[%c0_104, %c0_105] : memref<64x256xf32, #tpu.memory_space<vmem>>, vector<64x256xf32>
    %cst_106 = arith.constant dense<0.000000e+00> : vector<8x256xf32>
    %323 = tpu.matmul %317, %322, %cst_106 {dimension_numbers = #tpu.dot_dimension_numbers<[1], [0], [0], [1], [0, 0, 1, 1], [], []>} : vector<8x64xf32>, vector<64x256xf32>, vector<8x256xf32> -> vector<8x256xf32>
    %324 = arith.addf %321, %323 : vector<8x256xf32>
    %325 = vector.extract_strided_slice %324 {offsets = [0, 0], sizes = [8, 64], strides = [1, 1]} : vector<8x256xf32> to vector<8x64xf32>
    %326 = arith.negf %325 : vector<8x64xf32>
    %327 = math.exp %326 : vector<8x64xf32>
    %cst_107 = arith.constant 1.000000e+00 : f32
    %328 = vector.broadcast %cst_107 : f32 to vector<8x64xf32>
    %329 = arith.addf %328, %327 : vector<8x64xf32>
    %330 = arith.divf %328, %329 : vector<8x64xf32>
    %331 = vector.extract_strided_slice %324 {offsets = [0, 64], sizes = [8, 64], strides = [1, 1]} : vector<8x256xf32> to vector<8x64xf32>
    %332 = arith.negf %331 : vector<8x64xf32>
    %333 = math.exp %332 : vector<8x64xf32>
    %cst_108 = arith.constant 1.000000e+00 : f32
    %334 = vector.broadcast %cst_108 : f32 to vector<8x64xf32>
    %335 = arith.addf %334, %333 : vector<8x64xf32>
    %336 = arith.divf %334, %335 : vector<8x64xf32>
    %337 = vector.extract_strided_slice %324 {offsets = [0, 128], sizes = [8, 64], strides = [1, 1]} : vector<8x256xf32> to vector<8x64xf32>
    %338 = math.tanh %337 : vector<8x64xf32>
    %339 = vector.extract_strided_slice %324 {offsets = [0, 192], sizes = [8, 64], strides = [1, 1]} : vector<8x256xf32> to vector<8x64xf32>
    %340 = arith.negf %339 : vector<8x64xf32>
    %341 = math.exp %340 : vector<8x64xf32>
    %cst_109 = arith.constant 1.000000e+00 : f32
    %342 = vector.broadcast %cst_109 : f32 to vector<8x64xf32>
    %343 = arith.addf %342, %341 : vector<8x64xf32>
    %344 = arith.divf %342, %343 : vector<8x64xf32>
    %345 = arith.mulf %336, %315 : vector<8x64xf32>
    %346 = arith.mulf %330, %338 : vector<8x64xf32>
    %347 = arith.addf %345, %346 : vector<8x64xf32>
    %348 = math.tanh %347 : vector<8x64xf32>
    %349 = arith.mulf %344, %348 : vector<8x64xf32>
    %c0_110 = arith.constant 0 : index
    %c0_111 = arith.constant 0 : index
    %350 = vector.load %arg4[%c0_110, %c0_111] : memref<64x128xf32, #tpu.memory_space<vmem>>, vector<64x128xf32>
    %cst_112 = arith.constant dense<0.000000e+00> : vector<8x128xf32>
    %351 = tpu.matmul %349, %350, %cst_112 {dimension_numbers = #tpu.dot_dimension_numbers<[1], [0], [0], [1], [0, 0, 1, 1], [], []>} : vector<8x64xf32>, vector<64x128xf32>, vector<8x128xf32> -> vector<8x128xf32>
    %c0_113 = arith.constant 0 : index
    %c0_114 = arith.constant 0 : index
    %352 = vector.load %arg5[%c0_113, %c0_114] : memref<1x128xf32, #tpu.memory_space<vmem>>, vector<1x128xf32>
    %353 = vector.broadcast %352 : vector<1x128xf32> to vector<8x128xf32>
    %354 = arith.addf %351, %353 : vector<8x128xf32>
    %355 = arith.index_cast %c0_i32_100 : i32 to index
    %c0_115 = arith.constant 0 : index
    %c0_116 = arith.constant 0 : index
    %356 = vector.load %arg6[%355, %c0_115, %c0_116] : memref<7x8x128xf32, #tpu.memory_space<vmem>>, vector<1x8x128xf32>
    %357 = vector.shape_cast %356 : vector<1x8x128xf32> to vector<8x128xf32>
    %358 = vector.shape_cast %354 : vector<8x128xf32> to vector<1x8x128xf32>
    tpu.vector_store %arg6[%355, %c0_115, %c0_116], %358 {strides = array<i32>} : memref<7x8x128xf32, #tpu.memory_space<vmem>>, vector<1x8x128xf32>,
    %c1_i32_117 = arith.constant 1 : i32
    %c8_i32_118 = arith.constant 8 : i32
    %359 = arith.addi %c8_i32_118, %c1_i32_117 : i32
    %360 = arith.index_cast %359 : i32 to index
    %c0_119 = arith.constant 0 : index
    %c0_120 = arith.constant 0 : index
    %361 = vector.load %arg7[%360, %c0_119, %c0_120] : memref<15x8x256xf32, #tpu.memory_space<vmem>>, vector<1x8x256xf32>
    %362 = vector.shape_cast %361 : vector<1x8x256xf32> to vector<8x256xf32>
    %c0_121 = arith.constant 0 : index
    %c0_122 = arith.constant 0 : index
    %363 = vector.load %arg3[%c0_121, %c0_122] : memref<64x256xf32, #tpu.memory_space<vmem>>, vector<64x256xf32>
    %cst_123 = arith.constant dense<0.000000e+00> : vector<8x256xf32>
    %364 = tpu.matmul %349, %363, %cst_123 {dimension_numbers = #tpu.dot_dimension_numbers<[1], [0], [0], [1], [0, 0, 1, 1], [], []>} : vector<8x64xf32>, vector<64x256xf32>, vector<8x256xf32> -> vector<8x256xf32>
    %365 = arith.addf %362, %364 : vector<8x256xf32>
    %366 = vector.extract_strided_slice %365 {offsets = [0, 0], sizes = [8, 64], strides = [1, 1]} : vector<8x256xf32> to vector<8x64xf32>
    %367 = arith.negf %366 : vector<8x64xf32>
    %368 = math.exp %367 : vector<8x64xf32>
    %cst_124 = arith.constant 1.000000e+00 : f32
    %369 = vector.broadcast %cst_124 : f32 to vector<8x64xf32>
    %370 = arith.addf %369, %368 : vector<8x64xf32>
    %371 = arith.divf %369, %370 : vector<8x64xf32>
    %372 = vector.extract_strided_slice %365 {offsets = [0, 64], sizes = [8, 64], strides = [1, 1]} : vector<8x256xf32> to vector<8x64xf32>
    %373 = arith.negf %372 : vector<8x64xf32>
    %374 = math.exp %373 : vector<8x64xf32>
    %cst_125 = arith.constant 1.000000e+00 : f32
    %375 = vector.broadcast %cst_125 : f32 to vector<8x64xf32>
    %376 = arith.addf %375, %374 : vector<8x64xf32>
    %377 = arith.divf %375, %376 : vector<8x64xf32>
    %378 = vector.extract_strided_slice %365 {offsets = [0, 128], sizes = [8, 64], strides = [1, 1]} : vector<8x256xf32> to vector<8x64xf32>
    %379 = math.tanh %378 : vector<8x64xf32>
    %380 = vector.extract_strided_slice %365 {offsets = [0, 192], sizes = [8, 64], strides = [1, 1]} : vector<8x256xf32> to vector<8x64xf32>
    %381 = arith.negf %380 : vector<8x64xf32>
    %382 = math.exp %381 : vector<8x64xf32>
    %cst_126 = arith.constant 1.000000e+00 : f32
    %383 = vector.broadcast %cst_126 : f32 to vector<8x64xf32>
    %384 = arith.addf %383, %382 : vector<8x64xf32>
    %385 = arith.divf %383, %384 : vector<8x64xf32>
    %386 = arith.mulf %377, %347 : vector<8x64xf32>
    %387 = arith.mulf %371, %379 : vector<8x64xf32>
    %388 = arith.addf %386, %387 : vector<8x64xf32>
    %389 = math.tanh %388 : vector<8x64xf32>
    %390 = arith.mulf %385, %389 : vector<8x64xf32>
    %c0_127 = arith.constant 0 : index
    %c0_128 = arith.constant 0 : index
    %391 = vector.load %arg4[%c0_127, %c0_128] : memref<64x128xf32, #tpu.memory_space<vmem>>, vector<64x128xf32>
    %cst_129 = arith.constant dense<0.000000e+00> : vector<8x128xf32>
    %392 = tpu.matmul %390, %391, %cst_129 {dimension_numbers = #tpu.dot_dimension_numbers<[1], [0], [0], [1], [0, 0, 1, 1], [], []>} : vector<8x64xf32>, vector<64x128xf32>, vector<8x128xf32> -> vector<8x128xf32>
    %c0_130 = arith.constant 0 : index
    %c0_131 = arith.constant 0 : index
    %393 = vector.load %arg5[%c0_130, %c0_131] : memref<1x128xf32, #tpu.memory_space<vmem>>, vector<1x128xf32>
    %394 = vector.broadcast %393 : vector<1x128xf32> to vector<8x128xf32>
    %395 = arith.addf %392, %394 : vector<8x128xf32>
    %396 = arith.index_cast %c1_i32_117 : i32 to index
    %c0_132 = arith.constant 0 : index
    %c0_133 = arith.constant 0 : index
    %397 = vector.load %arg6[%396, %c0_132, %c0_133] : memref<7x8x128xf32, #tpu.memory_space<vmem>>, vector<1x8x128xf32>
    %398 = vector.shape_cast %397 : vector<1x8x128xf32> to vector<8x128xf32>
    %399 = vector.shape_cast %395 : vector<8x128xf32> to vector<1x8x128xf32>
    tpu.vector_store %arg6[%396, %c0_132, %c0_133], %399 {strides = array<i32>} : memref<7x8x128xf32, #tpu.memory_space<vmem>>, vector<1x8x128xf32>,
    %c2_i32_134 = arith.constant 2 : i32
    %c8_i32_135 = arith.constant 8 : i32
    %400 = arith.addi %c8_i32_135, %c2_i32_134 : i32
    %401 = arith.index_cast %400 : i32 to index
    %c0_136 = arith.constant 0 : index
    %c0_137 = arith.constant 0 : index
    %402 = vector.load %arg7[%401, %c0_136, %c0_137] : memref<15x8x256xf32, #tpu.memory_space<vmem>>, vector<1x8x256xf32>
    %403 = vector.shape_cast %402 : vector<1x8x256xf32> to vector<8x256xf32>
    %c0_138 = arith.constant 0 : index
    %c0_139 = arith.constant 0 : index
    %404 = vector.load %arg3[%c0_138, %c0_139] : memref<64x256xf32, #tpu.memory_space<vmem>>, vector<64x256xf32>
    %cst_140 = arith.constant dense<0.000000e+00> : vector<8x256xf32>
    %405 = tpu.matmul %390, %404, %cst_140 {dimension_numbers = #tpu.dot_dimension_numbers<[1], [0], [0], [1], [0, 0, 1, 1], [], []>} : vector<8x64xf32>, vector<64x256xf32>, vector<8x256xf32> -> vector<8x256xf32>
    %406 = arith.addf %403, %405 : vector<8x256xf32>
    %407 = vector.extract_strided_slice %406 {offsets = [0, 0], sizes = [8, 64], strides = [1, 1]} : vector<8x256xf32> to vector<8x64xf32>
    %408 = arith.negf %407 : vector<8x64xf32>
    %409 = math.exp %408 : vector<8x64xf32>
    %cst_141 = arith.constant 1.000000e+00 : f32
    %410 = vector.broadcast %cst_141 : f32 to vector<8x64xf32>
    %411 = arith.addf %410, %409 : vector<8x64xf32>
    %412 = arith.divf %410, %411 : vector<8x64xf32>
    %413 = vector.extract_strided_slice %406 {offsets = [0, 64], sizes = [8, 64], strides = [1, 1]} : vector<8x256xf32> to vector<8x64xf32>
    %414 = arith.negf %413 : vector<8x64xf32>
    %415 = math.exp %414 : vector<8x64xf32>
    %cst_142 = arith.constant 1.000000e+00 : f32
    %416 = vector.broadcast %cst_142 : f32 to vector<8x64xf32>
    %417 = arith.addf %416, %415 : vector<8x64xf32>
    %418 = arith.divf %416, %417 : vector<8x64xf32>
    %419 = vector.extract_strided_slice %406 {offsets = [0, 128], sizes = [8, 64], strides = [1, 1]} : vector<8x256xf32> to vector<8x64xf32>
    %420 = math.tanh %419 : vector<8x64xf32>
    %421 = vector.extract_strided_slice %406 {offsets = [0, 192], sizes = [8, 64], strides = [1, 1]} : vector<8x256xf32> to vector<8x64xf32>
    %422 = arith.negf %421 : vector<8x64xf32>
    %423 = math.exp %422 : vector<8x64xf32>
    %cst_143 = arith.constant 1.000000e+00 : f32
    %424 = vector.broadcast %cst_143 : f32 to vector<8x64xf32>
    %425 = arith.addf %424, %423 : vector<8x64xf32>
    %426 = arith.divf %424, %425 : vector<8x64xf32>
    %427 = arith.mulf %418, %388 : vector<8x64xf32>
    %428 = arith.mulf %412, %420 : vector<8x64xf32>
    %429 = arith.addf %427, %428 : vector<8x64xf32>
    %430 = math.tanh %429 : vector<8x64xf32>
    %431 = arith.mulf %426, %430 : vector<8x64xf32>
    %c0_144 = arith.constant 0 : index
    %c0_145 = arith.constant 0 : index
    %432 = vector.load %arg4[%c0_144, %c0_145] : memref<64x128xf32, #tpu.memory_space<vmem>>, vector<64x128xf32>
    %cst_146 = arith.constant dense<0.000000e+00> : vector<8x128xf32>
    %433 = tpu.matmul %431, %432, %cst_146 {dimension_numbers = #tpu.dot_dimension_numbers<[1], [0], [0], [1], [0, 0, 1, 1], [], []>} : vector<8x64xf32>, vector<64x128xf32>, vector<8x128xf32> -> vector<8x128xf32>
    %c0_147 = arith.constant 0 : index
    %c0_148 = arith.constant 0 : index
    %434 = vector.load %arg5[%c0_147, %c0_148] : memref<1x128xf32, #tpu.memory_space<vmem>>, vector<1x128xf32>
    %435 = vector.broadcast %434 : vector<1x128xf32> to vector<8x128xf32>
    %436 = arith.addf %433, %435 : vector<8x128xf32>
    %437 = arith.index_cast %c2_i32_134 : i32 to index
    %c0_149 = arith.constant 0 : index
    %c0_150 = arith.constant 0 : index
    %438 = vector.load %arg6[%437, %c0_149, %c0_150] : memref<7x8x128xf32, #tpu.memory_space<vmem>>, vector<1x8x128xf32>
    %439 = vector.shape_cast %438 : vector<1x8x128xf32> to vector<8x128xf32>
    %440 = vector.shape_cast %436 : vector<8x128xf32> to vector<1x8x128xf32>
    tpu.vector_store %arg6[%437, %c0_149, %c0_150], %440 {strides = array<i32>} : memref<7x8x128xf32, #tpu.memory_space<vmem>>, vector<1x8x128xf32>,
    %c3_i32_151 = arith.constant 3 : i32
    %c8_i32_152 = arith.constant 8 : i32
    %441 = arith.addi %c8_i32_152, %c3_i32_151 : i32
    %442 = arith.index_cast %441 : i32 to index
    %c0_153 = arith.constant 0 : index
    %c0_154 = arith.constant 0 : index
    %443 = vector.load %arg7[%442, %c0_153, %c0_154] : memref<15x8x256xf32, #tpu.memory_space<vmem>>, vector<1x8x256xf32>
    %444 = vector.shape_cast %443 : vector<1x8x256xf32> to vector<8x256xf32>
    %c0_155 = arith.constant 0 : index
    %c0_156 = arith.constant 0 : index
    %445 = vector.load %arg3[%c0_155, %c0_156] : memref<64x256xf32, #tpu.memory_space<vmem>>, vector<64x256xf32>
    %cst_157 = arith.constant dense<0.000000e+00> : vector<8x256xf32>
    %446 = tpu.matmul %431, %445, %cst_157 {dimension_numbers = #tpu.dot_dimension_numbers<[1], [0], [0], [1], [0, 0, 1, 1], [], []>} : vector<8x64xf32>, vector<64x256xf32>, vector<8x256xf32> -> vector<8x256xf32>
    %447 = arith.addf %444, %446 : vector<8x256xf32>
    %448 = vector.extract_strided_slice %447 {offsets = [0, 0], sizes = [8, 64], strides = [1, 1]} : vector<8x256xf32> to vector<8x64xf32>
    %449 = arith.negf %448 : vector<8x64xf32>
    %450 = math.exp %449 : vector<8x64xf32>
    %cst_158 = arith.constant 1.000000e+00 : f32
    %451 = vector.broadcast %cst_158 : f32 to vector<8x64xf32>
    %452 = arith.addf %451, %450 : vector<8x64xf32>
    %453 = arith.divf %451, %452 : vector<8x64xf32>
    %454 = vector.extract_strided_slice %447 {offsets = [0, 64], sizes = [8, 64], strides = [1, 1]} : vector<8x256xf32> to vector<8x64xf32>
    %455 = arith.negf %454 : vector<8x64xf32>
    %456 = math.exp %455 : vector<8x64xf32>
    %cst_159 = arith.constant 1.000000e+00 : f32
    %457 = vector.broadcast %cst_159 : f32 to vector<8x64xf32>
    %458 = arith.addf %457, %456 : vector<8x64xf32>
    %459 = arith.divf %457, %458 : vector<8x64xf32>
    %460 = vector.extract_strided_slice %447 {offsets = [0, 128], sizes = [8, 64], strides = [1, 1]} : vector<8x256xf32> to vector<8x64xf32>
    %461 = math.tanh %460 : vector<8x64xf32>
    %462 = vector.extract_strided_slice %447 {offsets = [0, 192], sizes = [8, 64], strides = [1, 1]} : vector<8x256xf32> to vector<8x64xf32>
    %463 = arith.negf %462 : vector<8x64xf32>
    %464 = math.exp %463 : vector<8x64xf32>
    %cst_160 = arith.constant 1.000000e+00 : f32
    %465 = vector.broadcast %cst_160 : f32 to vector<8x64xf32>
    %466 = arith.addf %465, %464 : vector<8x64xf32>
    %467 = arith.divf %465, %466 : vector<8x64xf32>
    %468 = arith.mulf %459, %429 : vector<8x64xf32>
    %469 = arith.mulf %453, %461 : vector<8x64xf32>
    %470 = arith.addf %468, %469 : vector<8x64xf32>
    %471 = math.tanh %470 : vector<8x64xf32>
    %472 = arith.mulf %467, %471 : vector<8x64xf32>
    %c0_161 = arith.constant 0 : index
    %c0_162 = arith.constant 0 : index
    %473 = vector.load %arg4[%c0_161, %c0_162] : memref<64x128xf32, #tpu.memory_space<vmem>>, vector<64x128xf32>
    %cst_163 = arith.constant dense<0.000000e+00> : vector<8x128xf32>
    %474 = tpu.matmul %472, %473, %cst_163 {dimension_numbers = #tpu.dot_dimension_numbers<[1], [0], [0], [1], [0, 0, 1, 1], [], []>} : vector<8x64xf32>, vector<64x128xf32>, vector<8x128xf32> -> vector<8x128xf32>
    %c0_164 = arith.constant 0 : index
    %c0_165 = arith.constant 0 : index
    %475 = vector.load %arg5[%c0_164, %c0_165] : memref<1x128xf32, #tpu.memory_space<vmem>>, vector<1x128xf32>
    %476 = vector.broadcast %475 : vector<1x128xf32> to vector<8x128xf32>
    %477 = arith.addf %474, %476 : vector<8x128xf32>
    %478 = arith.index_cast %c3_i32_151 : i32 to index
    %c0_166 = arith.constant 0 : index
    %c0_167 = arith.constant 0 : index
    %479 = vector.load %arg6[%478, %c0_166, %c0_167] : memref<7x8x128xf32, #tpu.memory_space<vmem>>, vector<1x8x128xf32>
    %480 = vector.shape_cast %479 : vector<1x8x128xf32> to vector<8x128xf32>
    %481 = vector.shape_cast %477 : vector<8x128xf32> to vector<1x8x128xf32>
    tpu.vector_store %arg6[%478, %c0_166, %c0_167], %481 {strides = array<i32>} : memref<7x8x128xf32, #tpu.memory_space<vmem>>, vector<1x8x128xf32>,
    %c4_i32_168 = arith.constant 4 : i32
    %c8_i32_169 = arith.constant 8 : i32
    %482 = arith.addi %c8_i32_169, %c4_i32_168 : i32
    %483 = arith.index_cast %482 : i32 to index
    %c0_170 = arith.constant 0 : index
    %c0_171 = arith.constant 0 : index
    %484 = vector.load %arg7[%483, %c0_170, %c0_171] : memref<15x8x256xf32, #tpu.memory_space<vmem>>, vector<1x8x256xf32>
    %485 = vector.shape_cast %484 : vector<1x8x256xf32> to vector<8x256xf32>
    %c0_172 = arith.constant 0 : index
    %c0_173 = arith.constant 0 : index
    %486 = vector.load %arg3[%c0_172, %c0_173] : memref<64x256xf32, #tpu.memory_space<vmem>>, vector<64x256xf32>
    %cst_174 = arith.constant dense<0.000000e+00> : vector<8x256xf32>
    %487 = tpu.matmul %472, %486, %cst_174 {dimension_numbers = #tpu.dot_dimension_numbers<[1], [0], [0], [1], [0, 0, 1, 1], [], []>} : vector<8x64xf32>, vector<64x256xf32>, vector<8x256xf32> -> vector<8x256xf32>
    %488 = arith.addf %485, %487 : vector<8x256xf32>
    %489 = vector.extract_strided_slice %488 {offsets = [0, 0], sizes = [8, 64], strides = [1, 1]} : vector<8x256xf32> to vector<8x64xf32>
    %490 = arith.negf %489 : vector<8x64xf32>
    %491 = math.exp %490 : vector<8x64xf32>
    %cst_175 = arith.constant 1.000000e+00 : f32
    %492 = vector.broadcast %cst_175 : f32 to vector<8x64xf32>
    %493 = arith.addf %492, %491 : vector<8x64xf32>
    %494 = arith.divf %492, %493 : vector<8x64xf32>
    %495 = vector.extract_strided_slice %488 {offsets = [0, 64], sizes = [8, 64], strides = [1, 1]} : vector<8x256xf32> to vector<8x64xf32>
    %496 = arith.negf %495 : vector<8x64xf32>
    %497 = math.exp %496 : vector<8x64xf32>
    %cst_176 = arith.constant 1.000000e+00 : f32
    %498 = vector.broadcast %cst_176 : f32 to vector<8x64xf32>
    %499 = arith.addf %498, %497 : vector<8x64xf32>
    %500 = arith.divf %498, %499 : vector<8x64xf32>
    %501 = vector.extract_strided_slice %488 {offsets = [0, 128], sizes = [8, 64], strides = [1, 1]} : vector<8x256xf32> to vector<8x64xf32>
    %502 = math.tanh %501 : vector<8x64xf32>
    %503 = vector.extract_strided_slice %488 {offsets = [0, 192], sizes = [8, 64], strides = [1, 1]} : vector<8x256xf32> to vector<8x64xf32>
    %504 = arith.negf %503 : vector<8x64xf32>
    %505 = math.exp %504 : vector<8x64xf32>
    %cst_177 = arith.constant 1.000000e+00 : f32
    %506 = vector.broadcast %cst_177 : f32 to vector<8x64xf32>
    %507 = arith.addf %506, %505 : vector<8x64xf32>
    %508 = arith.divf %506, %507 : vector<8x64xf32>
    %509 = arith.mulf %500, %470 : vector<8x64xf32>
    %510 = arith.mulf %494, %502 : vector<8x64xf32>
    %511 = arith.addf %509, %510 : vector<8x64xf32>
    %512 = math.tanh %511 : vector<8x64xf32>
    %513 = arith.mulf %508, %512 : vector<8x64xf32>
    %c0_178 = arith.constant 0 : index
    %c0_179 = arith.constant 0 : index
    %514 = vector.load %arg4[%c0_178, %c0_179] : memref<64x128xf32, #tpu.memory_space<vmem>>, vector<64x128xf32>
    %cst_180 = arith.constant dense<0.000000e+00> : vector<8x128xf32>
    %515 = tpu.matmul %513, %514, %cst_180 {dimension_numbers = #tpu.dot_dimension_numbers<[1], [0], [0], [1], [0, 0, 1, 1], [], []>} : vector<8x64xf32>, vector<64x128xf32>, vector<8x128xf32> -> vector<8x128xf32>
    %c0_181 = arith.constant 0 : index
    %c0_182 = arith.constant 0 : index
    %516 = vector.load %arg5[%c0_181, %c0_182] : memref<1x128xf32, #tpu.memory_space<vmem>>, vector<1x128xf32>
    %517 = vector.broadcast %516 : vector<1x128xf32> to vector<8x128xf32>
    %518 = arith.addf %515, %517 : vector<8x128xf32>
    %519 = arith.index_cast %c4_i32_168 : i32 to index
    %c0_183 = arith.constant 0 : index
    %c0_184 = arith.constant 0 : index
    %520 = vector.load %arg6[%519, %c0_183, %c0_184] : memref<7x8x128xf32, #tpu.memory_space<vmem>>, vector<1x8x128xf32>
    %521 = vector.shape_cast %520 : vector<1x8x128xf32> to vector<8x128xf32>
    %522 = vector.shape_cast %518 : vector<8x128xf32> to vector<1x8x128xf32>
    tpu.vector_store %arg6[%519, %c0_183, %c0_184], %522 {strides = array<i32>} : memref<7x8x128xf32, #tpu.memory_space<vmem>>, vector<1x8x128xf32>,
    %c5_i32_185 = arith.constant 5 : i32
    %c8_i32_186 = arith.constant 8 : i32
    %523 = arith.addi %c8_i32_186, %c5_i32_185 : i32
    %524 = arith.index_cast %523 : i32 to index
    %c0_187 = arith.constant 0 : index
    %c0_188 = arith.constant 0 : index
    %525 = vector.load %arg7[%524, %c0_187, %c0_188] : memref<15x8x256xf32, #tpu.memory_space<vmem>>, vector<1x8x256xf32>
    %526 = vector.shape_cast %525 : vector<1x8x256xf32> to vector<8x256xf32>
    %c0_189 = arith.constant 0 : index
    %c0_190 = arith.constant 0 : index
    %527 = vector.load %arg3[%c0_189, %c0_190] : memref<64x256xf32, #tpu.memory_space<vmem>>, vector<64x256xf32>
    %cst_191 = arith.constant dense<0.000000e+00> : vector<8x256xf32>
    %528 = tpu.matmul %513, %527, %cst_191 {dimension_numbers = #tpu.dot_dimension_numbers<[1], [0], [0], [1], [0, 0, 1, 1], [], []>} : vector<8x64xf32>, vector<64x256xf32>, vector<8x256xf32> -> vector<8x256xf32>
    %529 = arith.addf %526, %528 : vector<8x256xf32>
    %530 = vector.extract_strided_slice %529 {offsets = [0, 0], sizes = [8, 64], strides = [1, 1]} : vector<8x256xf32> to vector<8x64xf32>
    %531 = arith.negf %530 : vector<8x64xf32>
    %532 = math.exp %531 : vector<8x64xf32>
    %cst_192 = arith.constant 1.000000e+00 : f32
    %533 = vector.broadcast %cst_192 : f32 to vector<8x64xf32>
    %534 = arith.addf %533, %532 : vector<8x64xf32>
    %535 = arith.divf %533, %534 : vector<8x64xf32>
    %536 = vector.extract_strided_slice %529 {offsets = [0, 64], sizes = [8, 64], strides = [1, 1]} : vector<8x256xf32> to vector<8x64xf32>
    %537 = arith.negf %536 : vector<8x64xf32>
    %538 = math.exp %537 : vector<8x64xf32>
    %cst_193 = arith.constant 1.000000e+00 : f32
    %539 = vector.broadcast %cst_193 : f32 to vector<8x64xf32>
    %540 = arith.addf %539, %538 : vector<8x64xf32>
    %541 = arith.divf %539, %540 : vector<8x64xf32>
    %542 = vector.extract_strided_slice %529 {offsets = [0, 128], sizes = [8, 64], strides = [1, 1]} : vector<8x256xf32> to vector<8x64xf32>
    %543 = math.tanh %542 : vector<8x64xf32>
    %544 = vector.extract_strided_slice %529 {offsets = [0, 192], sizes = [8, 64], strides = [1, 1]} : vector<8x256xf32> to vector<8x64xf32>
    %545 = arith.negf %544 : vector<8x64xf32>
    %546 = math.exp %545 : vector<8x64xf32>
    %cst_194 = arith.constant 1.000000e+00 : f32
    %547 = vector.broadcast %cst_194 : f32 to vector<8x64xf32>
    %548 = arith.addf %547, %546 : vector<8x64xf32>
    %549 = arith.divf %547, %548 : vector<8x64xf32>
    %550 = arith.mulf %541, %511 : vector<8x64xf32>
    %551 = arith.mulf %535, %543 : vector<8x64xf32>
    %552 = arith.addf %550, %551 : vector<8x64xf32>
    %553 = math.tanh %552 : vector<8x64xf32>
    %554 = arith.mulf %549, %553 : vector<8x64xf32>
    %c0_195 = arith.constant 0 : index
    %c0_196 = arith.constant 0 : index
    %555 = vector.load %arg4[%c0_195, %c0_196] : memref<64x128xf32, #tpu.memory_space<vmem>>, vector<64x128xf32>
    %cst_197 = arith.constant dense<0.000000e+00> : vector<8x128xf32>
    %556 = tpu.matmul %554, %555, %cst_197 {dimension_numbers = #tpu.dot_dimension_numbers<[1], [0], [0], [1], [0, 0, 1, 1], [], []>} : vector<8x64xf32>, vector<64x128xf32>, vector<8x128xf32> -> vector<8x128xf32>
    %c0_198 = arith.constant 0 : index
    %c0_199 = arith.constant 0 : index
    %557 = vector.load %arg5[%c0_198, %c0_199] : memref<1x128xf32, #tpu.memory_space<vmem>>, vector<1x128xf32>
    %558 = vector.broadcast %557 : vector<1x128xf32> to vector<8x128xf32>
    %559 = arith.addf %556, %558 : vector<8x128xf32>
    %560 = arith.index_cast %c5_i32_185 : i32 to index
    %c0_200 = arith.constant 0 : index
    %c0_201 = arith.constant 0 : index
    %561 = vector.load %arg6[%560, %c0_200, %c0_201] : memref<7x8x128xf32, #tpu.memory_space<vmem>>, vector<1x8x128xf32>
    %562 = vector.shape_cast %561 : vector<1x8x128xf32> to vector<8x128xf32>
    %563 = vector.shape_cast %559 : vector<8x128xf32> to vector<1x8x128xf32>
    tpu.vector_store %arg6[%560, %c0_200, %c0_201], %563 {strides = array<i32>} : memref<7x8x128xf32, #tpu.memory_space<vmem>>, vector<1x8x128xf32>,
    %c6_i32_202 = arith.constant 6 : i32
    %c8_i32_203 = arith.constant 8 : i32
    %564 = arith.addi %c8_i32_203, %c6_i32_202 : i32
    %565 = arith.index_cast %564 : i32 to index
    %c0_204 = arith.constant 0 : index
    %c0_205 = arith.constant 0 : index
    %566 = vector.load %arg7[%565, %c0_204, %c0_205] : memref<15x8x256xf32, #tpu.memory_space<vmem>>, vector<1x8x256xf32>
    %567 = vector.shape_cast %566 : vector<1x8x256xf32> to vector<8x256xf32>
    %c0_206 = arith.constant 0 : index
    %c0_207 = arith.constant 0 : index
    %568 = vector.load %arg3[%c0_206, %c0_207] : memref<64x256xf32, #tpu.memory_space<vmem>>, vector<64x256xf32>
    %cst_208 = arith.constant dense<0.000000e+00> : vector<8x256xf32>
    %569 = tpu.matmul %554, %568, %cst_208 {dimension_numbers = #tpu.dot_dimension_numbers<[1], [0], [0], [1], [0, 0, 1, 1], [], []>} : vector<8x64xf32>, vector<64x256xf32>, vector<8x256xf32> -> vector<8x256xf32>
    %570 = arith.addf %567, %569 : vector<8x256xf32>
    %571 = vector.extract_strided_slice %570 {offsets = [0, 0], sizes = [8, 64], strides = [1, 1]} : vector<8x256xf32> to vector<8x64xf32>
    %572 = arith.negf %571 : vector<8x64xf32>
    %573 = math.exp %572 : vector<8x64xf32>
    %cst_209 = arith.constant 1.000000e+00 : f32
    %574 = vector.broadcast %cst_209 : f32 to vector<8x64xf32>
    %575 = arith.addf %574, %573 : vector<8x64xf32>
    %576 = arith.divf %574, %575 : vector<8x64xf32>
    %577 = vector.extract_strided_slice %570 {offsets = [0, 64], sizes = [8, 64], strides = [1, 1]} : vector<8x256xf32> to vector<8x64xf32>
    %578 = arith.negf %577 : vector<8x64xf32>
    %579 = math.exp %578 : vector<8x64xf32>
    %cst_210 = arith.constant 1.000000e+00 : f32
    %580 = vector.broadcast %cst_210 : f32 to vector<8x64xf32>
    %581 = arith.addf %580, %579 : vector<8x64xf32>
    %582 = arith.divf %580, %581 : vector<8x64xf32>
    %583 = vector.extract_strided_slice %570 {offsets = [0, 128], sizes = [8, 64], strides = [1, 1]} : vector<8x256xf32> to vector<8x64xf32>
    %584 = math.tanh %583 : vector<8x64xf32>
    %585 = vector.extract_strided_slice %570 {offsets = [0, 192], sizes = [8, 64], strides = [1, 1]} : vector<8x256xf32> to vector<8x64xf32>
    %586 = arith.negf %585 : vector<8x64xf32>
    %587 = math.exp %586 : vector<8x64xf32>
    %cst_211 = arith.constant 1.000000e+00 : f32
    %588 = vector.broadcast %cst_211 : f32 to vector<8x64xf32>
    %589 = arith.addf %588, %587 : vector<8x64xf32>
    %590 = arith.divf %588, %589 : vector<8x64xf32>
    %591 = arith.mulf %582, %552 : vector<8x64xf32>
    %592 = arith.mulf %576, %584 : vector<8x64xf32>
    %593 = arith.addf %591, %592 : vector<8x64xf32>
    %594 = math.tanh %593 : vector<8x64xf32>
    %595 = arith.mulf %590, %594 : vector<8x64xf32>
    %c0_212 = arith.constant 0 : index
    %c0_213 = arith.constant 0 : index
    %596 = vector.load %arg4[%c0_212, %c0_213] : memref<64x128xf32, #tpu.memory_space<vmem>>, vector<64x128xf32>
    %cst_214 = arith.constant dense<0.000000e+00> : vector<8x128xf32>
    %597 = tpu.matmul %595, %596, %cst_214 {dimension_numbers = #tpu.dot_dimension_numbers<[1], [0], [0], [1], [0, 0, 1, 1], [], []>} : vector<8x64xf32>, vector<64x128xf32>, vector<8x128xf32> -> vector<8x128xf32>
    %c0_215 = arith.constant 0 : index
    %c0_216 = arith.constant 0 : index
    %598 = vector.load %arg5[%c0_215, %c0_216] : memref<1x128xf32, #tpu.memory_space<vmem>>, vector<1x128xf32>
    %599 = vector.broadcast %598 : vector<1x128xf32> to vector<8x128xf32>
    %600 = arith.addf %597, %599 : vector<8x128xf32>
    %601 = arith.index_cast %c6_i32_202 : i32 to index
    %c0_217 = arith.constant 0 : index
    %c0_218 = arith.constant 0 : index
    %602 = vector.load %arg6[%601, %c0_217, %c0_218] : memref<7x8x128xf32, #tpu.memory_space<vmem>>, vector<1x8x128xf32>
    %603 = vector.shape_cast %602 : vector<1x8x128xf32> to vector<8x128xf32>
    %604 = vector.shape_cast %600 : vector<8x128xf32> to vector<1x8x128xf32>
    tpu.vector_store %arg6[%601, %c0_217, %c0_218], %604 {strides = array<i32>} : memref<7x8x128xf32, #tpu.memory_space<vmem>>, vector<1x8x128xf32>,
    %c7_i32_219 = arith.constant 7 : i32
    return
  }
}

</mosaic_0001>

<llo_original>
// kernel: encoder_decoder_forward.1
$region0: #{encoder_decoder_forward.1}
  #allocation0 [shape = 'u32[]', space=smem, size = 0x4, offset = 0x4, fixed_abs, tag = 'smem constant byte address 0x4 - core index']
  #allocation1 [shape = 'u32[144,128]{1,0:T(1,128)}', space=vmem, size = 0x12000, scoped, tag = 'internal scratch']
  #allocation2 [shape = 'f32[15,8,256]{2,1,0:T(8,128)}', space=vmem, size = 0x1e000, scoped, tag = 'scratch operand']
  %s0 = inlined_call_operand.vmem [shape: s32[120,1], index: 0, kind: input, shape index: {}]
  %s1 = inlined_call_operand.vmem [shape: f32[64,256], index: 1, kind: input, shape index: {}]
  %s2 = inlined_call_operand.vmem [shape: f32[64,256], index: 2, kind: input, shape index: {}]
  %s3 = inlined_call_operand.vmem [shape: f32[64,256], index: 3, kind: input, shape index: {}]
  %s4 = inlined_call_operand.vmem [shape: f32[64,128], index: 4, kind: input, shape index: {}]
  %s5 = inlined_call_operand.vmem [shape: f32[1,128], index: 5, kind: input, shape index: {}]
  %s6 = inlined_call_operand.vmem [shape: f32[7,8,128], index: 6, kind: output, shape index: {}]
  %s7 = sld [smem:[#allocation0]]
  $region34: #{encoder_decoder_forward.1} parent=0
    _
  %s9 = ssub.s32 1, %s7
  %s10 = scalar_select 0, %s9, %s7
  // Predicated region
  $region2: #{encoder_decoder_forward.1} parent=0 // pred_check
    _
  $region3: #{encoder_decoder_forward.1} parent=0 // pred_check_branch
    %12 = sbr.rel (0) target = $region5
  $region4: #{encoder_decoder_forward.1} parent=0 // pred_region
    _
  $region5: #{encoder_decoder_forward.1} parent=0 // pred_fallthru
    _
  // Predicated region
  $region6: #{encoder_decoder_forward.1} parent=0 // pred_check
    _
  $region7: #{encoder_decoder_forward.1} parent=0 // pred_check_branch
    %14 = sbr.rel (0) target = $region9
  $region8: #{encoder_decoder_forward.1} parent=0 // pred_region
    _
  $region9: #{encoder_decoder_forward.1} parent=0 // pred_fallthru
    _
  // Predicated region
  $region10: #{encoder_decoder_forward.1} parent=0 // pred_check
    _
  $region11: #{encoder_decoder_forward.1} parent=0 // pred_check_branch
    %16 = sbr.rel (0) target = $region13
  $region12: #{encoder_decoder_forward.1} parent=0 // pred_region
    _
  $region13: #{encoder_decoder_forward.1} parent=0 // pred_fallthru
    _
  // Predicated region
  $region14: #{encoder_decoder_forward.1} parent=0 // pred_check
    _
  $region15: #{encoder_decoder_forward.1} parent=0 // pred_check_branch
    %18 = sbr.rel (0) target = $region17
  $region16: #{encoder_decoder_forward.1} parent=0 // pred_region
    _
  $region17: #{encoder_decoder_forward.1} parent=0 // pred_fallthru
    _
  // Predicated region
  $region18: #{encoder_decoder_forward.1} parent=0 // pred_check
    _
  $region19: #{encoder_decoder_forward.1} parent=0 // pred_check_branch
    %20 = sbr.rel (0) target = $region21
  $region20: #{encoder_decoder_forward.1} parent=0 // pred_region
    _
  $region21: #{encoder_decoder_forward.1} parent=0 // pred_fallthru
    _
  // Predicated region
  $region22: #{encoder_decoder_forward.1} parent=0 // pred_check
    _
  $region23: #{encoder_decoder_forward.1} parent=0 // pred_check_branch
    %22 = sbr.rel (0) target = $region25
  $region24: #{encoder_decoder_forward.1} parent=0 // pred_region
    _
  $region25: #{encoder_decoder_forward.1} parent=0 // pred_fallthru
    _
  %v23 = vld [vmem:[%s0] sm:$0xff]
  %v24 = vld [vmem:[%s0 + $0x8] sm:$0xff]
  %v25 = vld [vmem:[%s0 + $0x10] sm:$0xff]
  %v26 = vld [vmem:[%s0 + $0x18] sm:$0xff]
  %v27 = vld [vmem:[%s0 + $0x20] sm:$0xff]
  %v28 = vld [vmem:[%s0 + $0x28] sm:$0xff]
  %v29 = vld [vmem:[%s0 + $0x30] sm:$0xff]
  %v30 = vld [vmem:[%s0 + $0x38] sm:$0xff]
  %v31 = vld [vmem:[%s0 + $0x40] sm:$0xff]
  %v32 = vld [vmem:[%s0 + $0x48] sm:$0xff]
  %v33 = vld [vmem:[%s0 + $0x50] sm:$0xff]
  %v34 = vld [vmem:[%s0 + $0x58] sm:$0xff]
  %v35 = vld [vmem:[%s0 + $0x60] sm:$0xff]
  %v36 = vld [vmem:[%s0 + $0x68] sm:$0xff]
  %v37 = vld [vmem:[%s0 + $0x70] sm:$0xff]
  %v38 = vlaneseq
  %v39 = vand.u32 %v38, 127
  %40 = vset.pattern.permute.xlu0 0
  %41 = vperm.xlu0 %40, %v23
  %v42 = vpop.permute.xlu0 %41
  %43 = vset.pattern.permute.xlu0 0
  %44 = vperm.xlu0 %43, %v24
  %v45 = vpop.permute.xlu0 %44
  %46 = vset.pattern.permute.xlu0 0
  %47 = vperm.xlu0 %46, %v25
  %v48 = vpop.permute.xlu0 %47
  %49 = vset.pattern.permute.xlu0 0
  %50 = vperm.xlu0 %49, %v26
  %v51 = vpop.permute.xlu0 %50
  %52 = vset.pattern.permute.xlu0 0
  %53 = vperm.xlu0 %52, %v27
  %v54 = vpop.permute.xlu0 %53
  %55 = vset.pattern.permute.xlu0 0
  %56 = vperm.xlu0 %55, %v28
  %v57 = vpop.permute.xlu0 %56
  %58 = vset.pattern.permute.xlu0 0
  %59 = vperm.xlu0 %58, %v29
  %v60 = vpop.permute.xlu0 %59
  %61 = vset.pattern.permute.xlu0 0
  %62 = vperm.xlu0 %61, %v30
  %v63 = vpop.permute.xlu0 %62
  %64 = vset.pattern.permute.xlu0 0
  %65 = vperm.xlu0 %64, %v31
  %v66 = vpop.permute.xlu0 %65
  %67 = vset.pattern.permute.xlu0 0
  %68 = vperm.xlu0 %67, %v32
  %v69 = vpop.permute.xlu0 %68
  %70 = vset.pattern.permute.xlu0 0
  %71 = vperm.xlu0 %70, %v33
  %v72 = vpop.permute.xlu0 %71
  %73 = vset.pattern.permute.xlu0 0
  %74 = vperm.xlu0 %73, %v34
  %v75 = vpop.permute.xlu0 %74
  %76 = vset.pattern.permute.xlu0 0
  %77 = vperm.xlu0 %76, %v35
  %v78 = vpop.permute.xlu0 %77
  %79 = vset.pattern.permute.xlu0 0
  %80 = vperm.xlu0 %79, %v36
  %v81 = vpop.permute.xlu0 %80
  %82 = vset.pattern.permute.xlu0 0
  %83 = vperm.xlu0 %82, %v37
  %v84 = vpop.permute.xlu0 %83
  %vm85 = vcmp.eq.s32.totalorder %v42, %v39
  %vm86 = vcmp.eq.s32.totalorder %v45, %v39
  %vm87 = vcmp.eq.s32.totalorder %v48, %v39
  %vm88 = vcmp.eq.s32.totalorder %v51, %v39
  %vm89 = vcmp.eq.s32.totalorder %v54, %v39
  %vm90 = vcmp.eq.s32.totalorder %v57, %v39
  %vm91 = vcmp.eq.s32.totalorder %v60, %v39
  %vm92 = vcmp.eq.s32.totalorder %v63, %v39
  %vm93 = vcmp.eq.s32.totalorder %v66, %v39
  %vm94 = vcmp.eq.s32.totalorder %v69, %v39
  %vm95 = vcmp.eq.s32.totalorder %v72, %v39
  %vm96 = vcmp.eq.s32.totalorder %v75, %v39
  %vm97 = vcmp.eq.s32.totalorder %v78, %v39
  %vm98 = vcmp.eq.s32.totalorder %v81, %v39
  %vm99 = vcmp.eq.s32.totalorder %v84, %v39
  %v100 = vsel %vm85, 1, 0
  %v101 = vsel %vm86, 1, 0
  %v102 = vsel %vm87, 1, 0
  %v103 = vsel %vm88, 1, 0
  %v104 = vsel %vm89, 1, 0
  %v105 = vsel %vm90, 1, 0
  %v106 = vsel %vm91, 1, 0
  %v107 = vsel %vm92, 1, 0
  %v108 = vsel %vm93, 1, 0
  %v109 = vsel %vm94, 1, 0
  %v110 = vsel %vm95, 1, 0
  %v111 = vsel %vm96, 1, 0
  %v112 = vsel %vm97, 1, 0
  %v113 = vsel %vm98, 1, 0
  %v114 = vsel %vm99, 1, 0
  %v115 = vcvt.s32.f32 %v100
  %v116 = vcvt.s32.f32 %v101
  %v117 = vcvt.s32.f32 %v102
  %v118 = vcvt.s32.f32 %v103
  %v119 = vcvt.s32.f32 %v104
  %v120 = vcvt.s32.f32 %v105
  %v121 = vcvt.s32.f32 %v106
  %v122 = vcvt.s32.f32 %v107
  %v123 = vcvt.s32.f32 %v108
  %v124 = vcvt.s32.f32 %v109
  %v125 = vcvt.s32.f32 %v110
  %v126 = vcvt.s32.f32 %v111
  %v127 = vcvt.s32.f32 %v112
  %v128 = vcvt.s32.f32 %v113
  %v129 = vcvt.s32.f32 %v114
  %v130 = vld [vmem:[%s1] sm:$0xff]
  %v131 = vld [vmem:[%s1 + $0x8] sm:$0xff]
  %v132 = vld [vmem:[%s1 + $0x10] sm:$0xff]
  %v133 = vld [vmem:[%s1 + $0x18] sm:$0xff]
  %v134 = vld [vmem:[%s1 + $0x20] sm:$0xff]
  %v135 = vld [vmem:[%s1 + $0x28] sm:$0xff]
  %v136 = vld [vmem:[%s1 + $0x30] sm:$0xff]
  %v137 = vld [vmem:[%s1 + $0x38] sm:$0xff]
  %v138 = vld [vmem:[%s1 + $0x40] sm:$0xff]
  %v139 = vld [vmem:[%s1 + $0x48] sm:$0xff]
  %v140 = vld [vmem:[%s1 + $0x50] sm:$0xff]
  %v141 = vld [vmem:[%s1 + $0x58] sm:$0xff]
  %v142 = vld [vmem:[%s1 + $0x60] sm:$0xff]
  %v143 = vld [vmem:[%s1 + $0x68] sm:$0xff]
  %v144 = vld [vmem:[%s1 + $0x70] sm:$0xff]
  %v145 = vld [vmem:[%s1 + $0x78] sm:$0xff]
  %vm146 = vcmask 523264
  %v148 = vsel %vm146, %v115, 0
  %v151 = vsel %vm146, %v116, 0
  %v154 = vsel %vm146, %v117, 0
  %v157 = vsel %vm146, %v118, 0
  %v160 = vsel %vm146, %v119, 0
  %v163 = vsel %vm146, %v120, 0
  %v166 = vsel %vm146, %v121, 0
  %v169 = vsel %vm146, %v122, 0
  %v172 = vsel %vm146, %v123, 0
  %v175 = vsel %vm146, %v124, 0
  %v178 = vsel %vm146, %v125, 0
  %v181 = vsel %vm146, %v126, 0
  %v184 = vsel %vm146, %v127, 0
  %v187 = vsel %vm146, %v128, 0
  %v190 = vsel %vm146, %v129, 0
  %192 = vmatprep.subr.mxu0 0.0
  %193 = vmatpush1.msra.mxu0 0.0
  %194 = vmatprep.subr.mxu0 0.0
  %195 = vmatpush1.msra.mxu0 0.0
  %196 = vmatprep.subr.mxu0 0.0
  %197 = vmatpush1.msra.mxu0 0.0
  %198 = vmatprep.subr.mxu0 0.0
  %199 = vmatpush1.msra.mxu0 0.0
  %200 = vmatprep.subr.mxu0 0.0
  %201 = vmatpush1.msra.mxu0 0.0
  %202 = vmatprep.subr.mxu0 0.0
  %203 = vmatpush1.msra.mxu0 0.0
  %204 = vmatprep.subr.mxu0 0.0
  %205 = vmatpush1.msra.mxu0 0.0
  %206 = vmatprep.subr.mxu0 0.0
  %207 = vmatpush1.msra.mxu0 0.0
  %208 = vmatprep.subr.mxu0 %v145
  %209 = vmatpush1.msra.mxu0 %v144
  %210 = vmatprep.subr.mxu0 %v143
  %211 = vmatpush1.msra.mxu0 %v142
  %212 = vmatprep.subr.mxu0 %v141
  %213 = vmatpush1.msra.mxu0 %v140
  %214 = vmatprep.subr.mxu0 %v139
  %215 = vmatpush1.msra.mxu0 %v138
  %216 = vmatprep.subr.mxu0 %v137
  %217 = vmatpush1.msra.mxu0 %v136
  %218 = vmatprep.subr.mxu0 %v135
  %219 = vmatpush1.msra.mxu0 %v134
  %220 = vmatprep.subr.mxu0 %v133
  %221 = vmatpush1.msra.mxu0 %v132
  %222 = vmatprep.subr.mxu0 %v131
  %223 = vmatpush1.msra.mxu0 %v130
  %224 = vmatprep.subr.mxu0 0.0
  %225 = vmatpush2.msra.mxu0 0.0
  %226 = vmatprep.subr.mxu0 0.0
  %227 = vmatpush2.msra.mxu0 0.0
  %228 = vmatprep.subr.mxu0 0.0
  %229 = vmatpush2.msra.mxu0 0.0
  %230 = vmatprep.subr.mxu0 0.0
  %231 = vmatpush2.msra.mxu0 0.0
  %232 = vmatprep.subr.mxu0 0.0
  %233 = vmatpush2.msra.mxu0 0.0
  %234 = vmatprep.subr.mxu0 0.0
  %235 = vmatpush2.msra.mxu0 0.0
  %236 = vmatprep.subr.mxu0 0.0
  %237 = vmatpush2.msra.mxu0 0.0
  %238 = vmatprep.subr.mxu0 0.0
  %239 = vmatpush2.msra.mxu0 0.0
  %240 = vmatprep.subr.mxu0 0.0
  %241 = vmatpush2.msra.mxu0 0.0
  %242 = vmatprep.subr.mxu0 0.0
  %243 = vmatpush2.msra.mxu0 0.0
  %244 = vmatprep.subr.mxu0 0.0
  %245 = vmatpush2.msra.mxu0 0.0
  %246 = vmatprep.subr.mxu0 0.0
  %247 = vmatpush2.msra.mxu0 0.0
  %248 = vmatprep.subr.mxu0 0.0
  %249 = vmatpush2.msra.mxu0 0.0
  %250 = vmatprep.subr.mxu0 0.0
  %251 = vmatpush2.msra.mxu0 0.0
  %252 = vmatprep.subr.mxu0 0.0
  %253 = vmatpush2.msra.mxu0 0.0
  %254 = vmatprep.subr.mxu0 0.0
  %255 = vmatpush2.msra.mxu0 0.0
  %256 = vmatprep.mubr.f32.mxu0 0.0
  %257 = vmatmul.mubr.f32.gmra.mxu0 %v148
  %v258 = vpop.f32.mrf.mxu0
  %v259 = vadd.f32 0.0, %v258
  %v260 = vpop.f32.mrf.mxu0
  %v261 = vadd.f32 0.0, %v260
  %262 = vmatprep.mubr.f32.mxu0 0.0
  %263 = vmatmul.mubr.f32.gmra.mxu0 %v151
  %v264 = vpop.f32.mrf.mxu0
  %v265 = vadd.f32 0.0, %v264
  %v266 = vpop.f32.mrf.mxu0
  %v267 = vadd.f32 0.0, %v266
  %268 = vmatprep.mubr.f32.mxu0 0.0
  %269 = vmatmul.mubr.f32.gmra.mxu0 %v154
  %v270 = vpop.f32.mrf.mxu0
  %v271 = vadd.f32 0.0, %v270
  %v272 = vpop.f32.mrf.mxu0
  %v273 = vadd.f32 0.0, %v272
  %274 = vmatprep.mubr.f32.mxu0 0.0
  %275 = vmatmul.mubr.f32.gmra.mxu0 %v157
  %v276 = vpop.f32.mrf.mxu0
  %v277 = vadd.f32 0.0, %v276
  %v278 = vpop.f32.mrf.mxu0
  %v279 = vadd.f32 0.0, %v278
  %280 = vmatprep.mubr.f32.mxu0 0.0
  %281 = vmatmul.mubr.f32.gmra.mxu0 %v160
  %v282 = vpop.f32.mrf.mxu0
  %v283 = vadd.f32 0.0, %v282
  %v284 = vpop.f32.mrf.mxu0
  %v285 = vadd.f32 0.0, %v284
  %286 = vmatprep.mubr.f32.mxu0 0.0
  %287 = vmatmul.mubr.f32.gmra.mxu0 %v163
  %v288 = vpop.f32.mrf.mxu0
  %v289 = vadd.f32 0.0, %v288
  %v290 = vpop.f32.mrf.mxu0
  %v291 = vadd.f32 0.0, %v290
  %292 = vmatprep.mubr.f32.mxu0 0.0
  %293 = vmatmul.mubr.f32.gmra.mxu0 %v166
  %v294 = vpop.f32.mrf.mxu0
  %v295 = vadd.f32 0.0, %v294
  %v296 = vpop.f32.mrf.mxu0
  %v297 = vadd.f32 0.0, %v296
  %298 = vmatprep.mubr.f32.mxu0 0.0
  %299 = vmatmul.mubr.f32.gmra.mxu0 %v169
  %v300 = vpop.f32.mrf.mxu0
  %v301 = vadd.f32 0.0, %v300
  %v302 = vpop.f32.mrf.mxu0
  %v303 = vadd.f32 0.0, %v302
  %304 = vmatprep.mubr.f32.mxu0 0.0
  %305 = vmatmul.mubr.f32.gmra.mxu0 %v172
  %v306 = vpop.f32.mrf.mxu0
  %v307 = vadd.f32 0.0, %v306
  %v308 = vpop.f32.mrf.mxu0
  %v309 = vadd.f32 0.0, %v308
  %310 = vmatprep.mubr.f32.mxu0 0.0
  %311 = vmatmul.mubr.f32.gmra.mxu0 %v175
  %v312 = vpop.f32.mrf.mxu0
  %v313 = vadd.f32 0.0, %v312
  %v314 = vpop.f32.mrf.mxu0
  %v315 = vadd.f32 0.0, %v314
  %316 = vmatprep.mubr.f32.mxu0 0.0
  %317 = vmatmul.mubr.f32.gmra.mxu0 %v178
  %v318 = vpop.f32.mrf.mxu0
  %v319 = vadd.f32 0.0, %v318
  %v320 = vpop.f32.mrf.mxu0
  %v321 = vadd.f32 0.0, %v320
  %322 = vmatprep.mubr.f32.mxu0 0.0
  %323 = vmatmul.mubr.f32.gmra.mxu0 %v181
  %v324 = vpop.f32.mrf.mxu0
  %v325 = vadd.f32 0.0, %v324
  %v326 = vpop.f32.mrf.mxu0
  %v327 = vadd.f32 0.0, %v326
  %328 = vmatprep.mubr.f32.mxu0 0.0
  %329 = vmatmul.mubr.f32.gmra.mxu0 %v184
  %v330 = vpop.f32.mrf.mxu0
  %v331 = vadd.f32 0.0, %v330
  %v332 = vpop.f32.mrf.mxu0
  %v333 = vadd.f32 0.0, %v332
  %334 = vmatprep.mubr.f32.mxu0 0.0
  %335 = vmatmul.mubr.f32.gmra.mxu0 %v187
  %v336 = vpop.f32.mrf.mxu0
  %v337 = vadd.f32 0.0, %v336
  %v338 = vpop.f32.mrf.mxu0
  %v339 = vadd.f32 0.0, %v338
  %340 = vmatprep.mubr.f32.mxu0 0.0
  %341 = vmatmul.mubr.f32.gmra.mxu0 %v190
  %v342 = vpop.f32.mrf.mxu0
  %v343 = vadd.f32 0.0, %v342
  %v344 = vpop.f32.mrf.mxu0
  %v345 = vadd.f32 0.0, %v344
  %346 = vdwg.mxu0
  %347 = vst [vmem:[#allocation2] sm:$0xff] %v259
  %348 = vst [vmem:[#allocation2 + $0x8] sm:$0xff] %v261
  %349 = vst [vmem:[#allocation2 + $0x10] sm:$0xff] %v265
  %350 = vst [vmem:[#allocation2 + $0x18] sm:$0xff] %v267
  %351 = vst [vmem:[#allocation2 + $0x20] sm:$0xff] %v271
  %352 = vst [vmem:[#allocation2 + $0x28] sm:$0xff] %v273
  %353 = vst [vmem:[#allocation2 + $0x30] sm:$0xff] %v277
  %354 = vst [vmem:[#allocation2 + $0x38] sm:$0xff] %v279
  %355 = vst [vmem:[#allocation2 + $0x40] sm:$0xff] %v283
  %356 = vst [vmem:[#allocation2 + $0x48] sm:$0xff] %v285
  %357 = vst [vmem:[#allocation2 + $0x50] sm:$0xff] %v289
  %358 = vst [vmem:[#allocation2 + $0x58] sm:$0xff] %v291
  %359 = vst [vmem:[#allocation2 + $0x60] sm:$0xff] %v295
  %360 = vst [vmem:[#allocation2 + $0x68] sm:$0xff] %v297
  %361 = vst [vmem:[#allocation2 + $0x70] sm:$0xff] %v301
  %362 = vst [vmem:[#allocation2 + $0x78] sm:$0xff] %v303
  %363 = vst [vmem:[#allocation2 + $0x80] sm:$0xff] %v307
  %364 = vst [vmem:[#allocation2 + $0x88] sm:$0xff] %v309
  %365 = vst [vmem:[#allocation2 + $0x90] sm:$0xff] %v313
  %366 = vst [vmem:[#allocation2 + $0x98] sm:$0xff] %v315
  %367 = vst [vmem:[#allocation2 + $0xa0] sm:$0xff] %v319
  %368 = vst [vmem:[#allocation2 + $0xa8] sm:$0xff] %v321
  %369 = vst [vmem:[#allocation2 + $0xb0] sm:$0xff] %v325
  %370 = vst [vmem:[#allocation2 + $0xb8] sm:$0xff] %v327
  %371 = vst [vmem:[#allocation2 + $0xc0] sm:$0xff] %v331
  %372 = vst [vmem:[#allocation2 + $0xc8] sm:$0xff] %v333
  %373 = vst [vmem:[#allocation2 + $0xd0] sm:$0xff] %v337
  %374 = vst [vmem:[#allocation2 + $0xd8] sm:$0xff] %v339
  %375 = vst [vmem:[#allocation2 + $0xe0] sm:$0xff] %v343
  %376 = vst [vmem:[#allocation2 + $0xe8] sm:$0xff] %v345
  %v377 = vadd.s32 %v39, 128
  %vm378 = vcmp.lt.s32.totalorder %v39, 0
  %v379 = vsub.s32 0, %v39
  %v380 = vsel %vm378, %v379, %v39
  %v381 = vshrl.u32 %v380, 6
  %v382 = vand.u32 %v380, 63
  %v383 = vsub.s32 0, %v382
  %v384 = vsel %vm378, %v383, %v382
  %vm385 = vcmp.lt.s32.totalorder %v377, 0
  %v386 = vsub.s32 0, %v377
  %v387 = vsel %vm385, %v386, %v377
  %v388 = vshrl.u32 %v387, 6
  %v389 = vand.u32 %v387, 63
  %v390 = vsub.s32 0, %v389
  %v391 = vsel %vm385, %v390, %v389
  %vm392 = vcmp.ne.s32.totalorder %v384, 0
  %vm393 = vcmp.ne.s32.totalorder %v391, 0
  %vm394 = vcmp.lt.s32.totalorder %v384, 0
  %vm395 = vcmp.lt.s32.totalorder %v391, 0
  %vm396 = vmand %vm394, %vm392
  %vm397 = vmand %vm395, %vm393
  %v398 = vadd.s32 %v384, 64
  %v399 = vadd.s32 %v391, 64
  %v400 = vsel %vm396, %v398, %v384
  %v401 = vsel %vm397, %v399, %v391
  %vm402 = vcmp.lt.s32.totalorder %v400, 32
  %vm403 = vcmp.lt.s32.totalorder %v401, 32
  %v404 = vld [vmem:[#allocation2] sm:$0xff]
  %v405 = vld [vmem:[#allocation2 + $0x8] sm:$0xff]
  %s406 = scalar_lea.vmem [#allocation2], 112
  %v407 = vld [vmem:[%s406] sm:$0xff]
  %v408 = vld [vmem:[%s406 + $0x8] sm:$0xff]
  %v409 = vsel %vm402, %v404, %v407
  %v410 = vsel %vm403, %v405, %v408
  %v411 = vld [vmem:[%s2] sm:$0xff]
  %v412 = vld [vmem:[%s2 + $0x8] sm:$0xff]
  %v413 = vld [vmem:[%s2 + $0x10] sm:$0xff]
  %v414 = vld [vmem:[%s2 + $0x18] sm:$0xff]
  %v415 = vld [vmem:[%s2 + $0x20] sm:$0xff]
  %v416 = vld [vmem:[%s2 + $0x28] sm:$0xff]
  %v417 = vld [vmem:[%s2 + $0x30] sm:$0xff]
  %v418 = vld [vmem:[%s2 + $0x38] sm:$0xff]
  %v419 = vld [vmem:[%s2 + $0x40] sm:$0xff]
  %v420 = vld [vmem:[%s2 + $0x48] sm:$0xff]
  %v421 = vld [vmem:[%s2 + $0x50] sm:$0xff]
  %v422 = vld [vmem:[%s2 + $0x58] sm:$0xff]
  %v423 = vld [vmem:[%s2 + $0x60] sm:$0xff]
  %v424 = vld [vmem:[%s2 + $0x68] sm:$0xff]
  %v425 = vld [vmem:[%s2 + $0x70] sm:$0xff]
  %v426 = vld [vmem:[%s2 + $0x78] sm:$0xff]
  %v428 = vsel %vm146, 0.0, 0
  %430 = vmatprep.subr.mxu0 0.0
  %431 = vmatpush1.msra.mxu0 0.0
  %432 = vmatprep.subr.mxu0 0.0
  %433 = vmatpush1.msra.mxu0 0.0
  %434 = vmatprep.subr.mxu0 0.0
  %435 = vmatpush1.msra.mxu0 0.0
  %436 = vmatprep.subr.mxu0 0.0
  %437 = vmatpush1.msra.mxu0 0.0
  %438 = vmatprep.subr.mxu0 0.0
  %439 = vmatpush1.msra.mxu0 0.0
  %440 = vmatprep.subr.mxu0 0.0
  %441 = vmatpush1.msra.mxu0 0.0
  %442 = vmatprep.subr.mxu0 0.0
  %443 = vmatpush1.msra.mxu0 0.0
  %444 = vmatprep.subr.mxu0 0.0
  %445 = vmatpush1.msra.mxu0 0.0
  %446 = vmatprep.subr.mxu0 %v426
  %447 = vmatpush1.msra.mxu0 %v425
  %448 = vmatprep.subr.mxu0 %v424
  %449 = vmatpush1.msra.mxu0 %v423
  %450 = vmatprep.subr.mxu0 %v422
  %451 = vmatpush1.msra.mxu0 %v421
  %452 = vmatprep.subr.mxu0 %v420
  %453 = vmatpush1.msra.mxu0 %v419
  %454 = vmatprep.subr.mxu0 %v418
  %455 = vmatpush1.msra.mxu0 %v417
  %456 = vmatprep.subr.mxu0 %v416
  %457 = vmatpush1.msra.mxu0 %v415
  %458 = vmatprep.subr.mxu0 %v414
  %459 = vmatpush1.msra.mxu0 %v413
  %460 = vmatprep.subr.mxu0 %v412
  %461 = vmatpush1.msra.mxu0 %v411
  %462 = vmatprep.subr.mxu0 0.0
  %463 = vmatpush2.msra.mxu0 0.0
  %464 = vmatprep.subr.mxu0 0.0
  %465 = vmatpush2.msra.mxu0 0.0
  %466 = vmatprep.subr.mxu0 0.0
  %467 = vmatpush2.msra.mxu0 0.0
  %468 = vmatprep.subr.mxu0 0.0
  %469 = vmatpush2.msra.mxu0 0.0
  %470 = vmatprep.subr.mxu0 0.0
  %471 = vmatpush2.msra.mxu0 0.0
  %472 = vmatprep.subr.mxu0 0.0
  %473 = vmatpush2.msra.mxu0 0.0
  %474 = vmatprep.subr.mxu0 0.0
  %475 = vmatpush2.msra.mxu0 0.0
  %476 = vmatprep.subr.mxu0 0.0
  %477 = vmatpush2.msra.mxu0 0.0
  %478 = vmatprep.subr.mxu0 0.0
  %479 = vmatpush2.msra.mxu0 0.0
  %480 = vmatprep.subr.mxu0 0.0
  %481 = vmatpush2.msra.mxu0 0.0
  %482 = vmatprep.subr.mxu0 0.0
  %483 = vmatpush2.msra.mxu0 0.0
  %484 = vmatprep.subr.mxu0 0.0
  %485 = vmatpush2.msra.mxu0 0.0
  %486 = vmatprep.subr.mxu0 0.0
  %487 = vmatpush2.msra.mxu0 0.0
  %488 = vmatprep.subr.mxu0 0.0
  %489 = vmatpush2.msra.mxu0 0.0
  %490 = vmatprep.subr.mxu0 0.0
  %491 = vmatpush2.msra.mxu0 0.0
  %492 = vmatprep.subr.mxu0 0.0
  %493 = vmatpush2.msra.mxu0 0.0
  %494 = vmatprep.mubr.f32.mxu0 0.0
  %495 = vmatmul.mubr.f32.gmra.mxu0 %v428
  %v496 = vpop.f32.mrf.mxu0
  %v497 = vadd.f32 0.0, %v496
  %v498 = vpop.f32.mrf.mxu0
  %v499 = vadd.f32 0.0, %v498
  %500 = vdwg.mxu0
  %v501 = vadd.f32 %v409, %v497
  %v502 = vadd.f32 %v410, %v499
  %v503 = vxor.u32 %v501, 2147483648
  %v504 = vmul.f32 %v503, 1.442695
  %v505 = vpow.pop %v504
  %v506 = vadd.f32 %v505, 1.0
  %v507 = vrcp.pop %v506
  %v508 = vmul.f32 1.0, %v507
  %v509 = vtanh.pop %v502
  %v510 = vxor.u32 %v502, 2147483648
  %v511 = vmul.f32 %v510, 1.442695
  %v512 = vpow.pop %v511
  %v513 = vadd.f32 %v512, 1.0
  %v514 = vrcp.pop %v513
  %v515 = vmul.f32 1.0, %v514
  %v516 = vmul.f32 %v508, 0.0
  %v517 = vmul.f32 %v508, %v509
  %519 = vrot.lane.b32.xlu0 %v517, 64
  %v520 = vpop.permute.xlu0 %519
  %v522 = vadd.f32 %v516, %v520
  %v523 = vtanh.pop %v522
  %v524 = vmul.f32 %v515, %v523
  %s525 = scalar_lea.vmem [#allocation2], 16
  %v526 = vld [vmem:[%s525] sm:$0xff]
  %v527 = vld [vmem:[%s525 + $0x8] sm:$0xff]
  %s528 = scalar_lea.vmem [#allocation2], 96
  %v529 = vld [vmem:[%s528] sm:$0xff]
  %v530 = vld [vmem:[%s528 + $0x8] sm:$0xff]
  %v531 = vsel %vm402, %v526, %v529
  %v532 = vsel %vm403, %v527, %v530
  %534 = vrot.lane.b32.xlu0 %v524, 64
  %v535 = vpop.permute.xlu0 %534
  %v536 = vsel %vm146, %v535, 0
  %538 = vmatprep.subr.mxu0 0.0
  %539 = vmatpush1.msra.mxu0 0.0
  %540 = vmatprep.subr.mxu0 0.0
  %541 = vmatpush1.msra.mxu0 0.0
  %542 = vmatprep.subr.mxu0 0.0
  %543 = vmatpush1.msra.mxu0 0.0
  %544 = vmatprep.subr.mxu0 0.0
  %545 = vmatpush1.msra.mxu0 0.0
  %546 = vmatprep.subr.mxu0 0.0
  %547 = vmatpush1.msra.mxu0 0.0
  %548 = vmatprep.subr.mxu0 0.0
  %549 = vmatpush1.msra.mxu0 0.0
  %550 = vmatprep.subr.mxu0 0.0
  %551 = vmatpush1.msra.mxu0 0.0
  %552 = vmatprep.subr.mxu0 0.0
  %553 = vmatpush1.msra.mxu0 0.0
  %554 = vmatprep.subr.mxu0 %v426
  %555 = vmatpush1.msra.mxu0 %v425
  %556 = vmatprep.subr.mxu0 %v424
  %557 = vmatpush1.msra.mxu0 %v423
  %558 = vmatprep.subr.mxu0 %v422
  %559 = vmatpush1.msra.mxu0 %v421
  %560 = vmatprep.subr.mxu0 %v420
  %561 = vmatpush1.msra.mxu0 %v419
  %562 = vmatprep.subr.mxu0 %v418
  %563 = vmatpush1.msra.mxu0 %v417
  %564 = vmatprep.subr.mxu0 %v416
  %565 = vmatpush1.msra.mxu0 %v415
  %566 = vmatprep.subr.mxu0 %v414
  %567 = vmatpush1.msra.mxu0 %v413
  %568 = vmatprep.subr.mxu0 %v412
  %569 = vmatpush1.msra.mxu0 %v411
  %570 = vmatprep.subr.mxu0 0.0
  %571 = vmatpush2.msra.mxu0 0.0
  %572 = vmatprep.subr.mxu0 0.0
  %573 = vmatpush2.msra.mxu0 0.0
  %574 = vmatprep.subr.mxu0 0.0
  %575 = vmatpush2.msra.mxu0 0.0
  %576 = vmatprep.subr.mxu0 0.0
  %577 = vmatpush2.msra.mxu0 0.0
  %578 = vmatprep.subr.mxu0 0.0
  %579 = vmatpush2.msra.mxu0 0.0
  %580 = vmatprep.subr.mxu0 0.0
  %581 = vmatpush2.msra.mxu0 0.0
  %582 = vmatprep.subr.mxu0 0.0
  %583 = vmatpush2.msra.mxu0 0.0
  %584 = vmatprep.subr.mxu0 0.0
  %585 = vmatpush2.msra.mxu0 0.0
  %586 = vmatprep.subr.mxu0 0.0
  %587 = vmatpush2.msra.mxu0 0.0
  %588 = vmatprep.subr.mxu0 0.0
  %589 = vmatpush2.msra.mxu0 0.0
  %590 = vmatprep.subr.mxu0 0.0
  %591 = vmatpush2.msra.mxu0 0.0
  %592 = vmatprep.subr.mxu0 0.0
  %593 = vmatpush2.msra.mxu0 0.0
  %594 = vmatprep.subr.mxu0 0.0
  %595 = vmatpush2.msra.mxu0 0.0
  %596 = vmatprep.subr.mxu0 0.0
  %597 = vmatpush2.msra.mxu0 0.0
  %598 = vmatprep.subr.mxu0 0.0
  %599 = vmatpush2.msra.mxu0 0.0
  %600 = vmatprep.subr.mxu0 0.0
  %601 = vmatpush2.msra.mxu0 0.0
  %602 = vmatprep.mubr.f32.mxu0 0.0
  %603 = vmatmul.mubr.f32.gmra.mxu0 %v536
  %v604 = vpop.f32.mrf.mxu0
  %v605 = vadd.f32 0.0, %v604
  %v606 = vpop.f32.mrf.mxu0
  %v607 = vadd.f32 0.0, %v606
  %608 = vdwg.mxu0
  %v609 = vadd.f32 %v531, %v605
  %v610 = vadd.f32 %v532, %v607
  %v611 = vxor.u32 %v609, 2147483648
  %v612 = vmul.f32 %v611, 1.442695
  %v613 = vpow.pop %v612
  %v614 = vadd.f32 %v613, 1.0
  %v615 = vrcp.pop %v614
  %v616 = vmul.f32 1.0, %v615
  %v617 = vtanh.pop %v610
  %v618 = vxor.u32 %v610, 2147483648
  %v619 = vmul.f32 %v618, 1.442695
  %v620 = vpow.pop %v619
  %v621 = vadd.f32 %v620, 1.0
  %v622 = vrcp.pop %v621
  %v623 = vmul.f32 1.0, %v622
  %v624 = vmul.f32 %v616, %v522
  %v625 = vmul.f32 %v616, %v617
  %627 = vrot.lane.b32.xlu0 %v625, 64
  %v628 = vpop.permute.xlu0 %627
  %v630 = vadd.f32 %v624, %v628
  %v631 = vtanh.pop %v630
  %v632 = vmul.f32 %v623, %v631
  %s633 = scalar_lea.vmem [#allocation2], 32
  %v634 = vld [vmem:[%s633] sm:$0xff]
  %v635 = vld [vmem:[%s633 + $0x8] sm:$0xff]
  %s636 = scalar_lea.vmem [#allocation2], 80
  %v637 = vld [vmem:[%s636] sm:$0xff]
  %v638 = vld [vmem:[%s636 + $0x8] sm:$0xff]
  %v639 = vsel %vm402, %v634, %v637
  %v640 = vsel %vm403, %v635, %v638
  %642 = vrot.lane.b32.xlu0 %v632, 64
  %v643 = vpop.permute.xlu0 %642
  %v644 = vsel %vm146, %v643, 0
  %646 = vmatprep.subr.mxu0 0.0
  %647 = vmatpush1.msra.mxu0 0.0
  %648 = vmatprep.subr.mxu0 0.0
  %649 = vmatpush1.msra.mxu0 0.0
  %650 = vmatprep.subr.mxu0 0.0
  %651 = vmatpush1.msra.mxu0 0.0
  %652 = vmatprep.subr.mxu0 0.0
  %653 = vmatpush1.msra.mxu0 0.0
  %654 = vmatprep.subr.mxu0 0.0
  %655 = vmatpush1.msra.mxu0 0.0
  %656 = vmatprep.subr.mxu0 0.0
  %657 = vmatpush1.msra.mxu0 0.0
  %658 = vmatprep.subr.mxu0 0.0
  %659 = vmatpush1.msra.mxu0 0.0
  %660 = vmatprep.subr.mxu0 0.0
  %661 = vmatpush1.msra.mxu0 0.0
  %662 = vmatprep.subr.mxu0 %v426
  %663 = vmatpush1.msra.mxu0 %v425
  %664 = vmatprep.subr.mxu0 %v424
  %665 = vmatpush1.msra.mxu0 %v423
  %666 = vmatprep.subr.mxu0 %v422
  %667 = vmatpush1.msra.mxu0 %v421
  %668 = vmatprep.subr.mxu0 %v420
  %669 = vmatpush1.msra.mxu0 %v419
  %670 = vmatprep.subr.mxu0 %v418
  %671 = vmatpush1.msra.mxu0 %v417
  %672 = vmatprep.subr.mxu0 %v416
  %673 = vmatpush1.msra.mxu0 %v415
  %674 = vmatprep.subr.mxu0 %v414
  %675 = vmatpush1.msra.mxu0 %v413
  %676 = vmatprep.subr.mxu0 %v412
  %677 = vmatpush1.msra.mxu0 %v411
  %678 = vmatprep.subr.mxu0 0.0
  %679 = vmatpush2.msra.mxu0 0.0
  %680 = vmatprep.subr.mxu0 0.0
  %681 = vmatpush2.msra.mxu0 0.0
  %682 = vmatprep.subr.mxu0 0.0
  %683 = vmatpush2.msra.mxu0 0.0
  %684 = vmatprep.subr.mxu0 0.0
  %685 = vmatpush2.msra.mxu0 0.0
  %686 = vmatprep.subr.mxu0 0.0
  %687 = vmatpush2.msra.mxu0 0.0
  %688 = vmatprep.subr.mxu0 0.0
  %689 = vmatpush2.msra.mxu0 0.0
  %690 = vmatprep.subr.mxu0 0.0
  %691 = vmatpush2.msra.mxu0 0.0
  %692 = vmatprep.subr.mxu0 0.0
  %693 = vmatpush2.msra.mxu0 0.0
  %694 = vmatprep.subr.mxu0 0.0
  %695 = vmatpush2.msra.mxu0 0.0
  %696 = vmatprep.subr.mxu0 0.0
  %697 = vmatpush2.msra.mxu0 0.0
  %698 = vmatprep.subr.mxu0 0.0
  %699 = vmatpush2.msra.mxu0 0.0
  %700 = vmatprep.subr.mxu0 0.0
  %701 = vmatpush2.msra.mxu0 0.0
  %702 = vmatprep.subr.mxu0 0.0
  %703 = vmatpush2.msra.mxu0 0.0
  %704 = vmatprep.subr.mxu0 0.0
  %705 = vmatpush2.msra.mxu0 0.0
  %706 = vmatprep.subr.mxu0 0.0
  %707 = vmatpush2.msra.mxu0 0.0
  %708 = vmatprep.subr.mxu0 0.0
  %709 = vmatpush2.msra.mxu0 0.0
  %710 = vmatprep.mubr.f32.mxu0 0.0
  %711 = vmatmul.mubr.f32.gmra.mxu0 %v644
  %v712 = vpop.f32.mrf.mxu0
  %v713 = vadd.f32 0.0, %v712
  %v714 = vpop.f32.mrf.mxu0
  %v715 = vadd.f32 0.0, %v714
  %716 = vdwg.mxu0
  %v717 = vadd.f32 %v639, %v713
  %v718 = vadd.f32 %v640, %v715
  %v719 = vxor.u32 %v717, 2147483648
  %v720 = vmul.f32 %v719, 1.442695
  %v721 = vpow.pop %v720
  %v722 = vadd.f32 %v721, 1.0
  %v723 = vrcp.pop %v722
  %v724 = vmul.f32 1.0, %v723
  %v725 = vtanh.pop %v718
  %v726 = vxor.u32 %v718, 2147483648
  %v727 = vmul.f32 %v726, 1.442695
  %v728 = vpow.pop %v727
  %v729 = vadd.f32 %v728, 1.0
  %v730 = vrcp.pop %v729
  %v731 = vmul.f32 1.0, %v730
  %v732 = vmul.f32 %v724, %v630
  %v733 = vmul.f32 %v724, %v725
  %735 = vrot.lane.b32.xlu0 %v733, 64
  %v736 = vpop.permute.xlu0 %735
  %v738 = vadd.f32 %v732, %v736
  %v739 = vtanh.pop %v738
  %v740 = vmul.f32 %v731, %v739
  %s741 = scalar_lea.vmem [#allocation2], 48
  %v742 = vld [vmem:[%s741] sm:$0xff]
  %v743 = vld [vmem:[%s741 + $0x8] sm:$0xff]
  %s744 = scalar_lea.vmem [#allocation2], 64
  %v745 = vld [vmem:[%s744] sm:$0xff]
  %v746 = vld [vmem:[%s744 + $0x8] sm:$0xff]
  %v747 = vsel %vm402, %v742, %v745
  %v748 = vsel %vm403, %v743, %v746
  %750 = vrot.lane.b32.xlu0 %v740, 64
  %v751 = vpop.permute.xlu0 %750
  %v752 = vsel %vm146, %v751, 0
  %754 = vmatprep.subr.mxu0 0.0
  %755 = vmatpush1.msra.mxu0 0.0
  %756 = vmatprep.subr.mxu0 0.0
  %757 = vmatpush1.msra.mxu0 0.0
  %758 = vmatprep.subr.mxu0 0.0
  %759 = vmatpush1.msra.mxu0 0.0
  %760 = vmatprep.subr.mxu0 0.0
  %761 = vmatpush1.msra.mxu0 0.0
  %762 = vmatprep.subr.mxu0 0.0
  %763 = vmatpush1.msra.mxu0 0.0
  %764 = vmatprep.subr.mxu0 0.0
  %765 = vmatpush1.msra.mxu0 0.0
  %766 = vmatprep.subr.mxu0 0.0
  %767 = vmatpush1.msra.mxu0 0.0
  %768 = vmatprep.subr.mxu0 0.0
  %769 = vmatpush1.msra.mxu0 0.0
  %770 = vmatprep.subr.mxu0 %v426
  %771 = vmatpush1.msra.mxu0 %v425
  %772 = vmatprep.subr.mxu0 %v424
  %773 = vmatpush1.msra.mxu0 %v423
  %774 = vmatprep.subr.mxu0 %v422
  %775 = vmatpush1.msra.mxu0 %v421
  %776 = vmatprep.subr.mxu0 %v420
  %777 = vmatpush1.msra.mxu0 %v419
  %778 = vmatprep.subr.mxu0 %v418
  %779 = vmatpush1.msra.mxu0 %v417
  %780 = vmatprep.subr.mxu0 %v416
  %781 = vmatpush1.msra.mxu0 %v415
  %782 = vmatprep.subr.mxu0 %v414
  %783 = vmatpush1.msra.mxu0 %v413
  %784 = vmatprep.subr.mxu0 %v412
  %785 = vmatpush1.msra.mxu0 %v411
  %786 = vmatprep.subr.mxu0 0.0
  %787 = vmatpush2.msra.mxu0 0.0
  %788 = vmatprep.subr.mxu0 0.0
  %789 = vmatpush2.msra.mxu0 0.0
  %790 = vmatprep.subr.mxu0 0.0
  %791 = vmatpush2.msra.mxu0 0.0
  %792 = vmatprep.subr.mxu0 0.0
  %793 = vmatpush2.msra.mxu0 0.0
  %794 = vmatprep.subr.mxu0 0.0
  %795 = vmatpush2.msra.mxu0 0.0
  %796 = vmatprep.subr.mxu0 0.0
  %797 = vmatpush2.msra.mxu0 0.0
  %798 = vmatprep.subr.mxu0 0.0
  %799 = vmatpush2.msra.mxu0 0.0
  %800 = vmatprep.subr.mxu0 0.0
  %801 = vmatpush2.msra.mxu0 0.0
  %802 = vmatprep.subr.mxu0 0.0
  %803 = vmatpush2.msra.mxu0 0.0
  %804 = vmatprep.subr.mxu0 0.0
  %805 = vmatpush2.msra.mxu0 0.0
  %806 = vmatprep.subr.mxu0 0.0
  %807 = vmatpush2.msra.mxu0 0.0
  %808 = vmatprep.subr.mxu0 0.0
  %809 = vmatpush2.msra.mxu0 0.0
  %810 = vmatprep.subr.mxu0 0.0
  %811 = vmatpush2.msra.mxu0 0.0
  %812 = vmatprep.subr.mxu0 0.0
  %813 = vmatpush2.msra.mxu0 0.0
  %814 = vmatprep.subr.mxu0 0.0
  %815 = vmatpush2.msra.mxu0 0.0
  %816 = vmatprep.subr.mxu0 0.0
  %817 = vmatpush2.msra.mxu0 0.0
  %818 = vmatprep.mubr.f32.mxu0 0.0
  %819 = vmatmul.mubr.f32.gmra.mxu0 %v752
  %v820 = vpop.f32.mrf.mxu0
  %v821 = vadd.f32 0.0, %v820
  %v822 = vpop.f32.mrf.mxu0
  %v823 = vadd.f32 0.0, %v822
  %824 = vdwg.mxu0
  %v825 = vadd.f32 %v747, %v821
  %v826 = vadd.f32 %v748, %v823
  %v827 = vxor.u32 %v825, 2147483648
  %v828 = vmul.f32 %v827, 1.442695
  %v829 = vpow.pop %v828
  %v830 = vadd.f32 %v829, 1.0
  %v831 = vrcp.pop %v830
  %v832 = vmul.f32 1.0, %v831
  %v833 = vtanh.pop %v826
  %v834 = vxor.u32 %v826, 2147483648
  %v835 = vmul.f32 %v834, 1.442695
  %v836 = vpow.pop %v835
  %v837 = vadd.f32 %v836, 1.0
  %v838 = vrcp.pop %v837
  %v839 = vmul.f32 1.0, %v838
  %v840 = vmul.f32 %v832, %v738
  %v841 = vmul.f32 %v832, %v833
  %843 = vrot.lane.b32.xlu0 %v841, 64
  %v844 = vpop.permute.xlu0 %843
  %v846 = vadd.f32 %v840, %v844
  %v847 = vtanh.pop %v846
  %v848 = vmul.f32 %v839, %v847
  %v849 = vsel %vm402, %v745, %v742
  %v850 = vsel %vm403, %v746, %v743
  %852 = vrot.lane.b32.xlu0 %v848, 64
  %v853 = vpop.permute.xlu0 %852
  %v854 = vsel %vm146, %v853, 0
  %856 = vmatprep.subr.mxu0 0.0
  %857 = vmatpush1.msra.mxu0 0.0
  %858 = vmatprep.subr.mxu0 0.0
  %859 = vmatpush1.msra.mxu0 0.0
  %860 = vmatprep.subr.mxu0 0.0
  %861 = vmatpush1.msra.mxu0 0.0
  %862 = vmatprep.subr.mxu0 0.0
  %863 = vmatpush1.msra.mxu0 0.0
  %864 = vmatprep.subr.mxu0 0.0
  %865 = vmatpush1.msra.mxu0 0.0
  %866 = vmatprep.subr.mxu0 0.0
  %867 = vmatpush1.msra.mxu0 0.0
  %868 = vmatprep.subr.mxu0 0.0
  %869 = vmatpush1.msra.mxu0 0.0
  %870 = vmatprep.subr.mxu0 0.0
  %871 = vmatpush1.msra.mxu0 0.0
  %872 = vmatprep.subr.mxu0 %v426
  %873 = vmatpush1.msra.mxu0 %v425
  %874 = vmatprep.subr.mxu0 %v424
  %875 = vmatpush1.msra.mxu0 %v423
  %876 = vmatprep.subr.mxu0 %v422
  %877 = vmatpush1.msra.mxu0 %v421
  %878 = vmatprep.subr.mxu0 %v420
  %879 = vmatpush1.msra.mxu0 %v419
  %880 = vmatprep.subr.mxu0 %v418
  %881 = vmatpush1.msra.mxu0 %v417
  %882 = vmatprep.subr.mxu0 %v416
  %883 = vmatpush1.msra.mxu0 %v415
  %884 = vmatprep.subr.mxu0 %v414
  %885 = vmatpush1.msra.mxu0 %v413
  %886 = vmatprep.subr.mxu0 %v412
  %887 = vmatpush1.msra.mxu0 %v411
  %888 = vmatprep.subr.mxu0 0.0
  %889 = vmatpush2.msra.mxu0 0.0
  %890 = vmatprep.subr.mxu0 0.0
  %891 = vmatpush2.msra.mxu0 0.0
  %892 = vmatprep.subr.mxu0 0.0
  %893 = vmatpush2.msra.mxu0 0.0
  %894 = vmatprep.subr.mxu0 0.0
  %895 = vmatpush2.msra.mxu0 0.0
  %896 = vmatprep.subr.mxu0 0.0
  %897 = vmatpush2.msra.mxu0 0.0
  %898 = vmatprep.subr.mxu0 0.0
  %899 = vmatpush2.msra.mxu0 0.0
  %900 = vmatprep.subr.mxu0 0.0
  %901 = vmatpush2.msra.mxu0 0.0
  %902 = vmatprep.subr.mxu0 0.0
  %903 = vmatpush2.msra.mxu0 0.0
  %904 = vmatprep.subr.mxu0 0.0
  %905 = vmatpush2.msra.mxu0 0.0
  %906 = vmatprep.subr.mxu0 0.0
  %907 = vmatpush2.msra.mxu0 0.0
  %908 = vmatprep.subr.mxu0 0.0
  %909 = vmatpush2.msra.mxu0 0.0
  %910 = vmatprep.subr.mxu0 0.0
  %911 = vmatpush2.msra.mxu0 0.0
  %912 = vmatprep.subr.mxu0 0.0
  %913 = vmatpush2.msra.mxu0 0.0
  %914 = vmatprep.subr.mxu0 0.0
  %915 = vmatpush2.msra.mxu0 0.0
  %916 = vmatprep.subr.mxu0 0.0
  %917 = vmatpush2.msra.mxu0 0.0
  %918 = vmatprep.subr.mxu0 0.0
  %919 = vmatpush2.msra.mxu0 0.0
  %920 = vmatprep.mubr.f32.mxu0 0.0
  %921 = vmatmul.mubr.f32.gmra.mxu0 %v854
  %v922 = vpop.f32.mrf.mxu0
  %v923 = vadd.f32 0.0, %v922
  %v924 = vpop.f32.mrf.mxu0
  %v925 = vadd.f32 0.0, %v924
  %926 = vdwg.mxu0
  %v927 = vadd.f32 %v849, %v923
  %v928 = vadd.f32 %v850, %v925
  %v929 = vxor.u32 %v927, 2147483648
  %v930 = vmul.f32 %v929, 1.442695
  %v931 = vpow.pop %v930
  %v932 = vadd.f32 %v931, 1.0
  %v933 = vrcp.pop %v932
  %v934 = vmul.f32 1.0, %v933
  %v935 = vtanh.pop %v928
  %v936 = vxor.u32 %v928, 2147483648
  %v937 = vmul.f32 %v936, 1.442695
  %v938 = vpow.pop %v937
  %v939 = vadd.f32 %v938, 1.0
  %v940 = vrcp.pop %v939
  %v941 = vmul.f32 1.0, %v940
  %v942 = vmul.f32 %v934, %v846
  %v943 = vmul.f32 %v934, %v935
  %945 = vrot.lane.b32.xlu0 %v943, 64
  %v946 = vpop.permute.xlu0 %945
  %v948 = vadd.f32 %v942, %v946
  %v949 = vtanh.pop %v948
  %v950 = vmul.f32 %v941, %v949
  %v951 = vsel %vm402, %v637, %v634
  %v952 = vsel %vm403, %v638, %v635
  %954 = vrot.lane.b32.xlu0 %v950, 64
  %v955 = vpop.permute.xlu0 %954
  %v956 = vsel %vm146, %v955, 0
  %958 = vmatprep.subr.mxu0 0.0
  %959 = vmatpush1.msra.mxu0 0.0
  %960 = vmatprep.subr.mxu0 0.0
  %961 = vmatpush1.msra.mxu0 0.0
  %962 = vmatprep.subr.mxu0 0.0
  %963 = vmatpush1.msra.mxu0 0.0
  %964 = vmatprep.subr.mxu0 0.0
  %965 = vmatpush1.msra.mxu0 0.0
  %966 = vmatprep.subr.mxu0 0.0
  %967 = vmatpush1.msra.mxu0 0.0
  %968 = vmatprep.subr.mxu0 0.0
  %969 = vmatpush1.msra.mxu0 0.0
  %970 = vmatprep.subr.mxu0 0.0
  %971 = vmatpush1.msra.mxu0 0.0
  %972 = vmatprep.subr.mxu0 0.0
  %973 = vmatpush1.msra.mxu0 0.0
  %974 = vmatprep.subr.mxu0 %v426
  %975 = vmatpush1.msra.mxu0 %v425
  %976 = vmatprep.subr.mxu0 %v424
  %977 = vmatpush1.msra.mxu0 %v423
  %978 = vmatprep.subr.mxu0 %v422
  %979 = vmatpush1.msra.mxu0 %v421
  %980 = vmatprep.subr.mxu0 %v420
  %981 = vmatpush1.msra.mxu0 %v419
  %982 = vmatprep.subr.mxu0 %v418
  %983 = vmatpush1.msra.mxu0 %v417
  %984 = vmatprep.subr.mxu0 %v416
  %985 = vmatpush1.msra.mxu0 %v415
  %986 = vmatprep.subr.mxu0 %v414
  %987 = vmatpush1.msra.mxu0 %v413
  %988 = vmatprep.subr.mxu0 %v412
  %989 = vmatpush1.msra.mxu0 %v411
  %990 = vmatprep.subr.mxu0 0.0
  %991 = vmatpush2.msra.mxu0 0.0
  %992 = vmatprep.subr.mxu0 0.0
  %993 = vmatpush2.msra.mxu0 0.0
  %994 = vmatprep.subr.mxu0 0.0
  %995 = vmatpush2.msra.mxu0 0.0
  %996 = vmatprep.subr.mxu0 0.0
  %997 = vmatpush2.msra.mxu0 0.0
  %998 = vmatprep.subr.mxu0 0.0
  %999 = vmatpush2.msra.mxu0 0.0
  %1000 = vmatprep.subr.mxu0 0.0
  %1001 = vmatpush2.msra.mxu0 0.0
  %1002 = vmatprep.subr.mxu0 0.0
  %1003 = vmatpush2.msra.mxu0 0.0
  %1004 = vmatprep.subr.mxu0 0.0
  %1005 = vmatpush2.msra.mxu0 0.0
  %1006 = vmatprep.subr.mxu0 0.0
  %1007 = vmatpush2.msra.mxu0 0.0
  %1008 = vmatprep.subr.mxu0 0.0
  %1009 = vmatpush2.msra.mxu0 0.0
  %1010 = vmatprep.subr.mxu0 0.0
  %1011 = vmatpush2.msra.mxu0 0.0
  %1012 = vmatprep.subr.mxu0 0.0
  %1013 = vmatpush2.msra.mxu0 0.0
  %1014 = vmatprep.subr.mxu0 0.0
  %1015 = vmatpush2.msra.mxu0 0.0
  %1016 = vmatprep.subr.mxu0 0.0
  %1017 = vmatpush2.msra.mxu0 0.0
  %1018 = vmatprep.subr.mxu0 0.0
  %1019 = vmatpush2.msra.mxu0 0.0
  %1020 = vmatprep.subr.mxu0 0.0
  %1021 = vmatpush2.msra.mxu0 0.0
  %1022 = vmatprep.mubr.f32.mxu0 0.0
  %1023 = vmatmul.mubr.f32.gmra.mxu0 %v956
  %v1024 = vpop.f32.mrf.mxu0
  %v1025 = vadd.f32 0.0, %v1024
  %v1026 = vpop.f32.mrf.mxu0
  %v1027 = vadd.f32 0.0, %v1026
  %1028 = vdwg.mxu0
  %v1029 = vadd.f32 %v951, %v1025
  %v1030 = vadd.f32 %v952, %v1027
  %v1031 = vxor.u32 %v1029, 2147483648
  %v1032 = vmul.f32 %v1031, 1.442695
  %v1033 = vpow.pop %v1032
  %v1034 = vadd.f32 %v1033, 1.0
  %v1035 = vrcp.pop %v1034
  %v1036 = vmul.f32 1.0, %v1035
  %v1037 = vtanh.pop %v1030
  %v1038 = vxor.u32 %v1030, 2147483648
  %v1039 = vmul.f32 %v1038, 1.442695
  %v1040 = vpow.pop %v1039
  %v1041 = vadd.f32 %v1040, 1.0
  %v1042 = vrcp.pop %v1041
  %v1043 = vmul.f32 1.0, %v1042
  %v1044 = vmul.f32 %v1036, %v948
  %v1045 = vmul.f32 %v1036, %v1037
  %1047 = vrot.lane.b32.xlu0 %v1045, 64
  %v1048 = vpop.permute.xlu0 %1047
  %v1050 = vadd.f32 %v1044, %v1048
  %v1051 = vtanh.pop %v1050
  %v1052 = vmul.f32 %v1043, %v1051
  %v1053 = vsel %vm402, %v529, %v526
  %v1054 = vsel %vm403, %v530, %v527
  %1056 = vrot.lane.b32.xlu0 %v1052, 64
  %v1057 = vpop.permute.xlu0 %1056
  %v1058 = vsel %vm146, %v1057, 0
  %1060 = vmatprep.subr.mxu0 0.0
  %1061 = vmatpush1.msra.mxu0 0.0
  %1062 = vmatprep.subr.mxu0 0.0
  %1063 = vmatpush1.msra.mxu0 0.0
  %1064 = vmatprep.subr.mxu0 0.0
  %1065 = vmatpush1.msra.mxu0 0.0
  %1066 = vmatprep.subr.mxu0 0.0
  %1067 = vmatpush1.msra.mxu0 0.0
  %1068 = vmatprep.subr.mxu0 0.0
  %1069 = vmatpush1.msra.mxu0 0.0
  %1070 = vmatprep.subr.mxu0 0.0
  %1071 = vmatpush1.msra.mxu0 0.0
  %1072 = vmatprep.subr.mxu0 0.0
  %1073 = vmatpush1.msra.mxu0 0.0
  %1074 = vmatprep.subr.mxu0 0.0
  %1075 = vmatpush1.msra.mxu0 0.0
  %1076 = vmatprep.subr.mxu0 %v426
  %1077 = vmatpush1.msra.mxu0 %v425
  %1078 = vmatprep.subr.mxu0 %v424
  %1079 = vmatpush1.msra.mxu0 %v423
  %1080 = vmatprep.subr.mxu0 %v422
  %1081 = vmatpush1.msra.mxu0 %v421
  %1082 = vmatprep.subr.mxu0 %v420
  %1083 = vmatpush1.msra.mxu0 %v419
  %1084 = vmatprep.subr.mxu0 %v418
  %1085 = vmatpush1.msra.mxu0 %v417
  %1086 = vmatprep.subr.mxu0 %v416
  %1087 = vmatpush1.msra.mxu0 %v415
  %1088 = vmatprep.subr.mxu0 %v414
  %1089 = vmatpush1.msra.mxu0 %v413
  %1090 = vmatprep.subr.mxu0 %v412
  %1091 = vmatpush1.msra.mxu0 %v411
  %1092 = vmatprep.subr.mxu0 0.0
  %1093 = vmatpush2.msra.mxu0 0.0
  %1094 = vmatprep.subr.mxu0 0.0
  %1095 = vmatpush2.msra.mxu0 0.0
  %1096 = vmatprep.subr.mxu0 0.0
  %1097 = vmatpush2.msra.mxu0 0.0
  %1098 = vmatprep.subr.mxu0 0.0
  %1099 = vmatpush2.msra.mxu0 0.0
  %1100 = vmatprep.subr.mxu0 0.0
  %1101 = vmatpush2.msra.mxu0 0.0
  %1102 = vmatprep.subr.mxu0 0.0
  %1103 = vmatpush2.msra.mxu0 0.0
  %1104 = vmatprep.subr.mxu0 0.0
  %1105 = vmatpush2.msra.mxu0 0.0
  %1106 = vmatprep.subr.mxu0 0.0
  %1107 = vmatpush2.msra.mxu0 0.0
  %1108 = vmatprep.subr.mxu0 0.0
  %1109 = vmatpush2.msra.mxu0 0.0
  %1110 = vmatprep.subr.mxu0 0.0
  %1111 = vmatpush2.msra.mxu0 0.0
  %1112 = vmatprep.subr.mxu0 0.0
  %1113 = vmatpush2.msra.mxu0 0.0
  %1114 = vmatprep.subr.mxu0 0.0
  %1115 = vmatpush2.msra.mxu0 0.0
  %1116 = vmatprep.subr.mxu0 0.0
  %1117 = vmatpush2.msra.mxu0 0.0
  %1118 = vmatprep.subr.mxu0 0.0
  %1119 = vmatpush2.msra.mxu0 0.0
  %1120 = vmatprep.subr.mxu0 0.0
  %1121 = vmatpush2.msra.mxu0 0.0
  %1122 = vmatprep.subr.mxu0 0.0
  %1123 = vmatpush2.msra.mxu0 0.0
  %1124 = vmatprep.mubr.f32.mxu0 0.0
  %1125 = vmatmul.mubr.f32.gmra.mxu0 %v1058
  %v1126 = vpop.f32.mrf.mxu0
  %v1127 = vadd.f32 0.0, %v1126
  %v1128 = vpop.f32.mrf.mxu0
  %v1129 = vadd.f32 0.0, %v1128
  %1130 = vdwg.mxu0
  %v1131 = vadd.f32 %v1053, %v1127
  %v1132 = vadd.f32 %v1054, %v1129
  %v1133 = vxor.u32 %v1131, 2147483648
  %v1134 = vmul.f32 %v1133, 1.442695
  %v1135 = vpow.pop %v1134
  %v1136 = vadd.f32 %v1135, 1.0
  %v1137 = vrcp.pop %v1136
  %v1138 = vmul.f32 1.0, %v1137
  %v1139 = vtanh.pop %v1132
  %v1140 = vxor.u32 %v1132, 2147483648
  %v1141 = vmul.f32 %v1140, 1.442695
  %v1142 = vpow.pop %v1141
  %v1143 = vadd.f32 %v1142, 1.0
  %v1144 = vrcp.pop %v1143
  %v1145 = vmul.f32 1.0, %v1144
  %v1146 = vmul.f32 %v1138, %v1050
  %v1147 = vmul.f32 %v1138, %v1139
  %1149 = vrot.lane.b32.xlu0 %v1147, 64
  %v1150 = vpop.permute.xlu0 %1149
  %v1152 = vadd.f32 %v1146, %v1150
  %v1153 = vtanh.pop %v1152
  %v1154 = vmul.f32 %v1145, %v1153
  %v1155 = vsel %vm402, %v407, %v404
  %v1156 = vsel %vm403, %v408, %v405
  %1158 = vrot.lane.b32.xlu0 %v1154, 64
  %v1159 = vpop.permute.xlu0 %1158
  %v1160 = vsel %vm146, %v1159, 0
  %1162 = vmatprep.subr.mxu0 0.0
  %1163 = vmatpush1.msra.mxu0 0.0
  %1164 = vmatprep.subr.mxu0 0.0
  %1165 = vmatpush1.msra.mxu0 0.0
  %1166 = vmatprep.subr.mxu0 0.0
  %1167 = vmatpush1.msra.mxu0 0.0
  %1168 = vmatprep.subr.mxu0 0.0
  %1169 = vmatpush1.msra.mxu0 0.0
  %1170 = vmatprep.subr.mxu0 0.0
  %1171 = vmatpush1.msra.mxu0 0.0
  %1172 = vmatprep.subr.mxu0 0.0
  %1173 = vmatpush1.msra.mxu0 0.0
  %1174 = vmatprep.subr.mxu0 0.0
  %1175 = vmatpush1.msra.mxu0 0.0
  %1176 = vmatprep.subr.mxu0 0.0
  %1177 = vmatpush1.msra.mxu0 0.0
  %1178 = vmatprep.subr.mxu0 %v426
  %1179 = vmatpush1.msra.mxu0 %v425
  %1180 = vmatprep.subr.mxu0 %v424
  %1181 = vmatpush1.msra.mxu0 %v423
  %1182 = vmatprep.subr.mxu0 %v422
  %1183 = vmatpush1.msra.mxu0 %v421
  %1184 = vmatprep.subr.mxu0 %v420
  %1185 = vmatpush1.msra.mxu0 %v419
  %1186 = vmatprep.subr.mxu0 %v418
  %1187 = vmatpush1.msra.mxu0 %v417
  %1188 = vmatprep.subr.mxu0 %v416
  %1189 = vmatpush1.msra.mxu0 %v415
  %1190 = vmatprep.subr.mxu0 %v414
  %1191 = vmatpush1.msra.mxu0 %v413
  %1192 = vmatprep.subr.mxu0 %v412
  %1193 = vmatpush1.msra.mxu0 %v411
  %1194 = vmatprep.subr.mxu0 0.0
  %1195 = vmatpush2.msra.mxu0 0.0
  %1196 = vmatprep.subr.mxu0 0.0
  %1197 = vmatpush2.msra.mxu0 0.0
  %1198 = vmatprep.subr.mxu0 0.0
  %1199 = vmatpush2.msra.mxu0 0.0
  %1200 = vmatprep.subr.mxu0 0.0
  %1201 = vmatpush2.msra.mxu0 0.0
  %1202 = vmatprep.subr.mxu0 0.0
  %1203 = vmatpush2.msra.mxu0 0.0
  %1204 = vmatprep.subr.mxu0 0.0
  %1205 = vmatpush2.msra.mxu0 0.0
  %1206 = vmatprep.subr.mxu0 0.0
  %1207 = vmatpush2.msra.mxu0 0.0
  %1208 = vmatprep.subr.mxu0 0.0
  %1209 = vmatpush2.msra.mxu0 0.0
  %1210 = vmatprep.subr.mxu0 0.0
  %1211 = vmatpush2.msra.mxu0 0.0
  %1212 = vmatprep.subr.mxu0 0.0
  %1213 = vmatpush2.msra.mxu0 0.0
  %1214 = vmatprep.subr.mxu0 0.0
  %1215 = vmatpush2.msra.mxu0 0.0
  %1216 = vmatprep.subr.mxu0 0.0
  %1217 = vmatpush2.msra.mxu0 0.0
  %1218 = vmatprep.subr.mxu0 0.0
  %1219 = vmatpush2.msra.mxu0 0.0
  %1220 = vmatprep.subr.mxu0 0.0
  %1221 = vmatpush2.msra.mxu0 0.0
  %1222 = vmatprep.subr.mxu0 0.0
  %1223 = vmatpush2.msra.mxu0 0.0
  %1224 = vmatprep.subr.mxu0 0.0
  %1225 = vmatpush2.msra.mxu0 0.0
  %1226 = vmatprep.mubr.f32.mxu0 0.0
  %1227 = vmatmul.mubr.f32.gmra.mxu0 %v1160
  %v1228 = vpop.f32.mrf.mxu0
  %v1229 = vadd.f32 0.0, %v1228
  %v1230 = vpop.f32.mrf.mxu0
  %v1231 = vadd.f32 0.0, %v1230
  %1232 = vdwg.mxu0
  %v1233 = vadd.f32 %v1155, %v1229
  %v1234 = vadd.f32 %v1156, %v1231
  %v1235 = vxor.u32 %v1233, 2147483648
  %v1236 = vmul.f32 %v1235, 1.442695
  %v1237 = vpow.pop %v1236
  %v1238 = vadd.f32 %v1237, 1.0
  %v1239 = vrcp.pop %v1238
  %v1240 = vmul.f32 1.0, %v1239
  %v1241 = vtanh.pop %v1234
  %v1242 = vxor.u32 %v1234, 2147483648
  %v1243 = vmul.f32 %v1242, 1.442695
  %v1244 = vpow.pop %v1243
  %v1245 = vadd.f32 %v1244, 1.0
  %v1246 = vrcp.pop %v1245
  %v1247 = vmul.f32 1.0, %v1246
  %v1248 = vmul.f32 %v1240, %v1152
  %v1249 = vmul.f32 %v1240, %v1241
  %1251 = vrot.lane.b32.xlu0 %v1249, 64
  %v1252 = vpop.permute.xlu0 %1251
  %v1254 = vadd.f32 %v1248, %v1252
  %v1255 = vtanh.pop %v1254
  %v1256 = vmul.f32 %v1247, %v1255
  %s1257 = scalar_lea.vmem [#allocation2], 128
  %v1258 = vld [vmem:[%s1257] sm:$0xff]
  %v1259 = vld [vmem:[%s1257 + $0x8] sm:$0xff]
  %v1260 = vld [vmem:[%s3] sm:$0xff]
  %v1261 = vld [vmem:[%s3 + $0x8] sm:$0xff]
  %v1262 = vld [vmem:[%s3 + $0x10] sm:$0xff]
  %v1263 = vld [vmem:[%s3 + $0x18] sm:$0xff]
  %v1264 = vld [vmem:[%s3 + $0x20] sm:$0xff]
  %v1265 = vld [vmem:[%s3 + $0x28] sm:$0xff]
  %v1266 = vld [vmem:[%s3 + $0x30] sm:$0xff]
  %v1267 = vld [vmem:[%s3 + $0x38] sm:$0xff]
  %v1268 = vld [vmem:[%s3 + $0x40] sm:$0xff]
  %v1269 = vld [vmem:[%s3 + $0x48] sm:$0xff]
  %v1270 = vld [vmem:[%s3 + $0x50] sm:$0xff]
  %v1271 = vld [vmem:[%s3 + $0x58] sm:$0xff]
  %v1272 = vld [vmem:[%s3 + $0x60] sm:$0xff]
  %v1273 = vld [vmem:[%s3 + $0x68] sm:$0xff]
  %v1274 = vld [vmem:[%s3 + $0x70] sm:$0xff]
  %v1275 = vld [vmem:[%s3 + $0x78] sm:$0xff]
  %1277 = vrot.lane.b32.xlu0 %v1256, 64
  %v1278 = vpop.permute.xlu0 %1277
  %v1279 = vsel %vm146, %v1278, 0
  %1281 = vmatprep.subr.mxu0 0.0
  %1282 = vmatpush1.msra.mxu0 0.0
  %1283 = vmatprep.subr.mxu0 0.0
  %1284 = vmatpush1.msra.mxu0 0.0
  %1285 = vmatprep.subr.mxu0 0.0
  %1286 = vmatpush1.msra.mxu0 0.0
  %1287 = vmatprep.subr.mxu0 0.0
  %1288 = vmatpush1.msra.mxu0 0.0
  %1289 = vmatprep.subr.mxu0 0.0
  %1290 = vmatpush1.msra.mxu0 0.0
  %1291 = vmatprep.subr.mxu0 0.0
  %1292 = vmatpush1.msra.mxu0 0.0
  %1293 = vmatprep.subr.mxu0 0.0
  %1294 = vmatpush1.msra.mxu0 0.0
  %1295 = vmatprep.subr.mxu0 0.0
  %1296 = vmatpush1.msra.mxu0 0.0
  %1297 = vmatprep.subr.mxu0 %v1275
  %1298 = vmatpush1.msra.mxu0 %v1274
  %1299 = vmatprep.subr.mxu0 %v1273
  %1300 = vmatpush1.msra.mxu0 %v1272
  %1301 = vmatprep.subr.mxu0 %v1271
  %1302 = vmatpush1.msra.mxu0 %v1270
  %1303 = vmatprep.subr.mxu0 %v1269
  %1304 = vmatpush1.msra.mxu0 %v1268
  %1305 = vmatprep.subr.mxu0 %v1267
  %1306 = vmatpush1.msra.mxu0 %v1266
  %1307 = vmatprep.subr.mxu0 %v1265
  %1308 = vmatpush1.msra.mxu0 %v1264
  %1309 = vmatprep.subr.mxu0 %v1263
  %1310 = vmatpush1.msra.mxu0 %v1262
  %1311 = vmatprep.subr.mxu0 %v1261
  %1312 = vmatpush1.msra.mxu0 %v1260
  %1313 = vmatprep.subr.mxu0 0.0
  %1314 = vmatpush2.msra.mxu0 0.0
  %1315 = vmatprep.subr.mxu0 0.0
  %1316 = vmatpush2.msra.mxu0 0.0
  %1317 = vmatprep.subr.mxu0 0.0
  %1318 = vmatpush2.msra.mxu0 0.0
  %1319 = vmatprep.subr.mxu0 0.0
  %1320 = vmatpush2.msra.mxu0 0.0
  %1321 = vmatprep.subr.mxu0 0.0
  %1322 = vmatpush2.msra.mxu0 0.0
  %1323 = vmatprep.subr.mxu0 0.0
  %1324 = vmatpush2.msra.mxu0 0.0
  %1325 = vmatprep.subr.mxu0 0.0
  %1326 = vmatpush2.msra.mxu0 0.0
  %1327 = vmatprep.subr.mxu0 0.0
  %1328 = vmatpush2.msra.mxu0 0.0
  %1329 = vmatprep.subr.mxu0 0.0
  %1330 = vmatpush2.msra.mxu0 0.0
  %1331 = vmatprep.subr.mxu0 0.0
  %1332 = vmatpush2.msra.mxu0 0.0
  %1333 = vmatprep.subr.mxu0 0.0
  %1334 = vmatpush2.msra.mxu0 0.0
  %1335 = vmatprep.subr.mxu0 0.0
  %1336 = vmatpush2.msra.mxu0 0.0
  %1337 = vmatprep.subr.mxu0 0.0
  %1338 = vmatpush2.msra.mxu0 0.0
  %1339 = vmatprep.subr.mxu0 0.0
  %1340 = vmatpush2.msra.mxu0 0.0
  %1341 = vmatprep.subr.mxu0 0.0
  %1342 = vmatpush2.msra.mxu0 0.0
  %1343 = vmatprep.subr.mxu0 0.0
  %1344 = vmatpush2.msra.mxu0 0.0
  %1345 = vmatprep.mubr.f32.mxu0 0.0
  %1346 = vmatmul.mubr.f32.gmra.mxu0 %v1279
  %v1347 = vpop.f32.mrf.mxu0
  %v1348 = vadd.f32 0.0, %v1347
  %v1349 = vpop.f32.mrf.mxu0
  %v1350 = vadd.f32 0.0, %v1349
  %1351 = vdwg.mxu0
  %v1352 = vadd.f32 %v1258, %v1348
  %v1353 = vadd.f32 %v1259, %v1350
  %v1354 = vxor.u32 %v1352, 2147483648
  %v1355 = vmul.f32 %v1354, 1.442695
  %v1356 = vpow.pop %v1355
  %v1357 = vadd.f32 %v1356, 1.0
  %v1358 = vrcp.pop %v1357
  %v1359 = vmul.f32 1.0, %v1358
  %v1360 = vtanh.pop %v1353
  %v1361 = vxor.u32 %v1353, 2147483648
  %v1362 = vmul.f32 %v1361, 1.442695
  %v1363 = vpow.pop %v1362
  %v1364 = vadd.f32 %v1363, 1.0
  %v1365 = vrcp.pop %v1364
  %v1366 = vmul.f32 1.0, %v1365
  %v1367 = vmul.f32 %v1359, %v1254
  %v1368 = vmul.f32 %v1359, %v1360
  %1370 = vrot.lane.b32.xlu0 %v1368, 64
  %v1371 = vpop.permute.xlu0 %1370
  %v1373 = vadd.f32 %v1367, %v1371
  %v1374 = vtanh.pop %v1373
  %v1375 = vmul.f32 %v1366, %v1374
  %v1376 = vld [vmem:[%s4] sm:$0xff]
  %v1377 = vld [vmem:[%s4 + $0x8] sm:$0xff]
  %v1378 = vld [vmem:[%s4 + $0x10] sm:$0xff]
  %v1379 = vld [vmem:[%s4 + $0x18] sm:$0xff]
  %v1380 = vld [vmem:[%s4 + $0x20] sm:$0xff]
  %v1381 = vld [vmem:[%s4 + $0x28] sm:$0xff]
  %v1382 = vld [vmem:[%s4 + $0x30] sm:$0xff]
  %v1383 = vld [vmem:[%s4 + $0x38] sm:$0xff]
  %v1384 = vld [vmem:[%s5] sm:$0x1]
  %v1386 = vlaneseq
  %v1387 = vshrl.u32 %v1386, 7
  %v1388 = vsub.s32 0, %v1387
  %v1389 = vrot.slane %v1384, %v1388
  %1392 = vrot.lane.b32.xlu0 %v1375, 64
  %v1393 = vpop.permute.xlu0 %1392
  %v1394 = vsel %vm146, %v1393, 0
  %1396 = vmatprep.subr.mxu0 0.0
  %1397 = vmatpush1.msra.mxu0 0.0
  %1398 = vmatprep.subr.mxu0 0.0
  %1399 = vmatpush1.msra.mxu0 0.0
  %1400 = vmatprep.subr.mxu0 0.0
  %1401 = vmatpush1.msra.mxu0 0.0
  %1402 = vmatprep.subr.mxu0 0.0
  %1403 = vmatpush1.msra.mxu0 0.0
  %1404 = vmatprep.subr.mxu0 0.0
  %1405 = vmatpush1.msra.mxu0 0.0
  %1406 = vmatprep.subr.mxu0 0.0
  %1407 = vmatpush1.msra.mxu0 0.0
  %1408 = vmatprep.subr.mxu0 0.0
  %1409 = vmatpush1.msra.mxu0 0.0
  %1410 = vmatprep.subr.mxu0 0.0
  %1411 = vmatpush1.msra.mxu0 0.0
  %1412 = vmatprep.subr.mxu0 0.0
  %1413 = vmatpush1.msra.mxu0 %v1383
  %1414 = vmatprep.subr.mxu0 0.0
  %1415 = vmatpush1.msra.mxu0 %v1382
  %1416 = vmatprep.subr.mxu0 0.0
  %1417 = vmatpush1.msra.mxu0 %v1381
  %1418 = vmatprep.subr.mxu0 0.0
  %1419 = vmatpush1.msra.mxu0 %v1380
  %1420 = vmatprep.subr.mxu0 0.0
  %1421 = vmatpush1.msra.mxu0 %v1379
  %1422 = vmatprep.subr.mxu0 0.0
  %1423 = vmatpush1.msra.mxu0 %v1378
  %1424 = vmatprep.subr.mxu0 0.0
  %1425 = vmatpush1.msra.mxu0 %v1377
  %1426 = vmatprep.subr.mxu0 0.0
  %1427 = vmatpush1.msra.mxu0 %v1376
  %1428 = vmatprep.subr.mxu0 0.0
  %1429 = vmatpush2.msra.mxu0 0.0
  %1430 = vmatprep.subr.mxu0 0.0
  %1431 = vmatpush2.msra.mxu0 0.0
  %1432 = vmatprep.subr.mxu0 0.0
  %1433 = vmatpush2.msra.mxu0 0.0
  %1434 = vmatprep.subr.mxu0 0.0
  %1435 = vmatpush2.msra.mxu0 0.0
  %1436 = vmatprep.subr.mxu0 0.0
  %1437 = vmatpush2.msra.mxu0 0.0
  %1438 = vmatprep.subr.mxu0 0.0
  %1439 = vmatpush2.msra.mxu0 0.0
  %1440 = vmatprep.subr.mxu0 0.0
  %1441 = vmatpush2.msra.mxu0 0.0
  %1442 = vmatprep.subr.mxu0 0.0
  %1443 = vmatpush2.msra.mxu0 0.0
  %1444 = vmatprep.subr.mxu0 0.0
  %1445 = vmatpush2.msra.mxu0 0.0
  %1446 = vmatprep.subr.mxu0 0.0
  %1447 = vmatpush2.msra.mxu0 0.0
  %1448 = vmatprep.subr.mxu0 0.0
  %1449 = vmatpush2.msra.mxu0 0.0
  %1450 = vmatprep.subr.mxu0 0.0
  %1451 = vmatpush2.msra.mxu0 0.0
  %1452 = vmatprep.subr.mxu0 0.0
  %1453 = vmatpush2.msra.mxu0 0.0
  %1454 = vmatprep.subr.mxu0 0.0
  %1455 = vmatpush2.msra.mxu0 0.0
  %1456 = vmatprep.subr.mxu0 0.0
  %1457 = vmatpush2.msra.mxu0 0.0
  %1458 = vmatprep.subr.mxu0 0.0
  %1459 = vmatpush2.msra.mxu0 0.0
  %1460 = vmatprep.mubr.f32.mxu0 0.0
  %1461 = vmatmul.mubr.f32.gmra.mxu0 %v1394
  %v1462 = vpop.f32.mrf.mxu0
  %v1463 = vadd.f32 %v1389, %v1462
  %v1464 = vpop.f32.mrf.mxu0
  %1465 = vdwg.mxu0
  %1466 = vst [vmem:[%s6] sm:$0xff] %v1463
  %s1467 = scalar_lea.vmem [#allocation2], 144
  %v1468 = vld [vmem:[%s1467] sm:$0xff]
  %v1469 = vld [vmem:[%s1467 + $0x8] sm:$0xff]
  %v1470 = vld [vmem:[%s3] sm:$0xff]
  %v1471 = vld [vmem:[%s3 + $0x8] sm:$0xff]
  %v1472 = vld [vmem:[%s3 + $0x10] sm:$0xff]
  %v1473 = vld [vmem:[%s3 + $0x18] sm:$0xff]
  %v1474 = vld [vmem:[%s3 + $0x20] sm:$0xff]
  %v1475 = vld [vmem:[%s3 + $0x28] sm:$0xff]
  %v1476 = vld [vmem:[%s3 + $0x30] sm:$0xff]
  %v1477 = vld [vmem:[%s3 + $0x38] sm:$0xff]
  %v1478 = vld [vmem:[%s3 + $0x40] sm:$0xff]
  %v1479 = vld [vmem:[%s3 + $0x48] sm:$0xff]
  %v1480 = vld [vmem:[%s3 + $0x50] sm:$0xff]
  %v1481 = vld [vmem:[%s3 + $0x58] sm:$0xff]
  %v1482 = vld [vmem:[%s3 + $0x60] sm:$0xff]
  %v1483 = vld [vmem:[%s3 + $0x68] sm:$0xff]
  %v1484 = vld [vmem:[%s3 + $0x70] sm:$0xff]
  %v1485 = vld [vmem:[%s3 + $0x78] sm:$0xff]
  %1486 = vmatprep.subr.mxu0 0.0
  %1487 = vmatpush1.msra.mxu0 0.0
  %1488 = vmatprep.subr.mxu0 0.0
  %1489 = vmatpush1.msra.mxu0 0.0
  %1490 = vmatprep.subr.mxu0 0.0
  %1491 = vmatpush1.msra.mxu0 0.0
  %1492 = vmatprep.subr.mxu0 0.0
  %1493 = vmatpush1.msra.mxu0 0.0
  %1494 = vmatprep.subr.mxu0 0.0
  %1495 = vmatpush1.msra.mxu0 0.0
  %1496 = vmatprep.subr.mxu0 0.0
  %1497 = vmatpush1.msra.mxu0 0.0
  %1498 = vmatprep.subr.mxu0 0.0
  %1499 = vmatpush1.msra.mxu0 0.0
  %1500 = vmatprep.subr.mxu0 0.0
  %1501 = vmatpush1.msra.mxu0 0.0
  %1502 = vmatprep.subr.mxu0 %v1485
  %1503 = vmatpush1.msra.mxu0 %v1484
  %1504 = vmatprep.subr.mxu0 %v1483
  %1505 = vmatpush1.msra.mxu0 %v1482
  %1506 = vmatprep.subr.mxu0 %v1481
  %1507 = vmatpush1.msra.mxu0 %v1480
  %1508 = vmatprep.subr.mxu0 %v1479
  %1509 = vmatpush1.msra.mxu0 %v1478
  %1510 = vmatprep.subr.mxu0 %v1477
  %1511 = vmatpush1.msra.mxu0 %v1476
  %1512 = vmatprep.subr.mxu0 %v1475
  %1513 = vmatpush1.msra.mxu0 %v1474
  %1514 = vmatprep.subr.mxu0 %v1473
  %1515 = vmatpush1.msra.mxu0 %v1472
  %1516 = vmatprep.subr.mxu0 %v1471
  %1517 = vmatpush1.msra.mxu0 %v1470
  %1518 = vmatprep.subr.mxu0 0.0
  %1519 = vmatpush2.msra.mxu0 0.0
  %1520 = vmatprep.subr.mxu0 0.0
  %1521 = vmatpush2.msra.mxu0 0.0
  %1522 = vmatprep.subr.mxu0 0.0
  %1523 = vmatpush2.msra.mxu0 0.0
  %1524 = vmatprep.subr.mxu0 0.0
  %1525 = vmatpush2.msra.mxu0 0.0
  %1526 = vmatprep.subr.mxu0 0.0
  %1527 = vmatpush2.msra.mxu0 0.0
  %1528 = vmatprep.subr.mxu0 0.0
  %1529 = vmatpush2.msra.mxu0 0.0
  %1530 = vmatprep.subr.mxu0 0.0
  %1531 = vmatpush2.msra.mxu0 0.0
  %1532 = vmatprep.subr.mxu0 0.0
  %1533 = vmatpush2.msra.mxu0 0.0
  %1534 = vmatprep.subr.mxu0 0.0
  %1535 = vmatpush2.msra.mxu0 0.0
  %1536 = vmatprep.subr.mxu0 0.0
  %1537 = vmatpush2.msra.mxu0 0.0
  %1538 = vmatprep.subr.mxu0 0.0
  %1539 = vmatpush2.msra.mxu0 0.0
  %1540 = vmatprep.subr.mxu0 0.0
  %1541 = vmatpush2.msra.mxu0 0.0
  %1542 = vmatprep.subr.mxu0 0.0
  %1543 = vmatpush2.msra.mxu0 0.0
  %1544 = vmatprep.subr.mxu0 0.0
  %1545 = vmatpush2.msra.mxu0 0.0
  %1546 = vmatprep.subr.mxu0 0.0
  %1547 = vmatpush2.msra.mxu0 0.0
  %1548 = vmatprep.subr.mxu0 0.0
  %1549 = vmatpush2.msra.mxu0 0.0
  %1550 = vmatprep.mubr.f32.mxu0 0.0
  %1551 = vmatmul.mubr.f32.gmra.mxu0 %v1394
  %v1552 = vpop.f32.mrf.mxu0
  %v1553 = vadd.f32 0.0, %v1552
  %v1554 = vpop.f32.mrf.mxu0
  %v1555 = vadd.f32 0.0, %v1554
  %1556 = vdwg.mxu0
  %v1557 = vadd.f32 %v1468, %v1553
  %v1558 = vadd.f32 %v1469, %v1555
  %v1559 = vxor.u32 %v1557, 2147483648
  %v1560 = vmul.f32 %v1559, 1.442695
  %v1561 = vpow.pop %v1560
  %v1562 = vadd.f32 %v1561, 1.0
  %v1563 = vrcp.pop %v1562
  %v1564 = vmul.f32 1.0, %v1563
  %v1565 = vtanh.pop %v1558
  %v1566 = vxor.u32 %v1558, 2147483648
  %v1567 = vmul.f32 %v1566, 1.442695
  %v1568 = vpow.pop %v1567
  %v1569 = vadd.f32 %v1568, 1.0
  %v1570 = vrcp.pop %v1569
  %v1571 = vmul.f32 1.0, %v1570
  %v1572 = vmul.f32 %v1564, %v1373
  %v1573 = vmul.f32 %v1564, %v1565
  %1575 = vrot.lane.b32.xlu0 %v1573, 64
  %v1576 = vpop.permute.xlu0 %1575
  %v1578 = vadd.f32 %v1572, %v1576
  %v1579 = vtanh.pop %v1578
  %v1580 = vmul.f32 %v1571, %v1579
  %v1581 = vld [vmem:[%s4] sm:$0xff]
  %v1582 = vld [vmem:[%s4 + $0x8] sm:$0xff]
  %v1583 = vld [vmem:[%s4 + $0x10] sm:$0xff]
  %v1584 = vld [vmem:[%s4 + $0x18] sm:$0xff]
  %v1585 = vld [vmem:[%s4 + $0x20] sm:$0xff]
  %v1586 = vld [vmem:[%s4 + $0x28] sm:$0xff]
  %v1587 = vld [vmem:[%s4 + $0x30] sm:$0xff]
  %v1588 = vld [vmem:[%s4 + $0x38] sm:$0xff]
  %v1589 = vld [vmem:[%s5] sm:$0x1]
  %v1591 = vlaneseq
  %v1592 = vshrl.u32 %v1591, 7
  %v1593 = vsub.s32 0, %v1592
  %v1594 = vrot.slane %v1589, %v1593
  %1597 = vrot.lane.b32.xlu0 %v1580, 64
  %v1598 = vpop.permute.xlu0 %1597
  %v1599 = vsel %vm146, %v1598, 0
  %1601 = vmatprep.subr.mxu0 0.0
  %1602 = vmatpush1.msra.mxu0 0.0
  %1603 = vmatprep.subr.mxu0 0.0
  %1604 = vmatpush1.msra.mxu0 0.0
  %1605 = vmatprep.subr.mxu0 0.0
  %1606 = vmatpush1.msra.mxu0 0.0
  %1607 = vmatprep.subr.mxu0 0.0
  %1608 = vmatpush1.msra.mxu0 0.0
  %1609 = vmatprep.subr.mxu0 0.0
  %1610 = vmatpush1.msra.mxu0 0.0
  %1611 = vmatprep.subr.mxu0 0.0
  %1612 = vmatpush1.msra.mxu0 0.0
  %1613 = vmatprep.subr.mxu0 0.0
  %1614 = vmatpush1.msra.mxu0 0.0
  %1615 = vmatprep.subr.mxu0 0.0
  %1616 = vmatpush1.msra.mxu0 0.0
  %1617 = vmatprep.subr.mxu0 0.0
  %1618 = vmatpush1.msra.mxu0 %v1588
  %1619 = vmatprep.subr.mxu0 0.0
  %1620 = vmatpush1.msra.mxu0 %v1587
  %1621 = vmatprep.subr.mxu0 0.0
  %1622 = vmatpush1.msra.mxu0 %v1586
  %1623 = vmatprep.subr.mxu0 0.0
  %1624 = vmatpush1.msra.mxu0 %v1585
  %1625 = vmatprep.subr.mxu0 0.0
  %1626 = vmatpush1.msra.mxu0 %v1584
  %1627 = vmatprep.subr.mxu0 0.0
  %1628 = vmatpush1.msra.mxu0 %v1583
  %1629 = vmatprep.subr.mxu0 0.0
  %1630 = vmatpush1.msra.mxu0 %v1582
  %1631 = vmatprep.subr.mxu0 0.0
  %1632 = vmatpush1.msra.mxu0 %v1581
  %1633 = vmatprep.subr.mxu0 0.0
  %1634 = vmatpush2.msra.mxu0 0.0
  %1635 = vmatprep.subr.mxu0 0.0
  %1636 = vmatpush2.msra.mxu0 0.0
  %1637 = vmatprep.subr.mxu0 0.0
  %1638 = vmatpush2.msra.mxu0 0.0
  %1639 = vmatprep.subr.mxu0 0.0
  %1640 = vmatpush2.msra.mxu0 0.0
  %1641 = vmatprep.subr.mxu0 0.0
  %1642 = vmatpush2.msra.mxu0 0.0
  %1643 = vmatprep.subr.mxu0 0.0
  %1644 = vmatpush2.msra.mxu0 0.0
  %1645 = vmatprep.subr.mxu0 0.0
  %1646 = vmatpush2.msra.mxu0 0.0
  %1647 = vmatprep.subr.mxu0 0.0
  %1648 = vmatpush2.msra.mxu0 0.0
  %1649 = vmatprep.subr.mxu0 0.0
  %1650 = vmatpush2.msra.mxu0 0.0
  %1651 = vmatprep.subr.mxu0 0.0
  %1652 = vmatpush2.msra.mxu0 0.0
  %1653 = vmatprep.subr.mxu0 0.0
  %1654 = vmatpush2.msra.mxu0 0.0
  %1655 = vmatprep.subr.mxu0 0.0
  %1656 = vmatpush2.msra.mxu0 0.0
  %1657 = vmatprep.subr.mxu0 0.0
  %1658 = vmatpush2.msra.mxu0 0.0
  %1659 = vmatprep.subr.mxu0 0.0
  %1660 = vmatpush2.msra.mxu0 0.0
  %1661 = vmatprep.subr.mxu0 0.0
  %1662 = vmatpush2.msra.mxu0 0.0
  %1663 = vmatprep.subr.mxu0 0.0
  %1664 = vmatpush2.msra.mxu0 0.0
  %1665 = vmatprep.mubr.f32.mxu0 0.0
  %1666 = vmatmul.mubr.f32.gmra.mxu0 %v1599
  %v1667 = vpop.f32.mrf.mxu0
  %v1668 = vadd.f32 %v1594, %v1667
  %v1669 = vpop.f32.mrf.mxu0
  %1670 = vdwg.mxu0
  %s1671 = scalar_lea.vmem %s6, 8
  %1672 = vst [vmem:[%s1671] sm:$0xff] %v1668
  %s1673 = scalar_lea.vmem [#allocation2], 160
  %v1674 = vld [vmem:[%s1673] sm:$0xff]
  %v1675 = vld [vmem:[%s1673 + $0x8] sm:$0xff]
  %v1676 = vld [vmem:[%s3] sm:$0xff]
  %v1677 = vld [vmem:[%s3 + $0x8] sm:$0xff]
  %v1678 = vld [vmem:[%s3 + $0x10] sm:$0xff]
  %v1679 = vld [vmem:[%s3 + $0x18] sm:$0xff]
  %v1680 = vld [vmem:[%s3 + $0x20] sm:$0xff]
  %v1681 = vld [vmem:[%s3 + $0x28] sm:$0xff]
  %v1682 = vld [vmem:[%s3 + $0x30] sm:$0xff]
  %v1683 = vld [vmem:[%s3 + $0x38] sm:$0xff]
  %v1684 = vld [vmem:[%s3 + $0x40] sm:$0xff]
  %v1685 = vld [vmem:[%s3 + $0x48] sm:$0xff]
  %v1686 = vld [vmem:[%s3 + $0x50] sm:$0xff]
  %v1687 = vld [vmem:[%s3 + $0x58] sm:$0xff]
  %v1688 = vld [vmem:[%s3 + $0x60] sm:$0xff]
  %v1689 = vld [vmem:[%s3 + $0x68] sm:$0xff]
  %v1690 = vld [vmem:[%s3 + $0x70] sm:$0xff]
  %v1691 = vld [vmem:[%s3 + $0x78] sm:$0xff]
  %1692 = vmatprep.subr.mxu0 0.0
  %1693 = vmatpush1.msra.mxu0 0.0
  %1694 = vmatprep.subr.mxu0 0.0
  %1695 = vmatpush1.msra.mxu0 0.0
  %1696 = vmatprep.subr.mxu0 0.0
  %1697 = vmatpush1.msra.mxu0 0.0
  %1698 = vmatprep.subr.mxu0 0.0
  %1699 = vmatpush1.msra.mxu0 0.0
  %1700 = vmatprep.subr.mxu0 0.0
  %1701 = vmatpush1.msra.mxu0 0.0
  %1702 = vmatprep.subr.mxu0 0.0
  %1703 = vmatpush1.msra.mxu0 0.0
  %1704 = vmatprep.subr.mxu0 0.0
  %1705 = vmatpush1.msra.mxu0 0.0
  %1706 = vmatprep.subr.mxu0 0.0
  %1707 = vmatpush1.msra.mxu0 0.0
  %1708 = vmatprep.subr.mxu0 %v1691
  %1709 = vmatpush1.msra.mxu0 %v1690
  %1710 = vmatprep.subr.mxu0 %v1689
  %1711 = vmatpush1.msra.mxu0 %v1688
  %1712 = vmatprep.subr.mxu0 %v1687
  %1713 = vmatpush1.msra.mxu0 %v1686
  %1714 = vmatprep.subr.mxu0 %v1685
  %1715 = vmatpush1.msra.mxu0 %v1684
  %1716 = vmatprep.subr.mxu0 %v1683
  %1717 = vmatpush1.msra.mxu0 %v1682
  %1718 = vmatprep.subr.mxu0 %v1681
  %1719 = vmatpush1.msra.mxu0 %v1680
  %1720 = vmatprep.subr.mxu0 %v1679
  %1721 = vmatpush1.msra.mxu0 %v1678
  %1722 = vmatprep.subr.mxu0 %v1677
  %1723 = vmatpush1.msra.mxu0 %v1676
  %1724 = vmatprep.subr.mxu0 0.0
  %1725 = vmatpush2.msra.mxu0 0.0
  %1726 = vmatprep.subr.mxu0 0.0
  %1727 = vmatpush2.msra.mxu0 0.0
  %1728 = vmatprep.subr.mxu0 0.0
  %1729 = vmatpush2.msra.mxu0 0.0
  %1730 = vmatprep.subr.mxu0 0.0
  %1731 = vmatpush2.msra.mxu0 0.0
  %1732 = vmatprep.subr.mxu0 0.0
  %1733 = vmatpush2.msra.mxu0 0.0
  %1734 = vmatprep.subr.mxu0 0.0
  %1735 = vmatpush2.msra.mxu0 0.0
  %1736 = vmatprep.subr.mxu0 0.0
  %1737 = vmatpush2.msra.mxu0 0.0
  %1738 = vmatprep.subr.mxu0 0.0
  %1739 = vmatpush2.msra.mxu0 0.0
  %1740 = vmatprep.subr.mxu0 0.0
  %1741 = vmatpush2.msra.mxu0 0.0
  %1742 = vmatprep.subr.mxu0 0.0
  %1743 = vmatpush2.msra.mxu0 0.0
  %1744 = vmatprep.subr.mxu0 0.0
  %1745 = vmatpush2.msra.mxu0 0.0
  %1746 = vmatprep.subr.mxu0 0.0
  %1747 = vmatpush2.msra.mxu0 0.0
  %1748 = vmatprep.subr.mxu0 0.0
  %1749 = vmatpush2.msra.mxu0 0.0
  %1750 = vmatprep.subr.mxu0 0.0
  %1751 = vmatpush2.msra.mxu0 0.0
  %1752 = vmatprep.subr.mxu0 0.0
  %1753 = vmatpush2.msra.mxu0 0.0
  %1754 = vmatprep.subr.mxu0 0.0
  %1755 = vmatpush2.msra.mxu0 0.0
  %1756 = vmatprep.mubr.f32.mxu0 0.0
  %1757 = vmatmul.mubr.f32.gmra.mxu0 %v1599
  %v1758 = vpop.f32.mrf.mxu0
  %v1759 = vadd.f32 0.0, %v1758
  %v1760 = vpop.f32.mrf.mxu0
  %v1761 = vadd.f32 0.0, %v1760
  %1762 = vdwg.mxu0
  %v1763 = vadd.f32 %v1674, %v1759
  %v1764 = vadd.f32 %v1675, %v1761
  %v1765 = vxor.u32 %v1763, 2147483648
  %v1766 = vmul.f32 %v1765, 1.442695
  %v1767 = vpow.pop %v1766
  %v1768 = vadd.f32 %v1767, 1.0
  %v1769 = vrcp.pop %v1768
  %v1770 = vmul.f32 1.0, %v1769
  %v1771 = vtanh.pop %v1764
  %v1772 = vxor.u32 %v1764, 2147483648
  %v1773 = vmul.f32 %v1772, 1.442695
  %v1774 = vpow.pop %v1773
  %v1775 = vadd.f32 %v1774, 1.0
  %v1776 = vrcp.pop %v1775
  %v1777 = vmul.f32 1.0, %v1776
  %v1778 = vmul.f32 %v1770, %v1578
  %v1779 = vmul.f32 %v1770, %v1771
  %1781 = vrot.lane.b32.xlu0 %v1779, 64
  %v1782 = vpop.permute.xlu0 %1781
  %v1784 = vadd.f32 %v1778, %v1782
  %v1785 = vtanh.pop %v1784
  %v1786 = vmul.f32 %v1777, %v1785
  %v1787 = vld [vmem:[%s4] sm:$0xff]
  %v1788 = vld [vmem:[%s4 + $0x8] sm:$0xff]
  %v1789 = vld [vmem:[%s4 + $0x10] sm:$0xff]
  %v1790 = vld [vmem:[%s4 + $0x18] sm:$0xff]
  %v1791 = vld [vmem:[%s4 + $0x20] sm:$0xff]
  %v1792 = vld [vmem:[%s4 + $0x28] sm:$0xff]
  %v1793 = vld [vmem:[%s4 + $0x30] sm:$0xff]
  %v1794 = vld [vmem:[%s4 + $0x38] sm:$0xff]
  %v1795 = vld [vmem:[%s5] sm:$0x1]
  %v1797 = vlaneseq
  %v1798 = vshrl.u32 %v1797, 7
  %v1799 = vsub.s32 0, %v1798
  %v1800 = vrot.slane %v1795, %v1799
  %1803 = vrot.lane.b32.xlu0 %v1786, 64
  %v1804 = vpop.permute.xlu0 %1803
  %v1805 = vsel %vm146, %v1804, 0
  %1807 = vmatprep.subr.mxu0 0.0
  %1808 = vmatpush1.msra.mxu0 0.0
  %1809 = vmatprep.subr.mxu0 0.0
  %1810 = vmatpush1.msra.mxu0 0.0
  %1811 = vmatprep.subr.mxu0 0.0
  %1812 = vmatpush1.msra.mxu0 0.0
  %1813 = vmatprep.subr.mxu0 0.0
  %1814 = vmatpush1.msra.mxu0 0.0
  %1815 = vmatprep.subr.mxu0 0.0
  %1816 = vmatpush1.msra.mxu0 0.0
  %1817 = vmatprep.subr.mxu0 0.0
  %1818 = vmatpush1.msra.mxu0 0.0
  %1819 = vmatprep.subr.mxu0 0.0
  %1820 = vmatpush1.msra.mxu0 0.0
  %1821 = vmatprep.subr.mxu0 0.0
  %1822 = vmatpush1.msra.mxu0 0.0
  %1823 = vmatprep.subr.mxu0 0.0
  %1824 = vmatpush1.msra.mxu0 %v1794
  %1825 = vmatprep.subr.mxu0 0.0
  %1826 = vmatpush1.msra.mxu0 %v1793
  %1827 = vmatprep.subr.mxu0 0.0
  %1828 = vmatpush1.msra.mxu0 %v1792
  %1829 = vmatprep.subr.mxu0 0.0
  %1830 = vmatpush1.msra.mxu0 %v1791
  %1831 = vmatprep.subr.mxu0 0.0
  %1832 = vmatpush1.msra.mxu0 %v1790
  %1833 = vmatprep.subr.mxu0 0.0
  %1834 = vmatpush1.msra.mxu0 %v1789
  %1835 = vmatprep.subr.mxu0 0.0
  %1836 = vmatpush1.msra.mxu0 %v1788
  %1837 = vmatprep.subr.mxu0 0.0
  %1838 = vmatpush1.msra.mxu0 %v1787
  %1839 = vmatprep.subr.mxu0 0.0
  %1840 = vmatpush2.msra.mxu0 0.0
  %1841 = vmatprep.subr.mxu0 0.0
  %1842 = vmatpush2.msra.mxu0 0.0
  %1843 = vmatprep.subr.mxu0 0.0
  %1844 = vmatpush2.msra.mxu0 0.0
  %1845 = vmatprep.subr.mxu0 0.0
  %1846 = vmatpush2.msra.mxu0 0.0
  %1847 = vmatprep.subr.mxu0 0.0
  %1848 = vmatpush2.msra.mxu0 0.0
  %1849 = vmatprep.subr.mxu0 0.0
  %1850 = vmatpush2.msra.mxu0 0.0
  %1851 = vmatprep.subr.mxu0 0.0
  %1852 = vmatpush2.msra.mxu0 0.0
  %1853 = vmatprep.subr.mxu0 0.0
  %1854 = vmatpush2.msra.mxu0 0.0
  %1855 = vmatprep.subr.mxu0 0.0
  %1856 = vmatpush2.msra.mxu0 0.0
  %1857 = vmatprep.subr.mxu0 0.0
  %1858 = vmatpush2.msra.mxu0 0.0
  %1859 = vmatprep.subr.mxu0 0.0
  %1860 = vmatpush2.msra.mxu0 0.0
  %1861 = vmatprep.subr.mxu0 0.0
  %1862 = vmatpush2.msra.mxu0 0.0
  %1863 = vmatprep.subr.mxu0 0.0
  %1864 = vmatpush2.msra.mxu0 0.0
  %1865 = vmatprep.subr.mxu0 0.0
  %1866 = vmatpush2.msra.mxu0 0.0
  %1867 = vmatprep.subr.mxu0 0.0
  %1868 = vmatpush2.msra.mxu0 0.0
  %1869 = vmatprep.subr.mxu0 0.0
  %1870 = vmatpush2.msra.mxu0 0.0
  %1871 = vmatprep.mubr.f32.mxu0 0.0
  %1872 = vmatmul.mubr.f32.gmra.mxu0 %v1805
  %v1873 = vpop.f32.mrf.mxu0
  %v1874 = vadd.f32 %v1800, %v1873
  %v1875 = vpop.f32.mrf.mxu0
  %1876 = vdwg.mxu0
  %s1877 = scalar_lea.vmem %s6, 16
  %1878 = vst [vmem:[%s1877] sm:$0xff] %v1874
  %s1879 = scalar_lea.vmem [#allocation2], 176
  %v1880 = vld [vmem:[%s1879] sm:$0xff]
  %v1881 = vld [vmem:[%s1879 + $0x8] sm:$0xff]
  %v1882 = vld [vmem:[%s3] sm:$0xff]
  %v1883 = vld [vmem:[%s3 + $0x8] sm:$0xff]
  %v1884 = vld [vmem:[%s3 + $0x10] sm:$0xff]
  %v1885 = vld [vmem:[%s3 + $0x18] sm:$0xff]
  %v1886 = vld [vmem:[%s3 + $0x20] sm:$0xff]
  %v1887 = vld [vmem:[%s3 + $0x28] sm:$0xff]
  %v1888 = vld [vmem:[%s3 + $0x30] sm:$0xff]
  %v1889 = vld [vmem:[%s3 + $0x38] sm:$0xff]
  %v1890 = vld [vmem:[%s3 + $0x40] sm:$0xff]
  %v1891 = vld [vmem:[%s3 + $0x48] sm:$0xff]
  %v1892 = vld [vmem:[%s3 + $0x50] sm:$0xff]
  %v1893 = vld [vmem:[%s3 + $0x58] sm:$0xff]
  %v1894 = vld [vmem:[%s3 + $0x60] sm:$0xff]
  %v1895 = vld [vmem:[%s3 + $0x68] sm:$0xff]
  %v1896 = vld [vmem:[%s3 + $0x70] sm:$0xff]
  %v1897 = vld [vmem:[%s3 + $0x78] sm:$0xff]
  %1898 = vmatprep.subr.mxu0 0.0
  %1899 = vmatpush1.msra.mxu0 0.0
  %1900 = vmatprep.subr.mxu0 0.0
  %1901 = vmatpush1.msra.mxu0 0.0
  %1902 = vmatprep.subr.mxu0 0.0
  %1903 = vmatpush1.msra.mxu0 0.0
  %1904 = vmatprep.subr.mxu0 0.0
  %1905 = vmatpush1.msra.mxu0 0.0
  %1906 = vmatprep.subr.mxu0 0.0
  %1907 = vmatpush1.msra.mxu0 0.0
  %1908 = vmatprep.subr.mxu0 0.0
  %1909 = vmatpush1.msra.mxu0 0.0
  %1910 = vmatprep.subr.mxu0 0.0
  %1911 = vmatpush1.msra.mxu0 0.0
  %1912 = vmatprep.subr.mxu0 0.0
  %1913 = vmatpush1.msra.mxu0 0.0
  %1914 = vmatprep.subr.mxu0 %v1897
  %1915 = vmatpush1.msra.mxu0 %v1896
  %1916 = vmatprep.subr.mxu0 %v1895
  %1917 = vmatpush1.msra.mxu0 %v1894
  %1918 = vmatprep.subr.mxu0 %v1893
  %1919 = vmatpush1.msra.mxu0 %v1892
  %1920 = vmatprep.subr.mxu0 %v1891
  %1921 = vmatpush1.msra.mxu0 %v1890
  %1922 = vmatprep.subr.mxu0 %v1889
  %1923 = vmatpush1.msra.mxu0 %v1888
  %1924 = vmatprep.subr.mxu0 %v1887
  %1925 = vmatpush1.msra.mxu0 %v1886
  %1926 = vmatprep.subr.mxu0 %v1885
  %1927 = vmatpush1.msra.mxu0 %v1884
  %1928 = vmatprep.subr.mxu0 %v1883
  %1929 = vmatpush1.msra.mxu0 %v1882
  %1930 = vmatprep.subr.mxu0 0.0
  %1931 = vmatpush2.msra.mxu0 0.0
  %1932 = vmatprep.subr.mxu0 0.0
  %1933 = vmatpush2.msra.mxu0 0.0
  %1934 = vmatprep.subr.mxu0 0.0
  %1935 = vmatpush2.msra.mxu0 0.0
  %1936 = vmatprep.subr.mxu0 0.0
  %1937 = vmatpush2.msra.mxu0 0.0
  %1938 = vmatprep.subr.mxu0 0.0
  %1939 = vmatpush2.msra.mxu0 0.0
  %1940 = vmatprep.subr.mxu0 0.0
  %1941 = vmatpush2.msra.mxu0 0.0
  %1942 = vmatprep.subr.mxu0 0.0
  %1943 = vmatpush2.msra.mxu0 0.0
  %1944 = vmatprep.subr.mxu0 0.0
  %1945 = vmatpush2.msra.mxu0 0.0
  %1946 = vmatprep.subr.mxu0 0.0
  %1947 = vmatpush2.msra.mxu0 0.0
  %1948 = vmatprep.subr.mxu0 0.0
  %1949 = vmatpush2.msra.mxu0 0.0
  %1950 = vmatprep.subr.mxu0 0.0
  %1951 = vmatpush2.msra.mxu0 0.0
  %1952 = vmatprep.subr.mxu0 0.0
  %1953 = vmatpush2.msra.mxu0 0.0
  %1954 = vmatprep.subr.mxu0 0.0
  %1955 = vmatpush2.msra.mxu0 0.0
  %1956 = vmatprep.subr.mxu0 0.0
  %1957 = vmatpush2.msra.mxu0 0.0
  %1958 = vmatprep.subr.mxu0 0.0
  %1959 = vmatpush2.msra.mxu0 0.0
  %1960 = vmatprep.subr.mxu0 0.0
  %1961 = vmatpush2.msra.mxu0 0.0
  %1962 = vmatprep.mubr.f32.mxu0 0.0
  %1963 = vmatmul.mubr.f32.gmra.mxu0 %v1805
  %v1964 = vpop.f32.mrf.mxu0
  %v1965 = vadd.f32 0.0, %v1964
  %v1966 = vpop.f32.mrf.mxu0
  %v1967 = vadd.f32 0.0, %v1966
  %1968 = vdwg.mxu0
  %v1969 = vadd.f32 %v1880, %v1965
  %v1970 = vadd.f32 %v1881, %v1967
  %v1971 = vxor.u32 %v1969, 2147483648
  %v1972 = vmul.f32 %v1971, 1.442695
  %v1973 = vpow.pop %v1972
  %v1974 = vadd.f32 %v1973, 1.0
  %v1975 = vrcp.pop %v1974
  %v1976 = vmul.f32 1.0, %v1975
  %v1977 = vtanh.pop %v1970
  %v1978 = vxor.u32 %v1970, 2147483648
  %v1979 = vmul.f32 %v1978, 1.442695
  %v1980 = vpow.pop %v1979
  %v1981 = vadd.f32 %v1980, 1.0
  %v1982 = vrcp.pop %v1981
  %v1983 = vmul.f32 1.0, %v1982
  %v1984 = vmul.f32 %v1976, %v1784
  %v1985 = vmul.f32 %v1976, %v1977
  %1987 = vrot.lane.b32.xlu0 %v1985, 64
  %v1988 = vpop.permute.xlu0 %1987
  %v1990 = vadd.f32 %v1984, %v1988
  %v1991 = vtanh.pop %v1990
  %v1992 = vmul.f32 %v1983, %v1991
  %v1993 = vld [vmem:[%s4] sm:$0xff]
  %v1994 = vld [vmem:[%s4 + $0x8] sm:$0xff]
  %v1995 = vld [vmem:[%s4 + $0x10] sm:$0xff]
  %v1996 = vld [vmem:[%s4 + $0x18] sm:$0xff]
  %v1997 = vld [vmem:[%s4 + $0x20] sm:$0xff]
  %v1998 = vld [vmem:[%s4 + $0x28] sm:$0xff]
  %v1999 = vld [vmem:[%s4 + $0x30] sm:$0xff]
  %v2000 = vld [vmem:[%s4 + $0x38] sm:$0xff]
  %v2001 = vld [vmem:[%s5] sm:$0x1]
  %v2003 = vlaneseq
  %v2004 = vshrl.u32 %v2003, 7
  %v2005 = vsub.s32 0, %v2004
  %v2006 = vrot.slane %v2001, %v2005
  %2009 = vrot.lane.b32.xlu0 %v1992, 64
  %v2010 = vpop.permute.xlu0 %2009
  %v2011 = vsel %vm146, %v2010, 0
  %2013 = vmatprep.subr.mxu0 0.0
  %2014 = vmatpush1.msra.mxu0 0.0
  %2015 = vmatprep.subr.mxu0 0.0
  %2016 = vmatpush1.msra.mxu0 0.0
  %2017 = vmatprep.subr.mxu0 0.0
  %2018 = vmatpush1.msra.mxu0 0.0
  %2019 = vmatprep.subr.mxu0 0.0
  %2020 = vmatpush1.msra.mxu0 0.0
  %2021 = vmatprep.subr.mxu0 0.0
  %2022 = vmatpush1.msra.mxu0 0.0
  %2023 = vmatprep.subr.mxu0 0.0
  %2024 = vmatpush1.msra.mxu0 0.0
  %2025 = vmatprep.subr.mxu0 0.0
  %2026 = vmatpush1.msra.mxu0 0.0
  %2027 = vmatprep.subr.mxu0 0.0
  %2028 = vmatpush1.msra.mxu0 0.0
  %2029 = vmatprep.subr.mxu0 0.0
  %2030 = vmatpush1.msra.mxu0 %v2000
  %2031 = vmatprep.subr.mxu0 0.0
  %2032 = vmatpush1.msra.mxu0 %v1999
  %2033 = vmatprep.subr.mxu0 0.0
  %2034 = vmatpush1.msra.mxu0 %v1998
  %2035 = vmatprep.subr.mxu0 0.0
  %2036 = vmatpush1.msra.mxu0 %v1997
  %2037 = vmatprep.subr.mxu0 0.0
  %2038 = vmatpush1.msra.mxu0 %v1996
  %2039 = vmatprep.subr.mxu0 0.0
  %2040 = vmatpush1.msra.mxu0 %v1995
  %2041 = vmatprep.subr.mxu0 0.0
  %2042 = vmatpush1.msra.mxu0 %v1994
  %2043 = vmatprep.subr.mxu0 0.0
  %2044 = vmatpush1.msra.mxu0 %v1993
  %2045 = vmatprep.subr.mxu0 0.0
  %2046 = vmatpush2.msra.mxu0 0.0
  %2047 = vmatprep.subr.mxu0 0.0
  %2048 = vmatpush2.msra.mxu0 0.0
  %2049 = vmatprep.subr.mxu0 0.0
  %2050 = vmatpush2.msra.mxu0 0.0
  %2051 = vmatprep.subr.mxu0 0.0
  %2052 = vmatpush2.msra.mxu0 0.0
  %2053 = vmatprep.subr.mxu0 0.0
  %2054 = vmatpush2.msra.mxu0 0.0
  %2055 = vmatprep.subr.mxu0 0.0
  %2056 = vmatpush2.msra.mxu0 0.0
  %2057 = vmatprep.subr.mxu0 0.0
  %2058 = vmatpush2.msra.mxu0 0.0
  %2059 = vmatprep.subr.mxu0 0.0
  %2060 = vmatpush2.msra.mxu0 0.0
  %2061 = vmatprep.subr.mxu0 0.0
  %2062 = vmatpush2.msra.mxu0 0.0
  %2063 = vmatprep.subr.mxu0 0.0
  %2064 = vmatpush2.msra.mxu0 0.0
  %2065 = vmatprep.subr.mxu0 0.0
  %2066 = vmatpush2.msra.mxu0 0.0
  %2067 = vmatprep.subr.mxu0 0.0
  %2068 = vmatpush2.msra.mxu0 0.0
  %2069 = vmatprep.subr.mxu0 0.0
  %2070 = vmatpush2.msra.mxu0 0.0
  %2071 = vmatprep.subr.mxu0 0.0
  %2072 = vmatpush2.msra.mxu0 0.0
  %2073 = vmatprep.subr.mxu0 0.0
  %2074 = vmatpush2.msra.mxu0 0.0
  %2075 = vmatprep.subr.mxu0 0.0
  %2076 = vmatpush2.msra.mxu0 0.0
  %2077 = vmatprep.mubr.f32.mxu0 0.0
  %2078 = vmatmul.mubr.f32.gmra.mxu0 %v2011
  %v2079 = vpop.f32.mrf.mxu0
  %v2080 = vadd.f32 %v2006, %v2079
  %v2081 = vpop.f32.mrf.mxu0
  %2082 = vdwg.mxu0
  %s2083 = scalar_lea.vmem %s6, 24
  %2084 = vst [vmem:[%s2083] sm:$0xff] %v2080
  %s2085 = scalar_lea.vmem [#allocation2], 192
  %v2086 = vld [vmem:[%s2085] sm:$0xff]
  %v2087 = vld [vmem:[%s2085 + $0x8] sm:$0xff]
  %v2088 = vld [vmem:[%s3] sm:$0xff]
  %v2089 = vld [vmem:[%s3 + $0x8] sm:$0xff]
  %v2090 = vld [vmem:[%s3 + $0x10] sm:$0xff]
  %v2091 = vld [vmem:[%s3 + $0x18] sm:$0xff]
  %v2092 = vld [vmem:[%s3 + $0x20] sm:$0xff]
  %v2093 = vld [vmem:[%s3 + $0x28] sm:$0xff]
  %v2094 = vld [vmem:[%s3 + $0x30] sm:$0xff]
  %v2095 = vld [vmem:[%s3 + $0x38] sm:$0xff]
  %v2096 = vld [vmem:[%s3 + $0x40] sm:$0xff]
  %v2097 = vld [vmem:[%s3 + $0x48] sm:$0xff]
  %v2098 = vld [vmem:[%s3 + $0x50] sm:$0xff]
  %v2099 = vld [vmem:[%s3 + $0x58] sm:$0xff]
  %v2100 = vld [vmem:[%s3 + $0x60] sm:$0xff]
  %v2101 = vld [vmem:[%s3 + $0x68] sm:$0xff]
  %v2102 = vld [vmem:[%s3 + $0x70] sm:$0xff]
  %v2103 = vld [vmem:[%s3 + $0x78] sm:$0xff]
  %2104 = vmatprep.subr.mxu0 0.0
  %2105 = vmatpush1.msra.mxu0 0.0
  %2106 = vmatprep.subr.mxu0 0.0
  %2107 = vmatpush1.msra.mxu0 0.0
  %2108 = vmatprep.subr.mxu0 0.0
  %2109 = vmatpush1.msra.mxu0 0.0
  %2110 = vmatprep.subr.mxu0 0.0
  %2111 = vmatpush1.msra.mxu0 0.0
  %2112 = vmatprep.subr.mxu0 0.0
  %2113 = vmatpush1.msra.mxu0 0.0
  %2114 = vmatprep.subr.mxu0 0.0
  %2115 = vmatpush1.msra.mxu0 0.0
  %2116 = vmatprep.subr.mxu0 0.0
  %2117 = vmatpush1.msra.mxu0 0.0
  %2118 = vmatprep.subr.mxu0 0.0
  %2119 = vmatpush1.msra.mxu0 0.0
  %2120 = vmatprep.subr.mxu0 %v2103
  %2121 = vmatpush1.msra.mxu0 %v2102
  %2122 = vmatprep.subr.mxu0 %v2101
  %2123 = vmatpush1.msra.mxu0 %v2100
  %2124 = vmatprep.subr.mxu0 %v2099
  %2125 = vmatpush1.msra.mxu0 %v2098
  %2126 = vmatprep.subr.mxu0 %v2097
  %2127 = vmatpush1.msra.mxu0 %v2096
  %2128 = vmatprep.subr.mxu0 %v2095
  %2129 = vmatpush1.msra.mxu0 %v2094
  %2130 = vmatprep.subr.mxu0 %v2093
  %2131 = vmatpush1.msra.mxu0 %v2092
  %2132 = vmatprep.subr.mxu0 %v2091
  %2133 = vmatpush1.msra.mxu0 %v2090
  %2134 = vmatprep.subr.mxu0 %v2089
  %2135 = vmatpush1.msra.mxu0 %v2088
  %2136 = vmatprep.subr.mxu0 0.0
  %2137 = vmatpush2.msra.mxu0 0.0
  %2138 = vmatprep.subr.mxu0 0.0
  %2139 = vmatpush2.msra.mxu0 0.0
  %2140 = vmatprep.subr.mxu0 0.0
  %2141 = vmatpush2.msra.mxu0 0.0
  %2142 = vmatprep.subr.mxu0 0.0
  %2143 = vmatpush2.msra.mxu0 0.0
  %2144 = vmatprep.subr.mxu0 0.0
  %2145 = vmatpush2.msra.mxu0 0.0
  %2146 = vmatprep.subr.mxu0 0.0
  %2147 = vmatpush2.msra.mxu0 0.0
  %2148 = vmatprep.subr.mxu0 0.0
  %2149 = vmatpush2.msra.mxu0 0.0
  %2150 = vmatprep.subr.mxu0 0.0
  %2151 = vmatpush2.msra.mxu0 0.0
  %2152 = vmatprep.subr.mxu0 0.0
  %2153 = vmatpush2.msra.mxu0 0.0
  %2154 = vmatprep.subr.mxu0 0.0
  %2155 = vmatpush2.msra.mxu0 0.0
  %2156 = vmatprep.subr.mxu0 0.0
  %2157 = vmatpush2.msra.mxu0 0.0
  %2158 = vmatprep.subr.mxu0 0.0
  %2159 = vmatpush2.msra.mxu0 0.0
  %2160 = vmatprep.subr.mxu0 0.0
  %2161 = vmatpush2.msra.mxu0 0.0
  %2162 = vmatprep.subr.mxu0 0.0
  %2163 = vmatpush2.msra.mxu0 0.0
  %2164 = vmatprep.subr.mxu0 0.0
  %2165 = vmatpush2.msra.mxu0 0.0
  %2166 = vmatprep.subr.mxu0 0.0
  %2167 = vmatpush2.msra.mxu0 0.0
  %2168 = vmatprep.mubr.f32.mxu0 0.0
  %2169 = vmatmul.mubr.f32.gmra.mxu0 %v2011
  %v2170 = vpop.f32.mrf.mxu0
  %v2171 = vadd.f32 0.0, %v2170
  %v2172 = vpop.f32.mrf.mxu0
  %v2173 = vadd.f32 0.0, %v2172
  %2174 = vdwg.mxu0
  %v2175 = vadd.f32 %v2086, %v2171
  %v2176 = vadd.f32 %v2087, %v2173
  %v2177 = vxor.u32 %v2175, 2147483648
  %v2178 = vmul.f32 %v2177, 1.442695
  %v2179 = vpow.pop %v2178
  %v2180 = vadd.f32 %v2179, 1.0
  %v2181 = vrcp.pop %v2180
  %v2182 = vmul.f32 1.0, %v2181
  %v2183 = vtanh.pop %v2176
  %v2184 = vxor.u32 %v2176, 2147483648
  %v2185 = vmul.f32 %v2184, 1.442695
  %v2186 = vpow.pop %v2185
  %v2187 = vadd.f32 %v2186, 1.0
  %v2188 = vrcp.pop %v2187
  %v2189 = vmul.f32 1.0, %v2188
  %v2190 = vmul.f32 %v2182, %v1990
  %v2191 = vmul.f32 %v2182, %v2183
  %2193 = vrot.lane.b32.xlu0 %v2191, 64
  %v2194 = vpop.permute.xlu0 %2193
  %v2196 = vadd.f32 %v2190, %v2194
  %v2197 = vtanh.pop %v2196
  %v2198 = vmul.f32 %v2189, %v2197
  %v2199 = vld [vmem:[%s4] sm:$0xff]
  %v2200 = vld [vmem:[%s4 + $0x8] sm:$0xff]
  %v2201 = vld [vmem:[%s4 + $0x10] sm:$0xff]
  %v2202 = vld [vmem:[%s4 + $0x18] sm:$0xff]
  %v2203 = vld [vmem:[%s4 + $0x20] sm:$0xff]
  %v2204 = vld [vmem:[%s4 + $0x28] sm:$0xff]
  %v2205 = vld [vmem:[%s4 + $0x30] sm:$0xff]
  %v2206 = vld [vmem:[%s4 + $0x38] sm:$0xff]
  %v2207 = vld [vmem:[%s5] sm:$0x1]
  %v2209 = vlaneseq
  %v2210 = vshrl.u32 %v2209, 7
  %v2211 = vsub.s32 0, %v2210
  %v2212 = vrot.slane %v2207, %v2211
  %2215 = vrot.lane.b32.xlu0 %v2198, 64
  %v2216 = vpop.permute.xlu0 %2215
  %v2217 = vsel %vm146, %v2216, 0
  %2219 = vmatprep.subr.mxu0 0.0
  %2220 = vmatpush1.msra.mxu0 0.0
  %2221 = vmatprep.subr.mxu0 0.0
  %2222 = vmatpush1.msra.mxu0 0.0
  %2223 = vmatprep.subr.mxu0 0.0
  %2224 = vmatpush1.msra.mxu0 0.0
  %2225 = vmatprep.subr.mxu0 0.0
  %2226 = vmatpush1.msra.mxu0 0.0
  %2227 = vmatprep.subr.mxu0 0.0
  %2228 = vmatpush1.msra.mxu0 0.0
  %2229 = vmatprep.subr.mxu0 0.0
  %2230 = vmatpush1.msra.mxu0 0.0
  %2231 = vmatprep.subr.mxu0 0.0
  %2232 = vmatpush1.msra.mxu0 0.0
  %2233 = vmatprep.subr.mxu0 0.0
  %2234 = vmatpush1.msra.mxu0 0.0
  %2235 = vmatprep.subr.mxu0 0.0
  %2236 = vmatpush1.msra.mxu0 %v2206
  %2237 = vmatprep.subr.mxu0 0.0
  %2238 = vmatpush1.msra.mxu0 %v2205
  %2239 = vmatprep.subr.mxu0 0.0
  %2240 = vmatpush1.msra.mxu0 %v2204
  %2241 = vmatprep.subr.mxu0 0.0
  %2242 = vmatpush1.msra.mxu0 %v2203
  %2243 = vmatprep.subr.mxu0 0.0
  %2244 = vmatpush1.msra.mxu0 %v2202
  %2245 = vmatprep.subr.mxu0 0.0
  %2246 = vmatpush1.msra.mxu0 %v2201
  %2247 = vmatprep.subr.mxu0 0.0
  %2248 = vmatpush1.msra.mxu0 %v2200
  %2249 = vmatprep.subr.mxu0 0.0
  %2250 = vmatpush1.msra.mxu0 %v2199
  %2251 = vmatprep.subr.mxu0 0.0
  %2252 = vmatpush2.msra.mxu0 0.0
  %2253 = vmatprep.subr.mxu0 0.0
  %2254 = vmatpush2.msra.mxu0 0.0
  %2255 = vmatprep.subr.mxu0 0.0
  %2256 = vmatpush2.msra.mxu0 0.0
  %2257 = vmatprep.subr.mxu0 0.0
  %2258 = vmatpush2.msra.mxu0 0.0
  %2259 = vmatprep.subr.mxu0 0.0
  %2260 = vmatpush2.msra.mxu0 0.0
  %2261 = vmatprep.subr.mxu0 0.0
  %2262 = vmatpush2.msra.mxu0 0.0
  %2263 = vmatprep.subr.mxu0 0.0
  %2264 = vmatpush2.msra.mxu0 0.0
  %2265 = vmatprep.subr.mxu0 0.0
  %2266 = vmatpush2.msra.mxu0 0.0
  %2267 = vmatprep.subr.mxu0 0.0
  %2268 = vmatpush2.msra.mxu0 0.0
  %2269 = vmatprep.subr.mxu0 0.0
  %2270 = vmatpush2.msra.mxu0 0.0
  %2271 = vmatprep.subr.mxu0 0.0
  %2272 = vmatpush2.msra.mxu0 0.0
  %2273 = vmatprep.subr.mxu0 0.0
  %2274 = vmatpush2.msra.mxu0 0.0
  %2275 = vmatprep.subr.mxu0 0.0
  %2276 = vmatpush2.msra.mxu0 0.0
  %2277 = vmatprep.subr.mxu0 0.0
  %2278 = vmatpush2.msra.mxu0 0.0
  %2279 = vmatprep.subr.mxu0 0.0
  %2280 = vmatpush2.msra.mxu0 0.0
  %2281 = vmatprep.subr.mxu0 0.0
  %2282 = vmatpush2.msra.mxu0 0.0
  %2283 = vmatprep.mubr.f32.mxu0 0.0
  %2284 = vmatmul.mubr.f32.gmra.mxu0 %v2217
  %v2285 = vpop.f32.mrf.mxu0
  %v2286 = vadd.f32 %v2212, %v2285
  %v2287 = vpop.f32.mrf.mxu0
  %2288 = vdwg.mxu0
  %s2289 = scalar_lea.vmem %s6, 32
  %2290 = vst [vmem:[%s2289] sm:$0xff] %v2286
  %s2291 = scalar_lea.vmem [#allocation2], 208
  %v2292 = vld [vmem:[%s2291] sm:$0xff]
  %v2293 = vld [vmem:[%s2291 + $0x8] sm:$0xff]
  %v2294 = vld [vmem:[%s3] sm:$0xff]
  %v2295 = vld [vmem:[%s3 + $0x8] sm:$0xff]
  %v2296 = vld [vmem:[%s3 + $0x10] sm:$0xff]
  %v2297 = vld [vmem:[%s3 + $0x18] sm:$0xff]
  %v2298 = vld [vmem:[%s3 + $0x20] sm:$0xff]
  %v2299 = vld [vmem:[%s3 + $0x28] sm:$0xff]
  %v2300 = vld [vmem:[%s3 + $0x30] sm:$0xff]
  %v2301 = vld [vmem:[%s3 + $0x38] sm:$0xff]
  %v2302 = vld [vmem:[%s3 + $0x40] sm:$0xff]
  %v2303 = vld [vmem:[%s3 + $0x48] sm:$0xff]
  %v2304 = vld [vmem:[%s3 + $0x50] sm:$0xff]
  %v2305 = vld [vmem:[%s3 + $0x58] sm:$0xff]
  %v2306 = vld [vmem:[%s3 + $0x60] sm:$0xff]
  %v2307 = vld [vmem:[%s3 + $0x68] sm:$0xff]
  %v2308 = vld [vmem:[%s3 + $0x70] sm:$0xff]
  %v2309 = vld [vmem:[%s3 + $0x78] sm:$0xff]
  %2310 = vmatprep.subr.mxu0 0.0
  %2311 = vmatpush1.msra.mxu0 0.0
  %2312 = vmatprep.subr.mxu0 0.0
  %2313 = vmatpush1.msra.mxu0 0.0
  %2314 = vmatprep.subr.mxu0 0.0
  %2315 = vmatpush1.msra.mxu0 0.0
  %2316 = vmatprep.subr.mxu0 0.0
  %2317 = vmatpush1.msra.mxu0 0.0
  %2318 = vmatprep.subr.mxu0 0.0
  %2319 = vmatpush1.msra.mxu0 0.0
  %2320 = vmatprep.subr.mxu0 0.0
  %2321 = vmatpush1.msra.mxu0 0.0
  %2322 = vmatprep.subr.mxu0 0.0
  %2323 = vmatpush1.msra.mxu0 0.0
  %2324 = vmatprep.subr.mxu0 0.0
  %2325 = vmatpush1.msra.mxu0 0.0
  %2326 = vmatprep.subr.mxu0 %v2309
  %2327 = vmatpush1.msra.mxu0 %v2308
  %2328 = vmatprep.subr.mxu0 %v2307
  %2329 = vmatpush1.msra.mxu0 %v2306
  %2330 = vmatprep.subr.mxu0 %v2305
  %2331 = vmatpush1.msra.mxu0 %v2304
  %2332 = vmatprep.subr.mxu0 %v2303
  %2333 = vmatpush1.msra.mxu0 %v2302
  %2334 = vmatprep.subr.mxu0 %v2301
  %2335 = vmatpush1.msra.mxu0 %v2300
  %2336 = vmatprep.subr.mxu0 %v2299
  %2337 = vmatpush1.msra.mxu0 %v2298
  %2338 = vmatprep.subr.mxu0 %v2297
  %2339 = vmatpush1.msra.mxu0 %v2296
  %2340 = vmatprep.subr.mxu0 %v2295
  %2341 = vmatpush1.msra.mxu0 %v2294
  %2342 = vmatprep.subr.mxu0 0.0
  %2343 = vmatpush2.msra.mxu0 0.0
  %2344 = vmatprep.subr.mxu0 0.0
  %2345 = vmatpush2.msra.mxu0 0.0
  %2346 = vmatprep.subr.mxu0 0.0
  %2347 = vmatpush2.msra.mxu0 0.0
  %2348 = vmatprep.subr.mxu0 0.0
  %2349 = vmatpush2.msra.mxu0 0.0
  %2350 = vmatprep.subr.mxu0 0.0
  %2351 = vmatpush2.msra.mxu0 0.0
  %2352 = vmatprep.subr.mxu0 0.0
  %2353 = vmatpush2.msra.mxu0 0.0
  %2354 = vmatprep.subr.mxu0 0.0
  %2355 = vmatpush2.msra.mxu0 0.0
  %2356 = vmatprep.subr.mxu0 0.0
  %2357 = vmatpush2.msra.mxu0 0.0
  %2358 = vmatprep.subr.mxu0 0.0
  %2359 = vmatpush2.msra.mxu0 0.0
  %2360 = vmatprep.subr.mxu0 0.0
  %2361 = vmatpush2.msra.mxu0 0.0
  %2362 = vmatprep.subr.mxu0 0.0
  %2363 = vmatpush2.msra.mxu0 0.0
  %2364 = vmatprep.subr.mxu0 0.0
  %2365 = vmatpush2.msra.mxu0 0.0
  %2366 = vmatprep.subr.mxu0 0.0
  %2367 = vmatpush2.msra.mxu0 0.0
  %2368 = vmatprep.subr.mxu0 0.0
  %2369 = vmatpush2.msra.mxu0 0.0
  %2370 = vmatprep.subr.mxu0 0.0
  %2371 = vmatpush2.msra.mxu0 0.0
  %2372 = vmatprep.subr.mxu0 0.0
  %2373 = vmatpush2.msra.mxu0 0.0
  %2374 = vmatprep.mubr.f32.mxu0 0.0
  %2375 = vmatmul.mubr.f32.gmra.mxu0 %v2217
  %v2376 = vpop.f32.mrf.mxu0
  %v2377 = vadd.f32 0.0, %v2376
  %v2378 = vpop.f32.mrf.mxu0
  %v2379 = vadd.f32 0.0, %v2378
  %2380 = vdwg.mxu0
  %v2381 = vadd.f32 %v2292, %v2377
  %v2382 = vadd.f32 %v2293, %v2379
  %v2383 = vxor.u32 %v2381, 2147483648
  %v2384 = vmul.f32 %v2383, 1.442695
  %v2385 = vpow.pop %v2384
  %v2386 = vadd.f32 %v2385, 1.0
  %v2387 = vrcp.pop %v2386
  %v2388 = vmul.f32 1.0, %v2387
  %v2389 = vtanh.pop %v2382
  %v2390 = vxor.u32 %v2382, 2147483648
  %v2391 = vmul.f32 %v2390, 1.442695
  %v2392 = vpow.pop %v2391
  %v2393 = vadd.f32 %v2392, 1.0
  %v2394 = vrcp.pop %v2393
  %v2395 = vmul.f32 1.0, %v2394
  %v2396 = vmul.f32 %v2388, %v2196
  %v2397 = vmul.f32 %v2388, %v2389
  %2399 = vrot.lane.b32.xlu0 %v2397, 64
  %v2400 = vpop.permute.xlu0 %2399
  %v2402 = vadd.f32 %v2396, %v2400
  %v2403 = vtanh.pop %v2402
  %v2404 = vmul.f32 %v2395, %v2403
  %v2405 = vld [vmem:[%s4] sm:$0xff]
  %v2406 = vld [vmem:[%s4 + $0x8] sm:$0xff]
  %v2407 = vld [vmem:[%s4 + $0x10] sm:$0xff]
  %v2408 = vld [vmem:[%s4 + $0x18] sm:$0xff]
  %v2409 = vld [vmem:[%s4 + $0x20] sm:$0xff]
  %v2410 = vld [vmem:[%s4 + $0x28] sm:$0xff]
  %v2411 = vld [vmem:[%s4 + $0x30] sm:$0xff]
  %v2412 = vld [vmem:[%s4 + $0x38] sm:$0xff]
  %v2413 = vld [vmem:[%s5] sm:$0x1]
  %v2415 = vlaneseq
  %v2416 = vshrl.u32 %v2415, 7
  %v2417 = vsub.s32 0, %v2416
  %v2418 = vrot.slane %v2413, %v2417
  %2421 = vrot.lane.b32.xlu0 %v2404, 64
  %v2422 = vpop.permute.xlu0 %2421
  %v2423 = vsel %vm146, %v2422, 0
  %2425 = vmatprep.subr.mxu0 0.0
  %2426 = vmatpush1.msra.mxu0 0.0
  %2427 = vmatprep.subr.mxu0 0.0
  %2428 = vmatpush1.msra.mxu0 0.0
  %2429 = vmatprep.subr.mxu0 0.0
  %2430 = vmatpush1.msra.mxu0 0.0
  %2431 = vmatprep.subr.mxu0 0.0
  %2432 = vmatpush1.msra.mxu0 0.0
  %2433 = vmatprep.subr.mxu0 0.0
  %2434 = vmatpush1.msra.mxu0 0.0
  %2435 = vmatprep.subr.mxu0 0.0
  %2436 = vmatpush1.msra.mxu0 0.0
  %2437 = vmatprep.subr.mxu0 0.0
  %2438 = vmatpush1.msra.mxu0 0.0
  %2439 = vmatprep.subr.mxu0 0.0
  %2440 = vmatpush1.msra.mxu0 0.0
  %2441 = vmatprep.subr.mxu0 0.0
  %2442 = vmatpush1.msra.mxu0 %v2412
  %2443 = vmatprep.subr.mxu0 0.0
  %2444 = vmatpush1.msra.mxu0 %v2411
  %2445 = vmatprep.subr.mxu0 0.0
  %2446 = vmatpush1.msra.mxu0 %v2410
  %2447 = vmatprep.subr.mxu0 0.0
  %2448 = vmatpush1.msra.mxu0 %v2409
  %2449 = vmatprep.subr.mxu0 0.0
  %2450 = vmatpush1.msra.mxu0 %v2408
  %2451 = vmatprep.subr.mxu0 0.0
  %2452 = vmatpush1.msra.mxu0 %v2407
  %2453 = vmatprep.subr.mxu0 0.0
  %2454 = vmatpush1.msra.mxu0 %v2406
  %2455 = vmatprep.subr.mxu0 0.0
  %2456 = vmatpush1.msra.mxu0 %v2405
  %2457 = vmatprep.subr.mxu0 0.0
  %2458 = vmatpush2.msra.mxu0 0.0
  %2459 = vmatprep.subr.mxu0 0.0
  %2460 = vmatpush2.msra.mxu0 0.0
  %2461 = vmatprep.subr.mxu0 0.0
  %2462 = vmatpush2.msra.mxu0 0.0
  %2463 = vmatprep.subr.mxu0 0.0
  %2464 = vmatpush2.msra.mxu0 0.0
  %2465 = vmatprep.subr.mxu0 0.0
  %2466 = vmatpush2.msra.mxu0 0.0
  %2467 = vmatprep.subr.mxu0 0.0
  %2468 = vmatpush2.msra.mxu0 0.0
  %2469 = vmatprep.subr.mxu0 0.0
  %2470 = vmatpush2.msra.mxu0 0.0
  %2471 = vmatprep.subr.mxu0 0.0
  %2472 = vmatpush2.msra.mxu0 0.0
  %2473 = vmatprep.subr.mxu0 0.0
  %2474 = vmatpush2.msra.mxu0 0.0
  %2475 = vmatprep.subr.mxu0 0.0
  %2476 = vmatpush2.msra.mxu0 0.0
  %2477 = vmatprep.subr.mxu0 0.0
  %2478 = vmatpush2.msra.mxu0 0.0
  %2479 = vmatprep.subr.mxu0 0.0
  %2480 = vmatpush2.msra.mxu0 0.0
  %2481 = vmatprep.subr.mxu0 0.0
  %2482 = vmatpush2.msra.mxu0 0.0
  %2483 = vmatprep.subr.mxu0 0.0
  %2484 = vmatpush2.msra.mxu0 0.0
  %2485 = vmatprep.subr.mxu0 0.0
  %2486 = vmatpush2.msra.mxu0 0.0
  %2487 = vmatprep.subr.mxu0 0.0
  %2488 = vmatpush2.msra.mxu0 0.0
  %2489 = vmatprep.mubr.f32.mxu0 0.0
  %2490 = vmatmul.mubr.f32.gmra.mxu0 %v2423
  %v2491 = vpop.f32.mrf.mxu0
  %v2492 = vadd.f32 %v2418, %v2491
  %v2493 = vpop.f32.mrf.mxu0
  %2494 = vdwg.mxu0
  %s2495 = scalar_lea.vmem %s6, 40
  %2496 = vst [vmem:[%s2495] sm:$0xff] %v2492
  %s2497 = scalar_lea.vmem [#allocation2], 224
  %v2498 = vld [vmem:[%s2497] sm:$0xff]
  %v2499 = vld [vmem:[%s2497 + $0x8] sm:$0xff]
  %v2500 = vld [vmem:[%s3] sm:$0xff]
  %v2501 = vld [vmem:[%s3 + $0x8] sm:$0xff]
  %v2502 = vld [vmem:[%s3 + $0x10] sm:$0xff]
  %v2503 = vld [vmem:[%s3 + $0x18] sm:$0xff]
  %v2504 = vld [vmem:[%s3 + $0x20] sm:$0xff]
  %v2505 = vld [vmem:[%s3 + $0x28] sm:$0xff]
  %v2506 = vld [vmem:[%s3 + $0x30] sm:$0xff]
  %v2507 = vld [vmem:[%s3 + $0x38] sm:$0xff]
  %v2508 = vld [vmem:[%s3 + $0x40] sm:$0xff]
  %v2509 = vld [vmem:[%s3 + $0x48] sm:$0xff]
  %v2510 = vld [vmem:[%s3 + $0x50] sm:$0xff]
  %v2511 = vld [vmem:[%s3 + $0x58] sm:$0xff]
  %v2512 = vld [vmem:[%s3 + $0x60] sm:$0xff]
  %v2513 = vld [vmem:[%s3 + $0x68] sm:$0xff]
  %v2514 = vld [vmem:[%s3 + $0x70] sm:$0xff]
  %v2515 = vld [vmem:[%s3 + $0x78] sm:$0xff]
  %2516 = vmatprep.subr.mxu0 0.0
  %2517 = vmatpush1.msra.mxu0 0.0
  %2518 = vmatprep.subr.mxu0 0.0
  %2519 = vmatpush1.msra.mxu0 0.0
  %2520 = vmatprep.subr.mxu0 0.0
  %2521 = vmatpush1.msra.mxu0 0.0
  %2522 = vmatprep.subr.mxu0 0.0
  %2523 = vmatpush1.msra.mxu0 0.0
  %2524 = vmatprep.subr.mxu0 0.0
  %2525 = vmatpush1.msra.mxu0 0.0
  %2526 = vmatprep.subr.mxu0 0.0
  %2527 = vmatpush1.msra.mxu0 0.0
  %2528 = vmatprep.subr.mxu0 0.0
  %2529 = vmatpush1.msra.mxu0 0.0
  %2530 = vmatprep.subr.mxu0 0.0
  %2531 = vmatpush1.msra.mxu0 0.0
  %2532 = vmatprep.subr.mxu0 %v2515
  %2533 = vmatpush1.msra.mxu0 %v2514
  %2534 = vmatprep.subr.mxu0 %v2513
  %2535 = vmatpush1.msra.mxu0 %v2512
  %2536 = vmatprep.subr.mxu0 %v2511
  %2537 = vmatpush1.msra.mxu0 %v2510
  %2538 = vmatprep.subr.mxu0 %v2509
  %2539 = vmatpush1.msra.mxu0 %v2508
  %2540 = vmatprep.subr.mxu0 %v2507
  %2541 = vmatpush1.msra.mxu0 %v2506
  %2542 = vmatprep.subr.mxu0 %v2505
  %2543 = vmatpush1.msra.mxu0 %v2504
  %2544 = vmatprep.subr.mxu0 %v2503
  %2545 = vmatpush1.msra.mxu0 %v2502
  %2546 = vmatprep.subr.mxu0 %v2501
  %2547 = vmatpush1.msra.mxu0 %v2500
  %2548 = vmatprep.subr.mxu0 0.0
  %2549 = vmatpush2.msra.mxu0 0.0
  %2550 = vmatprep.subr.mxu0 0.0
  %2551 = vmatpush2.msra.mxu0 0.0
  %2552 = vmatprep.subr.mxu0 0.0
  %2553 = vmatpush2.msra.mxu0 0.0
  %2554 = vmatprep.subr.mxu0 0.0
  %2555 = vmatpush2.msra.mxu0 0.0
  %2556 = vmatprep.subr.mxu0 0.0
  %2557 = vmatpush2.msra.mxu0 0.0
  %2558 = vmatprep.subr.mxu0 0.0
  %2559 = vmatpush2.msra.mxu0 0.0
  %2560 = vmatprep.subr.mxu0 0.0
  %2561 = vmatpush2.msra.mxu0 0.0
  %2562 = vmatprep.subr.mxu0 0.0
  %2563 = vmatpush2.msra.mxu0 0.0
  %2564 = vmatprep.subr.mxu0 0.0
  %2565 = vmatpush2.msra.mxu0 0.0
  %2566 = vmatprep.subr.mxu0 0.0
  %2567 = vmatpush2.msra.mxu0 0.0
  %2568 = vmatprep.subr.mxu0 0.0
  %2569 = vmatpush2.msra.mxu0 0.0
  %2570 = vmatprep.subr.mxu0 0.0
  %2571 = vmatpush2.msra.mxu0 0.0
  %2572 = vmatprep.subr.mxu0 0.0
  %2573 = vmatpush2.msra.mxu0 0.0
  %2574 = vmatprep.subr.mxu0 0.0
  %2575 = vmatpush2.msra.mxu0 0.0
  %2576 = vmatprep.subr.mxu0 0.0
  %2577 = vmatpush2.msra.mxu0 0.0
  %2578 = vmatprep.subr.mxu0 0.0
  %2579 = vmatpush2.msra.mxu0 0.0
  %2580 = vmatprep.mubr.f32.mxu0 0.0
  %2581 = vmatmul.mubr.f32.gmra.mxu0 %v2423
  %v2582 = vpop.f32.mrf.mxu0
  %v2583 = vadd.f32 0.0, %v2582
  %v2584 = vpop.f32.mrf.mxu0
  %v2585 = vadd.f32 0.0, %v2584
  %2586 = vdwg.mxu0
  %v2587 = vadd.f32 %v2498, %v2583
  %v2588 = vadd.f32 %v2499, %v2585
  %v2589 = vxor.u32 %v2587, 2147483648
  %v2590 = vmul.f32 %v2589, 1.442695
  %v2591 = vpow.pop %v2590
  %v2592 = vadd.f32 %v2591, 1.0
  %v2593 = vrcp.pop %v2592
  %v2594 = vmul.f32 1.0, %v2593
  %v2595 = vtanh.pop %v2588
  %v2596 = vxor.u32 %v2588, 2147483648
  %v2597 = vmul.f32 %v2596, 1.442695
  %v2598 = vpow.pop %v2597
  %v2599 = vadd.f32 %v2598, 1.0
  %v2600 = vrcp.pop %v2599
  %v2601 = vmul.f32 1.0, %v2600
  %v2602 = vmul.f32 %v2594, %v2402
  %v2603 = vmul.f32 %v2594, %v2595
  %2605 = vrot.lane.b32.xlu0 %v2603, 64
  %v2606 = vpop.permute.xlu0 %2605
  %v2608 = vadd.f32 %v2602, %v2606
  %v2609 = vtanh.pop %v2608
  %v2610 = vmul.f32 %v2601, %v2609
  %v2611 = vld [vmem:[%s4] sm:$0xff]
  %v2612 = vld [vmem:[%s4 + $0x8] sm:$0xff]
  %v2613 = vld [vmem:[%s4 + $0x10] sm:$0xff]
  %v2614 = vld [vmem:[%s4 + $0x18] sm:$0xff]
  %v2615 = vld [vmem:[%s4 + $0x20] sm:$0xff]
  %v2616 = vld [vmem:[%s4 + $0x28] sm:$0xff]
  %v2617 = vld [vmem:[%s4 + $0x30] sm:$0xff]
  %v2618 = vld [vmem:[%s4 + $0x38] sm:$0xff]
  %v2619 = vld [vmem:[%s5] sm:$0x1]
  %v2621 = vlaneseq
  %v2622 = vshrl.u32 %v2621, 7
  %v2623 = vsub.s32 0, %v2622
  %v2624 = vrot.slane %v2619, %v2623
  %2627 = vrot.lane.b32.xlu0 %v2610, 64
  %v2628 = vpop.permute.xlu0 %2627
  %v2629 = vsel %vm146, %v2628, 0
  %2631 = vmatprep.subr.mxu0 0.0
  %2632 = vmatpush1.msra.mxu0 0.0
  %2633 = vmatprep.subr.mxu0 0.0
  %2634 = vmatpush1.msra.mxu0 0.0
  %2635 = vmatprep.subr.mxu0 0.0
  %2636 = vmatpush1.msra.mxu0 0.0
  %2637 = vmatprep.subr.mxu0 0.0
  %2638 = vmatpush1.msra.mxu0 0.0
  %2639 = vmatprep.subr.mxu0 0.0
  %2640 = vmatpush1.msra.mxu0 0.0
  %2641 = vmatprep.subr.mxu0 0.0
  %2642 = vmatpush1.msra.mxu0 0.0
  %2643 = vmatprep.subr.mxu0 0.0
  %2644 = vmatpush1.msra.mxu0 0.0
  %2645 = vmatprep.subr.mxu0 0.0
  %2646 = vmatpush1.msra.mxu0 0.0
  %2647 = vmatprep.subr.mxu0 0.0
  %2648 = vmatpush1.msra.mxu0 %v2618
  %2649 = vmatprep.subr.mxu0 0.0
  %2650 = vmatpush1.msra.mxu0 %v2617
  %2651 = vmatprep.subr.mxu0 0.0
  %2652 = vmatpush1.msra.mxu0 %v2616
  %2653 = vmatprep.subr.mxu0 0.0
  %2654 = vmatpush1.msra.mxu0 %v2615
  %2655 = vmatprep.subr.mxu0 0.0
  %2656 = vmatpush1.msra.mxu0 %v2614
  %2657 = vmatprep.subr.mxu0 0.0
  %2658 = vmatpush1.msra.mxu0 %v2613
  %2659 = vmatprep.subr.mxu0 0.0
  %2660 = vmatpush1.msra.mxu0 %v2612
  %2661 = vmatprep.subr.mxu0 0.0
  %2662 = vmatpush1.msra.mxu0 %v2611
  %2663 = vmatprep.subr.mxu0 0.0
  %2664 = vmatpush2.msra.mxu0 0.0
  %2665 = vmatprep.subr.mxu0 0.0
  %2666 = vmatpush2.msra.mxu0 0.0
  %2667 = vmatprep.subr.mxu0 0.0
  %2668 = vmatpush2.msra.mxu0 0.0
  %2669 = vmatprep.subr.mxu0 0.0
  %2670 = vmatpush2.msra.mxu0 0.0
  %2671 = vmatprep.subr.mxu0 0.0
  %2672 = vmatpush2.msra.mxu0 0.0
  %2673 = vmatprep.subr.mxu0 0.0
  %2674 = vmatpush2.msra.mxu0 0.0
  %2675 = vmatprep.subr.mxu0 0.0
  %2676 = vmatpush2.msra.mxu0 0.0
  %2677 = vmatprep.subr.mxu0 0.0
  %2678 = vmatpush2.msra.mxu0 0.0
  %2679 = vmatprep.subr.mxu0 0.0
  %2680 = vmatpush2.msra.mxu0 0.0
  %2681 = vmatprep.subr.mxu0 0.0
  %2682 = vmatpush2.msra.mxu0 0.0
  %2683 = vmatprep.subr.mxu0 0.0
  %2684 = vmatpush2.msra.mxu0 0.0
  %2685 = vmatprep.subr.mxu0 0.0
  %2686 = vmatpush2.msra.mxu0 0.0
  %2687 = vmatprep.subr.mxu0 0.0
  %2688 = vmatpush2.msra.mxu0 0.0
  %2689 = vmatprep.subr.mxu0 0.0
  %2690 = vmatpush2.msra.mxu0 0.0
  %2691 = vmatprep.subr.mxu0 0.0
  %2692 = vmatpush2.msra.mxu0 0.0
  %2693 = vmatprep.subr.mxu0 0.0
  %2694 = vmatpush2.msra.mxu0 0.0
  %2695 = vmatprep.mubr.f32.mxu0 0.0
  %2696 = vmatmul.mubr.f32.gmra.mxu0 %v2629
  %v2697 = vpop.f32.mrf.mxu0
  %v2698 = vadd.f32 %v2624, %v2697
  %v2699 = vpop.f32.mrf.mxu0
  %2700 = vdwg.mxu0
  %s2701 = scalar_lea.vmem %s6, 48
  %2702 = vst [vmem:[%s2701] sm:$0xff] %v2698
  // Predicated region
  $region26: #{encoder_decoder_forward.1} parent=0 // pred_check
    _
  $region27: #{encoder_decoder_forward.1} parent=0 // pred_check_branch
    %2704 = sbr.rel (0) target = $region29
  $region28: #{encoder_decoder_forward.1} parent=0 // pred_region
    _
  $region29: #{encoder_decoder_forward.1} parent=0 // pred_fallthru
    _
  // Predicated region
  $region30: #{encoder_decoder_forward.1} parent=0 // pred_check
    _
  $region31: #{encoder_decoder_forward.1} parent=0 // pred_check_branch
    %2706 = sbr.rel (0) target = $region33
  $region32: #{encoder_decoder_forward.1} parent=0 // pred_region
    _
  $region33: #{encoder_decoder_forward.1} parent=0 // pred_fallthru
    _

</llo_original>
